<compile_context>
chip_gen: v7x
topology: tpu7x:2x2x1
jax: 0.10.0
libtpu: 0.0.40
codegen_flags: <defaults>
</compile_context>

<pallas_src>
import numpy as np
import jax
import jax.numpy as jnp
from jax.experimental import pallas as pl
from jax.experimental.pallas import tpu as pltpu


# ---------------------------------------------------------------------------
# Kernel
# ---------------------------------------------------------------------------
def xas_structure_kernel(
    # SMEM scalars
    epss_ref, inv_n_ref,
    # whole-array VMEM residents
    h0_ref, maskT_ref,
    # edge-tile streamed arrays (w also indexed by the layer axis)
    srcdst_ref, dstT_ref, length_ref, w_ref,
    # per-layer fused GLU weights / folded edge scale / folded bias
    Wsrc_ref, Wdst_ref, eS_ref, bglu_ref,
    # output MLP (padded to 128 lanes)
    Wm_ref, bm_ref,
    # output
    out_ref,
    # VMEM scratch (persists across the whole grid)
    h_scr, agg_scr, p_scr,
):
    f32 = jnp.float32
    bf16 = jnp.bfloat16
    dot = lambda a, b: jnp.dot(a, b, preferred_element_type=f32)

    l = pl.program_id(0)            # GNN layer index
    t = pl.program_id(1)            # edge-tile index
    n_layers = pl.num_programs(0)
    n_tiles = pl.num_programs(1)
    H = h_scr.shape[1]

    # ---- seed the persistent node state once (node embedding computed host-side) --------
    @pl.when(jnp.logical_and(l == 0, t == 0))
    def _init_h():
        h_scr[...] = h0_ref[...]

    # ---- start of every layer: zero the aggregator and project h ONCE ------------------
    #   P = [h @ Wsrc[l] ; h @ Wdst[l]]  -> per-node work, gathered per-edge below
    @pl.when(t == 0)
    def _start_layer():
        agg_scr[...] = jnp.zeros_like(agg_scr)
        h_bf = h_scr[...].astype(bf16)
        p_src = dot(h_bf, Wsrc_ref[...])                     # (N, 2H) f32
        p_dst = dot(h_bf, Wdst_ref[...])                     # (N, 2H) f32
        p_scr[...] = jnp.concatenate([p_src, p_dst], axis=0).astype(bf16)

    # ---- per edge tile: gather projections through the packed incidence matrix ----------
    # gv = [src_oh | dst_oh] @ [P_src ; P_dst] + length * (We @ Wedg[l]) + folded bias
    gv = (dot(srcdst_ref[...], p_scr[...])                   # (TILE_E, 2H), K = 2N
          + length_ref[...] * eS_ref[...]                    # folded edge embedding (FMA)
          + bglu_ref[...])
    val = gv[:, :H]                                          # free views: H % 128 == 0
    gate = gv[:, H:]
    # sigmoid via EUP exp + approximate reciprocal (keeps the VPU slot free)
    msg = val * pl.reciprocal(1.0 + jnp.exp(-gate), approx=True)
    msg = (w_ref[...] * msg).astype(bf16)                    # w = length**exps[l] * edge_mask

    # scatter-add onto destination nodes
    agg_scr[...] = agg_scr[...] + dot(dstT_ref[...], msg)    # (N, H)

    # ---- end of layer: GIN-style node update --------------------------------------------
    @pl.when(t == n_tiles - 1)
    def _update_h():
        h_scr[...] = (1.0 + epss_ref[l]) * h_scr[...] + agg_scr[...]

    # ---- final step: masked graph readout -> MLP -> sigmoid -----------------------------
    @pl.when(jnp.logical_and(l == n_layers - 1, t == n_tiles - 1))
    def _readout():
        feat = dot(maskT_ref[...], h_scr[...]) * inv_n_ref[0]          # (1, H)
        out_ref[...] = jax.nn.sigmoid(dot(feat, Wm_ref[...]) + bm_ref[...])


# ---------------------------------------------------------------------------
# Wrapper
# ---------------------------------------------------------------------------
def derive_tile_e(n_edges, n_nodes, target_slab_bytes=512 * 1024):
    """Largest tile_e (multiple of 128, dividing n_edges) whose streamed per-step slab
    (packed incidence in bf16 + two f32 per-edge columns) stays under the target."""
    per_row = 2 * n_nodes * 2 + n_nodes * 2 + 2 * 4
    best = min(128, n_edges)
    t = 128
    while t <= n_edges:
        if n_edges % t == 0 and t * per_row <= target_slab_bytes:
            best = t
        t += 128
    return best


def xas_structure_forward(kernel_args, *, tile_e=None, xas_dim=100):
    (epss, inv_n, h0, maskT, srcdst_oh, dst_ohT, length, w,
     Wsrc, Wdst, eS, bglu_f, Wm_p, bm_p) = kernel_args

    n_layers = Wsrc.shape[0]
    n_edges, two_n = srcdst_oh.shape
    n_nodes = two_n // 2
    H = h0.shape[1]
    xas_pad = Wm_p.shape[1]

    if tile_e is None:
        tile_e = derive_tile_e(n_edges, n_nodes)
    assert n_edges % tile_e == 0, "edge count must be padded to a multiple of tile_e"
    n_tiles = n_edges // tile_e

    smem = pl.BlockSpec(memory_space=pltpu.MemorySpace.SMEM)
    vmem = pl.BlockSpec(memory_space=pltpu.MemorySpace.VMEM)

    edge_col = pl.BlockSpec((tile_e, 1), lambda l, t: (t, 0))
    edge_w = pl.BlockSpec((pl.Squeezed(), tile_e, 1), lambda l, t: (l, t, 0))
    edge_inc = pl.BlockSpec((tile_e, 2 * n_nodes), lambda l, t: (t, 0))
    edge_incT = pl.BlockSpec((n_nodes, tile_e), lambda l, t: (0, t))
    layer_w = pl.BlockSpec((pl.Squeezed(), H, 2 * H), lambda l, t: (l, 0, 0))
    layer_b = pl.BlockSpec((pl.Squeezed(), 1, 2 * H), lambda l, t: (l, 0, 0))

    in_specs = [
        smem, smem,                                     # epss, 1/num_nodes
        vmem, vmem,                                     # h0, maskT
        edge_inc, edge_incT, edge_col, edge_w,          # srcdst_oh, dst_ohT, length, w
        layer_w, layer_w, layer_b, layer_b,             # Wsrc, Wdst, eS, bglu
        vmem, vmem,                                     # output MLP
    ]
    out_spec = pl.BlockSpec((1, xas_pad), lambda l, t: (0, 0))

    # VMEM budget derived from the real footprint; capped so the kernel is safe on v7x's
    # 64 MiB physical VMEM.  (On v5e/v6e this cap could be raised to ~96 MiB and the
    # incidence matrices kept fully resident instead of re-streamed each layer.)
    bf16_b, f32_b = 2, 4
    slab = tile_e * (2 * n_nodes) * bf16_b + n_nodes * tile_e * bf16_b + 2 * tile_e * f32_b
    layer_bytes = 2 * H * (2 * H) * bf16_b + 2 * (2 * H) * f32_b
    resident = n_nodes * H * f32_b + n_nodes * f32_b + H * xas_pad * f32_b + xas_pad * f32_b
    scratch = 2 * n_nodes * H * f32_b + (2 * n_nodes) * (2 * H) * bf16_b
    est = 2 * (slab + layer_bytes) + resident + scratch       # streamed inputs double-buffered
    vmem_limit = int(min(max(4 * est, 16 << 20), 44 << 20))

    out = pl.pallas_call(
        xas_structure_kernel,
        out_shape=jax.ShapeDtypeStruct((1, xas_pad), jnp.float32),
        grid=(n_layers, n_tiles),
        in_specs=in_specs,
        out_specs=out_spec,
        scratch_shapes=[
            pltpu.VMEM((n_nodes, H), jnp.float32),               # node state h
            pltpu.VMEM((n_nodes, H), jnp.float32),               # per-layer aggregation acc
            pltpu.VMEM((2 * n_nodes, 2 * H), jnp.bfloat16),      # per-layer projections [P_src;P_dst]
        ],
        compiler_params=pltpu.CompilerParams(
            # both axes carry state through scratch -> sequential
            dimension_semantics=("arbitrary", "arbitrary"),
            vmem_limit_bytes=vmem_limit,
        ),
    )(*kernel_args)
    return out[:, :xas_dim]                                      # drop lane padding


# ---------------------------------------------------------------------------
# Host-side packing: fuse / fold / cast weights, build incidence matrices
# ---------------------------------------------------------------------------
def prepare_kernel_args(graph, raw_params, xas_pad):
    (atomic, coord, length, src_idx, dst_idx, abs_mask) = graph
    (Wa, ba, Wc, bc, Wn, bn, We, be, Wv, bv, Wg, bg, exps, epss, Wm, bm) = raw_params
    f32, bf16 = jnp.float32, jnp.bfloat16
    N = atomic.shape[0]
    H = Wn.shape[1]
    L = Wv.shape[0]

    # ---- node embedding hoisted out of the kernel (pure XLA, f32) ----
    atom_emb = atomic @ Wa + ba
    coord_emb = coord @ Wc + bc
    h0 = (jnp.concatenate([atom_emb, coord_emb], axis=-1) @ Wn + bn).astype(f32)   # (N, H)

    # dense incidence matrices (0/1 exact in bf16) packed [src | dst] for one K=2N gather matmul
    src_oh = jax.nn.one_hot(src_idx, N, dtype=bf16)                                 # (E, N)
    dst_oh = jax.nn.one_hot(dst_idx, N, dtype=bf16)                                 # (E, N)
    srcdst_oh = jnp.concatenate([src_oh, dst_oh], axis=1)                           # (E, 2N)
    dst_ohT = dst_oh.T                                                              # (N, E)

    # NOTE: if nodes are padded in real deployments, maskT MUST be zero at padded nodes and
    # inv_n MUST hold the true node count; padded edges must have length == 0 (masked below)
    # and valid (e.g. column 0) one-hot entries so the gather/scatter matmuls stay benign.
    maskT = abs_mask.reshape(1, N).astype(f32)

    # per-layer edge weights precomputed host-side: w[l] = length**exps[l] * edge_mask
    safe_len = jnp.where(length > 0, length, 1.0)
    edge_mask = (length > 0).astype(f32)
    w = (jnp.exp(jnp.log(safe_len)[None] * exps[:, None, None]) * edge_mask[None]).astype(f32)

    # fused GLU [value | gate] along the output dim; split 3H input into src/edge/dst blocks
    W_vg = jnp.concatenate([Wv, Wg], axis=-1)                  # (L, 3H, 2H)
    Wsrc = W_vg[:, :H, :].astype(bf16)
    Wedg = W_vg[:, H:2 * H, :]                                 # folded below, stays host-side
    Wdst = W_vg[:, 2 * H:, :].astype(bf16)
    # fold the layer-invariant edge embedding:  e @ Wedg[l] = length*(We@Wedg[l]) + be@Wedg[l]
    eS = jnp.einsum('bh,lhk->lbk', We, Wedg).astype(f32)       # (L, 1, 2H)
    bglu_f = (jnp.concatenate([bv, bg], axis=-1)
              + jnp.einsum('h,lhk->lk', be, Wedg)).reshape(L, 1, 2 * H).astype(f32)

    # pad the output head to a lane-dense slab (sliced back in the wrapper)
    Wm_p = jnp.zeros((H, xas_pad), f32).at[:, :Wm.shape[1]].set(Wm)
    bm_p = jnp.zeros((1, xas_pad), f32).at[:, :Wm.shape[1]].set(bm)

    inv_n = jnp.array([1.0 / N], f32)                          # true node count

    return (epss.astype(f32), inv_n,
            h0, maskT,
            srcdst_oh, dst_ohT, length.astype(f32), w,
            Wsrc, Wdst, eS, bglu_f,
            Wm_p, bm_p)


# ---------------------------------------------------------------------------
# Pure-JAX reference (f32, DGL-faithful scatter-add) for the correctness check
# ---------------------------------------------------------------------------
def reference_forward(graph, raw_params):
    (atomic, coord, length, src_idx, dst_idx, abs_mask) = graph
    (Wa, ba, Wc, bc, Wn, bn, We, be, Wv, bv, Wg, bg, exps, epss, Wm, bm) = raw_params
    n_nodes = atomic.shape[0]
    atom_emb = atomic @ Wa + ba
    coord_emb = coord @ Wc + bc
    h = jnp.concatenate([atom_emb, coord_emb], axis=-1) @ Wn + bn
    e = length @ We + be
    for l in range(Wv.shape[0]):
        x = jnp.concatenate([h[src_idx], e, h[dst_idx]], axis=-1)
        val = x @ Wv[l] + bv[l]
        gate = x @ Wg[l] + bg[l]
        msg = val * jax.nn.sigmoid(gate)
        msg = jnp.exp(jnp.log(length) * exps[l]) * msg
        agg = jnp.zeros_like(h).at[dst_idx].add(msg)
        h = (1.0 + epss[l]) * h + agg
    h = h * abs_mask
    feat = jnp.sum(h, axis=0, keepdims=True) / n_nodes
    return jax.nn.sigmoid(feat @ Wm + bm)


if __name__ == "__main__":
    # --- small shapes consistent with the module (H padded to a lane-dense 128) ---
    N_NODES, N_EDGES = 16, 512
    ATOMIC_DIM, COORD_DIM, BOND_DIM = 118, 3, 1
    H = 128                      # gnn_hidden_dims (scaled down from 256, lane-dense)
    GNN_LAYERS = 3               # nn.ModuleList has GNN_LAYERS - 1 = 2 RRGraphConv layers
    L = GNN_LAYERS - 1
    XAS_DIM, XAS_PAD = 100, 128  # xas_type='XANES', padded for unmasked vst

    key = jax.random.PRNGKey(0)
    keys = iter(jax.random.split(key, 32))
    nrm = lambda shape, s=0.05: jax.random.normal(next(keys), shape, jnp.float32) * s

    # --- graph data ---
    atomic_idx = jax.random.randint(next(keys), (N_NODES,), 0, ATOMIC_DIM)
    atomic = jax.nn.one_hot(atomic_idx, ATOMIC_DIM, dtype=jnp.float32)       # (N, 118)
    coord = jax.random.normal(next(keys), (N_NODES, COORD_DIM), jnp.float32)
    length = jax.random.uniform(next(keys), (N_EDGES, BOND_DIM), jnp.float32,
                                minval=0.8, maxval=1.6)                      # positive radii
    src_idx = jax.random.randint(next(keys), (N_EDGES,), 0, N_NODES)
    dst_idx = jax.random.randint(next(keys), (N_EDGES,), 0, N_NODES)
    abs_mask = (jax.random.uniform(next(keys), (N_NODES, 1)) > 0.5).astype(jnp.float32)
    abs_mask = abs_mask.at[0, 0].set(1.0)                                    # >=1 absorbing atom

    graph = (atomic, coord, length, src_idx, dst_idx, abs_mask)

    # --- deterministic parameters (torch-style: full matrices, per-layer stacks) ---
    raw_params = (
        nrm((ATOMIC_DIM, H)), nrm((H,)),          # atom_embedding
        nrm((COORD_DIM, H)), nrm((H,)),           # coord_embedding
        nrm((2 * H, H)), nrm((H,)),               # node_embedding (2H -> H)
        nrm((BOND_DIM, H)), nrm((H,)),            # edge_embedding
        nrm((L, 3 * H, H)), nrm((L, H)),          # GLU value linear (3H -> H)
        nrm((L, 3 * H, H)), nrm((L, H)),          # GLU gate  linear (3H -> H)
        jnp.full((L,), -2.0, jnp.float32),        # RRGraphConv.exp init
        jnp.zeros((L,), jnp.float32),             # RRGraphConv.eps init
        nrm((H, XAS_DIM)), nrm((XAS_DIM,)),       # MLP (H -> xas_types['XANES'])
    )

    kernel_args = prepare_kernel_args(graph, raw_params, XAS_PAD)
    ref = jax.block_until_ready(reference_forward(graph, raw_params))

    # auto-derived tile (single big tile here) + forced multi-tile run to exercise the
    # per-layer accumulator / update path across several edge tiles.
    out_auto = jax.block_until_ready(xas_structure_forward(kernel_args, xas_dim=XAS_DIM))
    out_tiled = jax.block_until_ready(
        xas_structure_forward(kernel_args, tile_e=128, xas_dim=XAS_DIM))

    for out in (out_auto, out_tiled):
        assert out.shape == (1, XAS_DIM) and out.dtype == jnp.float32
        np.testing.assert_allclose(np.asarray(out), np.asarray(ref), rtol=2e-2, atol=2e-2)

    print("KERNEL_OK")
</pallas_src>

<mosaic_0001>
module attributes {stable_mosaic.version = 11 : i64} {
  func.func @xas_structure_kernel(%arg0: i32, %arg1: i32, %arg2: memref<2xf32, #tpu.memory_space<smem>>, %arg3: memref<1xf32, #tpu.memory_space<smem>>, %arg4: memref<16x128xf32, #tpu.memory_space<vmem>>, %arg5: memref<1x16xf32, #tpu.memory_space<vmem>>, %arg6: memref<512x32xbf16, #tpu.memory_space<vmem>>, %arg7: memref<16x512xbf16, #tpu.memory_space<vmem>>, %arg8: memref<512x1xf32, #tpu.memory_space<vmem>>, %arg9: memref<1x512x1xf32, #tpu.memory_space<vmem>>, %arg10: memref<1x128x256xbf16, #tpu.memory_space<vmem>>, %arg11: memref<1x128x256xbf16, #tpu.memory_space<vmem>>, %arg12: memref<1x1x256xf32, #tpu.memory_space<vmem>>, %arg13: memref<1x1x256xf32, #tpu.memory_space<vmem>>, %arg14: memref<128x128xf32, #tpu.memory_space<vmem>>, %arg15: memref<1x128xf32, #tpu.memory_space<vmem>>, %arg16: memref<1x128xf32, #tpu.memory_space<vmem>>, %arg17: memref<16x128xf32, #tpu.memory_space<vmem>>, %arg18: memref<16x128xf32, #tpu.memory_space<vmem>>, %arg19: memref<32x256xbf16, #tpu.memory_space<vmem>>) attributes {dimension_semantics = [#tpu.dimension_semantics<arbitrary>, #tpu.dimension_semantics<arbitrary>], iteration_bounds = array<i64: 2, 1>, scalar_prefetch = 0 : i64, scratch_operands = 3 : i64, tpu.core_type = #tpu.core_type<tc>, window_params = [{transform_indices = @transform_0, window_bounds = array<i64: 2>}, {transform_indices = @transform_1, window_bounds = array<i64: 1>}, {pipeline_mode = #tpu.pipeline_mode<synchronous>, transform_indices = @transform_2, window_bounds = array<i64: 16, 128>}, {pipeline_mode = #tpu.pipeline_mode<synchronous>, transform_indices = @transform_3, window_bounds = array<i64: 1, 16>}, {transform_indices = @transform_4, window_bounds = array<i64: 512, 32>}, {transform_indices = @transform_5, window_bounds = array<i64: 16, 512>}, {transform_indices = @transform_6, window_bounds = array<i64: 512, 1>}, {transform_indices = @transform_7, window_bounds = array<i64: 1, 512, 1>}, {transform_indices = @transform_8, window_bounds = array<i64: 1, 128, 256>}, {transform_indices = @transform_9, window_bounds = array<i64: 1, 128, 256>}, {transform_indices = @transform_10, window_bounds = array<i64: 1, 1, 256>}, {transform_indices = @transform_11, window_bounds = array<i64: 1, 1, 256>}, {pipeline_mode = #tpu.pipeline_mode<synchronous>, transform_indices = @transform_12, window_bounds = array<i64: 128, 128>}, {pipeline_mode = #tpu.pipeline_mode<synchronous>, transform_indices = @transform_13, window_bounds = array<i64: 1, 128>}, {pipeline_mode = #tpu.pipeline_mode<synchronous>, transform_indices = @transform_14, window_bounds = array<i64: 1, 128>}]} {
    %c0_i32 = arith.constant 0 : i32
    %0 = arith.cmpi eq, %arg0, %c0_i32 : i32
    %c0_i32_0 = arith.constant 0 : i32
    %1 = arith.cmpi eq, %arg1, %c0_i32_0 : i32
    %2 = arith.andi %0, %1 : i1
    %3 = arith.extui %2 : i1 to i32
    %c0_i32_1 = arith.constant 0 : i32
    %4 = arith.cmpi ne, %3, %c0_i32_1 : i32
    scf.if %4 {
      %c0_31 = arith.constant 0 : index
      %c0_32 = arith.constant 0 : index
      %49 = vector.load %arg4[%c0_31, %c0_32] : memref<16x128xf32, #tpu.memory_space<vmem>>, vector<16x128xf32>
      %c0_33 = arith.constant 0 : index
      %c0_34 = arith.constant 0 : index
      %50 = vector.load %arg17[%c0_33, %c0_34] : memref<16x128xf32, #tpu.memory_space<vmem>>, vector<16x128xf32>
      tpu.vector_store %arg17[%c0_33, %c0_34], %49 {strides = array<i32>} : memref<16x128xf32, #tpu.memory_space<vmem>>, vector<16x128xf32>,
    } else {
    }
    %c0_i32_2 = arith.constant 0 : i32
    %5 = arith.cmpi eq, %arg1, %c0_i32_2 : i32
    %6 = arith.extui %5 : i1 to i32
    %c0_i32_3 = arith.constant 0 : i32
    %7 = arith.cmpi ne, %6, %c0_i32_3 : i32
    scf.if %7 {
      %cst_31 = arith.constant 0.000000e+00 : f32
      %49 = vector.broadcast %cst_31 : f32 to vector<16x128xf32>
      %c0_32 = arith.constant 0 : index
      %c0_33 = arith.constant 0 : index
      %50 = vector.load %arg18[%c0_32, %c0_33] : memref<16x128xf32, #tpu.memory_space<vmem>>, vector<16x128xf32>
      tpu.vector_store %arg18[%c0_32, %c0_33], %49 {strides = array<i32>} : memref<16x128xf32, #tpu.memory_space<vmem>>, vector<16x128xf32>,
      %c0_34 = arith.constant 0 : index
      %c0_35 = arith.constant 0 : index
      %51 = vector.load %arg17[%c0_34, %c0_35] : memref<16x128xf32, #tpu.memory_space<vmem>>, vector<16x128xf32>
      %52 = arith.truncf %51 : vector<16x128xf32> to vector<16x128xbf16>
      %c0_36 = arith.constant 0 : index
      %c0_37 = arith.constant 0 : index
      %c0_38 = arith.constant 0 : index
      %53 = vector.load %arg10[%c0_36, %c0_37, %c0_38] : memref<1x128x256xbf16, #tpu.memory_space<vmem>>, vector<1x128x256xbf16>
      %54 = vector.shape_cast %53 : vector<1x128x256xbf16> to vector<128x256xbf16>
      %cst_39 = arith.constant dense<0.000000e+00> : vector<16x256xf32>
      %55 = tpu.matmul %52, %54, %cst_39 {dimension_numbers = #tpu.dot_dimension_numbers<[1], [0], [0], [1], [0, 0, 1, 1], [], []>} : vector<16x128xbf16>, vector<128x256xbf16>, vector<16x256xf32> -> vector<16x256xf32>
      %c0_40 = arith.constant 0 : index
      %c0_41 = arith.constant 0 : index
      %c0_42 = arith.constant 0 : index
      %56 = vector.load %arg11[%c0_40, %c0_41, %c0_42] : memref<1x128x256xbf16, #tpu.memory_space<vmem>>, vector<1x128x256xbf16>
      %57 = vector.shape_cast %56 : vector<1x128x256xbf16> to vector<128x256xbf16>
      %cst_43 = arith.constant dense<0.000000e+00> : vector<16x256xf32>
      %58 = tpu.matmul %52, %57, %cst_43 {dimension_numbers = #tpu.dot_dimension_numbers<[1], [0], [0], [1], [0, 0, 1, 1], [], []>} : vector<16x128xbf16>, vector<128x256xbf16>, vector<16x256xf32> -> vector<16x256xf32>
      %59 = tpu.concatenate %55, %58 in 0 : vector<16x256xf32>, vector<16x256xf32> -> vector<32x256xf32>
      %60 = arith.truncf %59 : vector<32x256xf32> to vector<32x256xbf16>
      %c0_44 = arith.constant 0 : index
      %c0_45 = arith.constant 0 : index
      %61 = vector.load %arg19[%c0_44, %c0_45] : memref<32x256xbf16, #tpu.memory_space<vmem>>, vector<32x256xbf16>
      tpu.vector_store %arg19[%c0_44, %c0_45], %60 {strides = array<i32>} : memref<32x256xbf16, #tpu.memory_space<vmem>>, vector<32x256xbf16>,
    } else {
    }
    %c0 = arith.constant 0 : index
    %c0_4 = arith.constant 0 : index
    %8 = vector.load %arg6[%c0, %c0_4] : memref<512x32xbf16, #tpu.memory_space<vmem>>, vector<512x32xbf16>
    %c0_5 = arith.constant 0 : index
    %c0_6 = arith.constant 0 : index
    %9 = vector.load %arg19[%c0_5, %c0_6] : memref<32x256xbf16, #tpu.memory_space<vmem>>, vector<32x256xbf16>
    %cst = arith.constant dense<0.000000e+00> : vector<512x256xf32>
    %10 = tpu.matmul %8, %9, %cst {dimension_numbers = #tpu.dot_dimension_numbers<[1], [0], [0], [1], [0, 0, 1, 1], [], []>} : vector<512x32xbf16>, vector<32x256xbf16>, vector<512x256xf32> -> vector<512x256xf32>
    %c0_7 = arith.constant 0 : index
    %c0_8 = arith.constant 0 : index
    %11 = vector.load %arg8[%c0_7, %c0_8] : memref<512x1xf32, #tpu.memory_space<vmem>>, vector<512x1xf32>
    %c0_9 = arith.constant 0 : index
    %c0_10 = arith.constant 0 : index
    %c0_11 = arith.constant 0 : index
    %12 = vector.load %arg12[%c0_9, %c0_10, %c0_11] : memref<1x1x256xf32, #tpu.memory_space<vmem>>, vector<1x1x256xf32>
    %13 = vector.shape_cast %12 : vector<1x1x256xf32> to vector<1x256xf32>
    %14 = vector.broadcast %11 : vector<512x1xf32> to vector<512x256xf32>
    %15 = vector.broadcast %13 : vector<1x256xf32> to vector<512x256xf32>
    %16 = arith.mulf %14, %15 : vector<512x256xf32>
    %17 = arith.addf %10, %16 : vector<512x256xf32>
    %c0_12 = arith.constant 0 : index
    %c0_13 = arith.constant 0 : index
    %c0_14 = arith.constant 0 : index
    %18 = vector.load %arg13[%c0_12, %c0_13, %c0_14] : memref<1x1x256xf32, #tpu.memory_space<vmem>>, vector<1x1x256xf32>
    %19 = vector.shape_cast %18 : vector<1x1x256xf32> to vector<1x256xf32>
    %20 = vector.broadcast %19 : vector<1x256xf32> to vector<512x256xf32>
    %21 = arith.addf %17, %20 : vector<512x256xf32>
    %22 = vector.extract_strided_slice %21 {offsets = [0, 0], sizes = [512, 128], strides = [1, 1]} : vector<512x256xf32> to vector<512x128xf32>
    %23 = vector.extract_strided_slice %21 {offsets = [0, 128], sizes = [512, 128], strides = [1, 1]} : vector<512x256xf32> to vector<512x128xf32>
    %cst_15 = arith.constant 0.000000e+00 : f32
    %24 = vector.broadcast %cst_15 : f32 to vector<512x128xf32>
    %25 = arith.subf %24, %23 : vector<512x128xf32>
    %26 = math.exp %25 : vector<512x128xf32>
    %cst_16 = arith.constant 1.000000e+00 : f32
    %27 = vector.broadcast %cst_16 : f32 to vector<512x128xf32>
    %28 = arith.addf %27, %26 : vector<512x128xf32>
    %29 = tpu.reciprocal %28 {approx = true} : vector<512x128xf32> -> vector<512x128xf32>
    %30 = arith.mulf %22, %29 : vector<512x128xf32>
    %c0_17 = arith.constant 0 : index
    %c0_18 = arith.constant 0 : index
    %c0_19 = arith.constant 0 : index
    %31 = vector.load %arg9[%c0_17, %c0_18, %c0_19] : memref<1x512x1xf32, #tpu.memory_space<vmem>>, vector<1x512x1xf32>
    %32 = vector.shape_cast %31 : vector<1x512x1xf32> to vector<512x1xf32>
    %33 = vector.broadcast %32 : vector<512x1xf32> to vector<512x128xf32>
    %34 = arith.mulf %33, %30 : vector<512x128xf32>
    %35 = arith.truncf %34 : vector<512x128xf32> to vector<512x128xbf16>
    %c0_20 = arith.constant 0 : index
    %c0_21 = arith.constant 0 : index
    %36 = vector.load %arg18[%c0_20, %c0_21] : memref<16x128xf32, #tpu.memory_space<vmem>>, vector<16x128xf32>
    %c0_22 = arith.constant 0 : index
    %c0_23 = arith.constant 0 : index
    %37 = vector.load %arg7[%c0_22, %c0_23] : memref<16x512xbf16, #tpu.memory_space<vmem>>, vector<16x512xbf16>
    %cst_24 = arith.constant dense<0.000000e+00> : vector<16x128xf32>
    %38 = tpu.matmul %37, %35, %cst_24 {dimension_numbers = #tpu.dot_dimension_numbers<[1], [0], [0], [1], [0, 0, 1, 1], [], []>} : vector<16x512xbf16>, vector<512x128xbf16>, vector<16x128xf32> -> vector<16x128xf32>
    %39 = arith.addf %36, %38 : vector<16x128xf32>
    %c0_25 = arith.constant 0 : index
    %c0_26 = arith.constant 0 : index
    %40 = vector.load %arg18[%c0_25, %c0_26] : memref<16x128xf32, #tpu.memory_space<vmem>>, vector<16x128xf32>
    tpu.vector_store %arg18[%c0_25, %c0_26], %39 {strides = array<i32>} : memref<16x128xf32, #tpu.memory_space<vmem>>, vector<16x128xf32>,
    %c0_i32_27 = arith.constant 0 : i32
    %41 = arith.cmpi eq, %arg1, %c0_i32_27 : i32
    %42 = arith.extui %41 : i1 to i32
    %c0_i32_28 = arith.constant 0 : i32
    %43 = arith.cmpi ne, %42, %c0_i32_28 : i32
    scf.if %43 {
      %49 = arith.index_cast %arg0 : i32 to index
      %50 = memref.load %arg2[%49] : memref<2xf32, #tpu.memory_space<smem>>
      %cst_31 = arith.constant 1.000000e+00 : f32
      %51 = arith.addf %cst_31, %50 : f32
      %c0_32 = arith.constant 0 : index
      %c0_33 = arith.constant 0 : index
      %52 = vector.load %arg17[%c0_32, %c0_33] : memref<16x128xf32, #tpu.memory_space<vmem>>, vector<16x128xf32>
      %53 = vector.broadcast %51 : f32 to vector<16x128xf32>
      %54 = arith.mulf %53, %52 : vector<16x128xf32>
      %c0_34 = arith.constant 0 : index
      %c0_35 = arith.constant 0 : index
      %55 = vector.load %arg18[%c0_34, %c0_35] : memref<16x128xf32, #tpu.memory_space<vmem>>, vector<16x128xf32>
      %56 = arith.addf %54, %55 : vector<16x128xf32>
      %c0_36 = arith.constant 0 : index
      %c0_37 = arith.constant 0 : index
      %57 = vector.load %arg17[%c0_36, %c0_37] : memref<16x128xf32, #tpu.memory_space<vmem>>, vector<16x128xf32>
      tpu.vector_store %arg17[%c0_36, %c0_37], %56 {strides = array<i32>} : memref<16x128xf32, #tpu.memory_space<vmem>>, vector<16x128xf32>,
    } else {
    }
    %c1_i32 = arith.constant 1 : i32
    %44 = arith.cmpi eq, %arg0, %c1_i32 : i32
    %c0_i32_29 = arith.constant 0 : i32
    %45 = arith.cmpi eq, %arg1, %c0_i32_29 : i32
    %46 = arith.andi %44, %45 : i1
    %47 = arith.extui %46 : i1 to i32
    %c0_i32_30 = arith.constant 0 : i32
    %48 = arith.cmpi ne, %47, %c0_i32_30 : i32
    scf.if %48 {
      %c0_31 = arith.constant 0 : index
      %c0_32 = arith.constant 0 : index
      %49 = vector.load %arg5[%c0_31, %c0_32] : memref<1x16xf32, #tpu.memory_space<vmem>>, vector<1x16xf32>
      %c0_33 = arith.constant 0 : index
      %c0_34 = arith.constant 0 : index
      %50 = vector.load %arg17[%c0_33, %c0_34] : memref<16x128xf32, #tpu.memory_space<vmem>>, vector<16x128xf32>
      %cst_35 = arith.constant dense<0.000000e+00> : vector<1x128xf32>
      %51 = tpu.matmul %49, %50, %cst_35 {dimension_numbers = #tpu.dot_dimension_numbers<[1], [0], [0], [1], [0, 0, 1, 1], [], []>} : vector<1x16xf32>, vector<16x128xf32>, vector<1x128xf32> -> vector<1x128xf32>
      %c0_36 = arith.constant 0 : index
      %52 = memref.load %arg3[%c0_36] : memref<1xf32, #tpu.memory_space<smem>>
      %53 = vector.broadcast %52 : f32 to vector<1x128xf32>
      %54 = arith.mulf %51, %53 : vector<1x128xf32>
      %c0_37 = arith.constant 0 : index
      %c0_38 = arith.constant 0 : index
      %55 = vector.load %arg14[%c0_37, %c0_38] : memref<128x128xf32, #tpu.memory_space<vmem>>, vector<128x128xf32>
      %cst_39 = arith.constant dense<0.000000e+00> : vector<1x128xf32>
      %56 = tpu.matmul %54, %55, %cst_39 {dimension_numbers = #tpu.dot_dimension_numbers<[1], [0], [0], [1], [0, 0, 1, 1], [], []>} : vector<1x128xf32>, vector<128x128xf32>, vector<1x128xf32> -> vector<1x128xf32>
      %c0_40 = arith.constant 0 : index
      %c0_41 = arith.constant 0 : index
      %57 = vector.load %arg15[%c0_40, %c0_41] : memref<1x128xf32, #tpu.memory_space<vmem>>, vector<1x128xf32>
      %58 = arith.addf %56, %57 : vector<1x128xf32>
      %59 = arith.negf %58 : vector<1x128xf32>
      %60 = math.exp %59 : vector<1x128xf32>
      %cst_42 = arith.constant 1.000000e+00 : f32
      %61 = vector.broadcast %cst_42 : f32 to vector<1x128xf32>
      %62 = arith.addf %61, %60 : vector<1x128xf32>
      %63 = arith.divf %61, %62 : vector<1x128xf32>
      %c0_43 = arith.constant 0 : index
      %c0_44 = arith.constant 0 : index
      %64 = vector.load %arg16[%c0_43, %c0_44] : memref<1x128xf32, #tpu.memory_space<vmem>>, vector<1x128xf32>
      tpu.vector_store %arg16[%c0_43, %c0_44], %63 {strides = array<i32>} : memref<1x128xf32, #tpu.memory_space<vmem>>, vector<1x128xf32>,
    } else {
    }
    return
  }
  func.func @transform_0(%arg0: i32, %arg1: i32) -> i32 {
    %c0_i32 = arith.constant 0 : i32
    %c0_i32_0 = arith.constant 0 : i32
    return %c0_i32 : i32
  }
  func.func @transform_1(%arg0: i32, %arg1: i32) -> i32 {
    %c0_i32 = arith.constant 0 : i32
    %c0_i32_0 = arith.constant 0 : i32
    return %c0_i32 : i32
  }
  func.func @transform_2(%arg0: i32, %arg1: i32) -> (i32, i32) {
    %c0_i32 = arith.constant 0 : i32
    %c0_i32_0 = arith.constant 0 : i32
    %c0_i32_1 = arith.constant 0 : i32
    return %c0_i32, %c0_i32_0 : i32, i32
  }
  func.func @transform_3(%arg0: i32, %arg1: i32) -> (i32, i32) {
    %c0_i32 = arith.constant 0 : i32
    %c0_i32_0 = arith.constant 0 : i32
    %c0_i32_1 = arith.constant 0 : i32
    return %c0_i32, %c0_i32_0 : i32, i32
  }
  func.func @transform_4(%arg0: i32, %arg1: i32) -> (i32, i32) {
    %c0_i32 = arith.constant 0 : i32
    %c0_i32_0 = arith.constant 0 : i32
    return %arg1, %c0_i32 : i32, i32
  }
  func.func @transform_5(%arg0: i32, %arg1: i32) -> (i32, i32) {
    %c0_i32 = arith.constant 0 : i32
    %c0_i32_0 = arith.constant 0 : i32
    return %c0_i32, %arg1 : i32, i32
  }
  func.func @transform_6(%arg0: i32, %arg1: i32) -> (i32, i32) {
    %c0_i32 = arith.constant 0 : i32
    %c0_i32_0 = arith.constant 0 : i32
    return %arg1, %c0_i32 : i32, i32
  }
  func.func @transform_7(%arg0: i32, %arg1: i32) -> (i32, i32, i32) {
    %c0_i32 = arith.constant 0 : i32
    %c0_i32_0 = arith.constant 0 : i32
    return %arg0, %arg1, %c0_i32 : i32, i32, i32
  }
  func.func @transform_8(%arg0: i32, %arg1: i32) -> (i32, i32, i32) {
    %c0_i32 = arith.constant 0 : i32
    %c0_i32_0 = arith.constant 0 : i32
    %c0_i32_1 = arith.constant 0 : i32
    return %arg0, %c0_i32, %c0_i32_0 : i32, i32, i32
  }
  func.func @transform_9(%arg0: i32, %arg1: i32) -> (i32, i32, i32) {
    %c0_i32 = arith.constant 0 : i32
    %c0_i32_0 = arith.constant 0 : i32
    %c0_i32_1 = arith.constant 0 : i32
    return %arg0, %c0_i32, %c0_i32_0 : i32, i32, i32
  }
  func.func @transform_10(%arg0: i32, %arg1: i32) -> (i32, i32, i32) {
    %c0_i32 = arith.constant 0 : i32
    %c0_i32_0 = arith.constant 0 : i32
    %c0_i32_1 = arith.constant 0 : i32
    return %arg0, %c0_i32, %c0_i32_0 : i32, i32, i32
  }
  func.func @transform_11(%arg0: i32, %arg1: i32) -> (i32, i32, i32) {
    %c0_i32 = arith.constant 0 : i32
    %c0_i32_0 = arith.constant 0 : i32
    %c0_i32_1 = arith.constant 0 : i32
    return %arg0, %c0_i32, %c0_i32_0 : i32, i32, i32
  }
  func.func @transform_12(%arg0: i32, %arg1: i32) -> (i32, i32) {
    %c0_i32 = arith.constant 0 : i32
    %c0_i32_0 = arith.constant 0 : i32
    %c0_i32_1 = arith.constant 0 : i32
    return %c0_i32, %c0_i32_0 : i32, i32
  }
  func.func @transform_13(%arg0: i32, %arg1: i32) -> (i32, i32) {
    %c0_i32 = arith.constant 0 : i32
    %c0_i32_0 = arith.constant 0 : i32
    %c0_i32_1 = arith.constant 0 : i32
    return %c0_i32, %c0_i32_0 : i32, i32
  }
  func.func @transform_14(%arg0: i32, %arg1: i32) -> (i32, i32) {
    %c0_i32 = arith.constant 0 : i32
    %c0_i32_0 = arith.constant 0 : i32
    %c0_i32_1 = arith.constant 0 : i32
    return %c0_i32, %c0_i32_0 : i32, i32
  }
}

</mosaic_0001>

<llo_original>
// kernel: tpu_custom_call.1
$region0: #{tpu_custom_call.1}
  #allocation0 [shape = 'u32[]', space=smem, size = 0x4, offset = 0x4, fixed_abs, tag = 'smem constant byte address 0x4 - core index']
  #allocation1 [shape = 'u32[144,128]{1,0:T(1,128)}', space=vmem, size = 0x12000, scoped, tag = 'internal scratch']
  #allocation2 [shape = 'f32[16,128]{1,0:T(8,128)}', space=vmem, size = 0x2000, scoped, tag = 'scratch operand']
  #allocation3 [shape = 'f32[16,128]{1,0:T(8,128)}', space=vmem, size = 0x2000, scoped, tag = 'scratch operand']
  #allocation4 [shape = 'bf16[32,256]{1,0:T(16,128)(2,1)}', space=vmem, size = 0x4000, scoped, tag = 'scratch operand']
  #allocation5 [shape = 'f32[1]{0:T(128)S(6)}', space=smem, size = 0x200, scoped, tag = 'scoped memory for tpu_custom_call.1']
  %s0 = inlined_call_operand.vmem [shape: f32[2], index: 0, kind: input, shape index: {}]
  %s1 = inlined_call_operand.<no memory space> [shape: f32[1], index: 1, kind: input, shape index: {}]
  %s2 = inlined_call_operand.vmem [shape: f32[16,128], index: 2, kind: input, shape index: {}]
  %s3 = inlined_call_operand.vmem [shape: f32[1,16], index: 3, kind: input, shape index: {}]
  %s4 = inlined_call_operand.vmem [shape: bf16[512,32], index: 4, kind: input, shape index: {}]
  %s5 = inlined_call_operand.vmem [shape: bf16[16,512], index: 5, kind: input, shape index: {}]
  %s6 = inlined_call_operand.vmem [shape: f32[512,1], index: 6, kind: input, shape index: {}]
  %s7 = inlined_call_operand.vmem [shape: f32[2,512,1], index: 7, kind: input, shape index: {}]
  %s8 = inlined_call_operand.vmem [shape: bf16[2,128,256], index: 8, kind: input, shape index: {}]
  %s9 = inlined_call_operand.vmem [shape: bf16[2,128,256], index: 9, kind: input, shape index: {}]
  %s10 = inlined_call_operand.vmem [shape: f32[2,1,256], index: 10, kind: input, shape index: {}]
  %s11 = inlined_call_operand.vmem [shape: f32[2,1,256], index: 11, kind: input, shape index: {}]
  %s12 = inlined_call_operand.vmem [shape: f32[128,128], index: 12, kind: input, shape index: {}]
  %s13 = inlined_call_operand.vmem [shape: f32[1,128], index: 13, kind: input, shape index: {}]
  %s14 = inlined_call_operand.hbm [shape: f32[1,128], index: 14, kind: output, shape index: {}]
  %s15 = sld [smem:[#allocation0]]
  $region109: #{tpu_custom_call.1} parent=0
    _
  %s17 = ssub.s32 1, %s15
  %s18 = scalar_select 0, %s17, %s15
  %19 = sst [smem:[#allocation5]] %s1
  $region1: #{tpu_custom_call.1} parent=0
    #allocation6 [shape = 'u8[512]{0}', space=smem, size = 0x200, scoped, tag = 'input window, operand 0, single buffered']
    #allocation7 [shape = 's32[2]{0}', space=sflag, size = 0x8, scoped, tag = 'scoped memory for tpu_custom_call.1']
    #allocation8 [shape = 's32[2]{0}', space=sflag, size = 0x8, scoped, tag = 'scoped memory for tpu_custom_call.1']
    #allocation9 [shape = 'u8[512]{0}', space=vmem, size = 0x400, scoped, tag = 'output window, operand 0, single buffered']
    %20 = vsyncpa [#allocation8], 0
    %21 = vsyncpa [#allocation7], 0
    loop: start=0, step=1, limit=4
    $region2: #{tpu_custom_call.1} parent=1 // loop_pre_header
      _
    $region3: #{tpu_custom_call.1} parent=1 // loop_header
      %s23 = sphi 0, %s27
      %p24 = scmp.ge.s32.totalorder %s23, 4
      %s30 = sphi 0, %s42
      %s31 = sphi 0, %s38
      %s32 = sphi 0, %s30
      %s33 = sphi 0, %s31
      %s34 = sphi 0, %s32
      %s35 = sphi 0, %s33
      %s43 = sphi 0, %s43
      %s45 = sphi 0, %s43
      %s46 = sphi 0, %s45
      %s60 = sphi 0, %s46
      %s64 = sphi 0, %s64
      %s66 = sphi 0, %s64
      %s67 = sphi 0, %s66
      %s81 = sphi 0, %s67
      %s85 = sphi 0, %s85
      %s87 = sphi 0, %s85
      %s88 = sphi 0, %s87
      %s102 = sphi 0, %s88
      %s106 = sphi 0, %s106
      %s108 = sphi 0, %s106
      %s109 = sphi 0, %s108
      %s123 = sphi 0, %s109
      %s129 = sphi 0, %s131
      %s132 = sphi 0, %s129
      %s133 = sphi 0, %s132
      %s149 = sphi 0, %s133
      %s155 = sphi 0, %s157
      %s158 = sphi 0, %s155
      %s159 = sphi 0, %s158
      %s175 = sphi 0, %s159
      %s181 = sphi 0, %s183
      %s184 = sphi 0, %s181
      %s185 = sphi 0, %s184
      %s201 = sphi 0, %s185
      %s209 = sphi 0, %s211
      %s212 = sphi 0, %s209
      %s213 = sphi 0, %s212
      %s229 = sphi 0, %s213
      %s235 = sphi 0, %s237
      %s238 = sphi 0, %s235
      %s239 = sphi 0, %s238
      %s255 = sphi 0, %s239
      %s261 = sphi 0, %s263
      %s264 = sphi 0, %s261
      %s265 = sphi 0, %s264
      %s281 = sphi 0, %s265
      %s287 = sphi 0, %s289
      %s290 = sphi 0, %s287
      %s291 = sphi 0, %s290
      %s307 = sphi 0, %s291
      %s313 = sphi 0, %s315
      %s316 = sphi 0, %s313
      %s317 = sphi 0, %s316
      %s333 = sphi 0, %s317
      %s337 = sphi 0, %s337
      %s339 = sphi 0, %s337
      %s340 = sphi 0, %s339
      %s354 = sphi 0, %s340
      %s358 = sphi 0, %s358
      %s360 = sphi 0, %s358
      %s361 = sphi 0, %s360
      %s375 = sphi 0, %s361
      %s379 = sphi 0, %s379
      %s381 = sphi 0, %s379
      %s382 = sphi 0, %s381
      %s396 = sphi 0, %s382
    $region4: #{tpu_custom_call.1} parent=1 // loop_header_branch
      %26 = sbr.rel (%p24) target = $region8
    $region5: #{tpu_custom_call.1} parent=1 // loop_body
      %s28 = ssub.s32 %s23, 1
      %s29 = ssub.s32 %s23, 2
      %s36 = sadd.s32 1, %s31
      %p37 = scmp.ge.s32.totalorder %s36, 1
      %s38 = scalar_select %p37, 0, %s36
      %s39 = sadd.s32 1, %s30
      %s40 = scalar_select %p37, %s39, %s30
      %p41 = scmp.ge.s32.totalorder %s40, 2
      %s42 = scalar_select %p41, 0, %s40
      %s44 = sadd.s32 %s43, 1
      %p47 = scmp.eq.s32.totalorder %s23, 1
      %p48 = scmp.ne.s32.totalorder %s43, %s45
      %p49 = scmp.eq.s32.totalorder %s23, 0
      %p50 = por %p48, %p49
      %p51 = scmp.ne.s32.totalorder %s43, %s45
      %p52 = scmp.eq.s32.totalorder %s28, 1
      %p53 = por %p51, %p52
      %p54 = scmp.ne.s32.totalorder %s45, %s46
      %p55 = scmp.eq.s32.totalorder %s28, 0
      %p56 = por %p54, %p55
      %p57 = scmp.ne.s32.totalorder %s45, %s46
      %p58 = scmp.eq.s32.totalorder %s29, 1
      %p59 = por %p57, %p58
      %p61 = scmp.ne.s32.totalorder %s46, %s60
      %p62 = scmp.eq.s32.totalorder %s29, 0
      %p63 = por %p61, %p62
      %s65 = sadd.s32 %s64, 1
      %p68 = scmp.eq.s32.totalorder %s23, 1
      %p69 = scmp.ne.s32.totalorder %s64, %s66
      %p70 = scmp.eq.s32.totalorder %s23, 0
      %p71 = por %p69, %p70
      %p72 = scmp.ne.s32.totalorder %s64, %s66
      %p73 = scmp.eq.s32.totalorder %s28, 1
      %p74 = por %p72, %p73
      %p75 = scmp.ne.s32.totalorder %s66, %s67
      %p76 = scmp.eq.s32.totalorder %s28, 0
      %p77 = por %p75, %p76
      %p78 = scmp.ne.s32.totalorder %s66, %s67
      %p79 = scmp.eq.s32.totalorder %s29, 1
      %p80 = por %p78, %p79
      %p82 = scmp.ne.s32.totalorder %s67, %s81
      %p83 = scmp.eq.s32.totalorder %s29, 0
      %p84 = por %p82, %p83
      %s86 = sadd.s32 %s85, 1
      %p89 = scmp.eq.s32.totalorder %s23, 1
      %p90 = scmp.ne.s32.totalorder %s85, %s87
      %p91 = scmp.eq.s32.totalorder %s23, 0
      %p92 = por %p90, %p91
      %p93 = scmp.ne.s32.totalorder %s85, %s87
      %p94 = scmp.eq.s32.totalorder %s28, 1
      %p95 = por %p93, %p94
      %p96 = scmp.ne.s32.totalorder %s87, %s88
      %p97 = scmp.eq.s32.totalorder %s28, 0
      %p98 = por %p96, %p97
      %p99 = scmp.ne.s32.totalorder %s87, %s88
      %p100 = scmp.eq.s32.totalorder %s29, 1
      %p101 = por %p99, %p100
      %p103 = scmp.ne.s32.totalorder %s88, %s102
      %p104 = scmp.eq.s32.totalorder %s29, 0
      %p105 = por %p103, %p104
      %s107 = sadd.s32 %s106, 1
      %p110 = scmp.eq.s32.totalorder %s23, 1
      %p111 = scmp.ne.s32.totalorder %s106, %s108
      %p112 = scmp.eq.s32.totalorder %s23, 0
      %p113 = por %p111, %p112
      %p114 = scmp.ne.s32.totalorder %s106, %s108
      %p115 = scmp.eq.s32.totalorder %s28, 1
      %p116 = por %p114, %p115
      %p117 = scmp.ne.s32.totalorder %s108, %s109
      %p118 = scmp.eq.s32.totalorder %s28, 0
      %p119 = por %p117, %p118
      %p120 = scmp.ne.s32.totalorder %s108, %s109
      %p121 = scmp.eq.s32.totalorder %s29, 1
      %p122 = por %p120, %p121
      %p124 = scmp.ne.s32.totalorder %s109, %s123
      %p125 = scmp.eq.s32.totalorder %s29, 0
      %p126 = por %p124, %p125
      %s127 = ssub.s32 %s31, %s38
      %p128 = scmp.eq.s32.totalorder %s127, 0
      %s130 = sadd.s32 %s129, 1
      %s131 = scalar_select %p128, %s129, %s130
      %p134 = pneg %p128
      %p135 = scmp.eq.s32.totalorder %s23, 1
      %p136 = por %p134, %p135
      %p137 = scmp.ne.s32.totalorder %s129, %s132
      %p138 = scmp.eq.s32.totalorder %s23, 0
      %p139 = por %p137, %p138
      %p140 = scmp.ne.s32.totalorder %s129, %s132
      %p141 = scmp.eq.s32.totalorder %s28, 1
      %p142 = por %p140, %p141
      %p143 = scmp.ne.s32.totalorder %s132, %s133
      %p144 = scmp.eq.s32.totalorder %s28, 0
      %p145 = por %p143, %p144
      %p146 = scmp.ne.s32.totalorder %s132, %s133
      %p147 = scmp.eq.s32.totalorder %s29, 1
      %p148 = por %p146, %p147
      %p150 = scmp.ne.s32.totalorder %s133, %s149
      %p151 = scmp.eq.s32.totalorder %s29, 0
      %p152 = por %p150, %p151
      %s153 = ssub.s32 %s31, %s38
      %p154 = scmp.eq.s32.totalorder %s153, 0
      %s156 = sadd.s32 %s155, 1
      %s157 = scalar_select %p154, %s155, %s156
      %p160 = pneg %p154
      %p161 = scmp.eq.s32.totalorder %s23, 1
      %p162 = por %p160, %p161
      %p163 = scmp.ne.s32.totalorder %s155, %s158
      %p164 = scmp.eq.s32.totalorder %s23, 0
      %p165 = por %p163, %p164
      %p166 = scmp.ne.s32.totalorder %s155, %s158
      %p167 = scmp.eq.s32.totalorder %s28, 1
      %p168 = por %p166, %p167
      %p169 = scmp.ne.s32.totalorder %s158, %s159
      %p170 = scmp.eq.s32.totalorder %s28, 0
      %p171 = por %p169, %p170
      %p172 = scmp.ne.s32.totalorder %s158, %s159
      %p173 = scmp.eq.s32.totalorder %s29, 1
      %p174 = por %p172, %p173
      %p176 = scmp.ne.s32.totalorder %s159, %s175
      %p177 = scmp.eq.s32.totalorder %s29, 0
      %p178 = por %p176, %p177
      %s179 = ssub.s32 %s31, %s38
      %p180 = scmp.eq.s32.totalorder %s179, 0
      %s182 = sadd.s32 %s181, 1
      %s183 = scalar_select %p180, %s181, %s182
      %p186 = pneg %p180
      %p187 = scmp.eq.s32.totalorder %s23, 1
      %p188 = por %p186, %p187
      %p189 = scmp.ne.s32.totalorder %s181, %s184
      %p190 = scmp.eq.s32.totalorder %s23, 0
      %p191 = por %p189, %p190
      %p192 = scmp.ne.s32.totalorder %s181, %s184
      %p193 = scmp.eq.s32.totalorder %s28, 1
      %p194 = por %p192, %p193
      %p195 = scmp.ne.s32.totalorder %s184, %s185
      %p196 = scmp.eq.s32.totalorder %s28, 0
      %p197 = por %p195, %p196
      %p198 = scmp.ne.s32.totalorder %s184, %s185
      %p199 = scmp.eq.s32.totalorder %s29, 1
      %p200 = por %p198, %p199
      %p202 = scmp.ne.s32.totalorder %s185, %s201
      %p203 = scmp.eq.s32.totalorder %s29, 0
      %p204 = por %p202, %p203
      %s205 = ssub.s32 %s30, %s42
      %s206 = ssub.s32 %s31, %s38
      %s207 = sor.u32 %s205, %s206
      %p208 = scmp.eq.s32.totalorder %s207, 0
      %s210 = sadd.s32 %s209, 1
      %s211 = scalar_select %p208, %s209, %s210
      %p214 = pneg %p208
      %p215 = scmp.eq.s32.totalorder %s23, 1
      %p216 = por %p214, %p215
      %p217 = scmp.ne.s32.totalorder %s209, %s212
      %p218 = scmp.eq.s32.totalorder %s23, 0
      %p219 = por %p217, %p218
      %p220 = scmp.ne.s32.totalorder %s209, %s212
      %p221 = scmp.eq.s32.totalorder %s28, 1
      %p222 = por %p220, %p221
      %p223 = scmp.ne.s32.totalorder %s212, %s213
      %p224 = scmp.eq.s32.totalorder %s28, 0
      %p225 = por %p223, %p224
      %p226 = scmp.ne.s32.totalorder %s212, %s213
      %p227 = scmp.eq.s32.totalorder %s29, 1
      %p228 = por %p226, %p227
      %p230 = scmp.ne.s32.totalorder %s213, %s229
      %p231 = scmp.eq.s32.totalorder %s29, 0
      %p232 = por %p230, %p231
      %s233 = ssub.s32 %s30, %s42
      %p234 = scmp.eq.s32.totalorder %s233, 0
      %s236 = sadd.s32 %s235, 1
      %s237 = scalar_select %p234, %s235, %s236
      %p240 = pneg %p234
      %p241 = scmp.eq.s32.totalorder %s23, 1
      %p242 = por %p240, %p241
      %p243 = scmp.ne.s32.totalorder %s235, %s238
      %p244 = scmp.eq.s32.totalorder %s23, 0
      %p245 = por %p243, %p244
      %p246 = scmp.ne.s32.totalorder %s235, %s238
      %p247 = scmp.eq.s32.totalorder %s28, 1
      %p248 = por %p246, %p247
      %p249 = scmp.ne.s32.totalorder %s238, %s239
      %p250 = scmp.eq.s32.totalorder %s28, 0
      %p251 = por %p249, %p250
      %p252 = scmp.ne.s32.totalorder %s238, %s239
      %p253 = scmp.eq.s32.totalorder %s29, 1
      %p254 = por %p252, %p253
      %p256 = scmp.ne.s32.totalorder %s239, %s255
      %p257 = scmp.eq.s32.totalorder %s29, 0
      %p258 = por %p256, %p257
      %s259 = ssub.s32 %s30, %s42
      %p260 = scmp.eq.s32.totalorder %s259, 0
      %s262 = sadd.s32 %s261, 1
      %s263 = scalar_select %p260, %s261, %s262
      %p266 = pneg %p260
      %p267 = scmp.eq.s32.totalorder %s23, 1
      %p268 = por %p266, %p267
      %p269 = scmp.ne.s32.totalorder %s261, %s264
      %p270 = scmp.eq.s32.totalorder %s23, 0
      %p271 = por %p269, %p270
      %p272 = scmp.ne.s32.totalorder %s261, %s264
      %p273 = scmp.eq.s32.totalorder %s28, 1
      %p274 = por %p272, %p273
      %p275 = scmp.ne.s32.totalorder %s264, %s265
      %p276 = scmp.eq.s32.totalorder %s28, 0
      %p277 = por %p275, %p276
      %p278 = scmp.ne.s32.totalorder %s264, %s265
      %p279 = scmp.eq.s32.totalorder %s29, 1
      %p280 = por %p278, %p279
      %p282 = scmp.ne.s32.totalorder %s265, %s281
      %p283 = scmp.eq.s32.totalorder %s29, 0
      %p284 = por %p282, %p283
      %s285 = ssub.s32 %s30, %s42
      %p286 = scmp.eq.s32.totalorder %s285, 0
      %s288 = sadd.s32 %s287, 1
      %s289 = scalar_select %p286, %s287, %s288
      %p292 = pneg %p286
      %p293 = scmp.eq.s32.totalorder %s23, 1
      %p294 = por %p292, %p293
      %p295 = scmp.ne.s32.totalorder %s287, %s290
      %p296 = scmp.eq.s32.totalorder %s23, 0
      %p297 = por %p295, %p296
      %p298 = scmp.ne.s32.totalorder %s287, %s290
      %p299 = scmp.eq.s32.totalorder %s28, 1
      %p300 = por %p298, %p299
      %p301 = scmp.ne.s32.totalorder %s290, %s291
      %p302 = scmp.eq.s32.totalorder %s28, 0
      %p303 = por %p301, %p302
      %p304 = scmp.ne.s32.totalorder %s290, %s291
      %p305 = scmp.eq.s32.totalorder %s29, 1
      %p306 = por %p304, %p305
      %p308 = scmp.ne.s32.totalorder %s291, %s307
      %p309 = scmp.eq.s32.totalorder %s29, 0
      %p310 = por %p308, %p309
      %s311 = ssub.s32 %s30, %s42
      %p312 = scmp.eq.s32.totalorder %s311, 0
      %s314 = sadd.s32 %s313, 1
      %s315 = scalar_select %p312, %s313, %s314
      %p318 = pneg %p312
      %p319 = scmp.eq.s32.totalorder %s23, 1
      %p320 = por %p318, %p319
      %p321 = scmp.ne.s32.totalorder %s313, %s316
      %p322 = scmp.eq.s32.totalorder %s23, 0
      %p323 = por %p321, %p322
      %p324 = scmp.ne.s32.totalorder %s313, %s316
      %p325 = scmp.eq.s32.totalorder %s28, 1
      %p326 = por %p324, %p325
      %p327 = scmp.ne.s32.totalorder %s316, %s317
      %p328 = scmp.eq.s32.totalorder %s28, 0
      %p329 = por %p327, %p328
      %p330 = scmp.ne.s32.totalorder %s316, %s317
      %p331 = scmp.eq.s32.totalorder %s29, 1
      %p332 = por %p330, %p331
      %p334 = scmp.ne.s32.totalorder %s317, %s333
      %p335 = scmp.eq.s32.totalorder %s29, 0
      %p336 = por %p334, %p335
      %s338 = sadd.s32 %s337, 1
      %p341 = scmp.eq.s32.totalorder %s23, 1
      %p342 = scmp.ne.s32.totalorder %s337, %s339
      %p343 = scmp.eq.s32.totalorder %s23, 0
      %p344 = por %p342, %p343
      %p345 = scmp.ne.s32.totalorder %s337, %s339
      %p346 = scmp.eq.s32.totalorder %s28, 1
      %p347 = por %p345, %p346
      %p348 = scmp.ne.s32.totalorder %s339, %s340
      %p349 = scmp.eq.s32.totalorder %s28, 0
      %p350 = por %p348, %p349
      %p351 = scmp.ne.s32.totalorder %s339, %s340
      %p352 = scmp.eq.s32.totalorder %s29, 1
      %p353 = por %p351, %p352
      %p355 = scmp.ne.s32.totalorder %s340, %s354
      %p356 = scmp.eq.s32.totalorder %s29, 0
      %p357 = por %p355, %p356
      %s359 = sadd.s32 %s358, 1
      %p362 = scmp.eq.s32.totalorder %s23, 1
      %p363 = scmp.ne.s32.totalorder %s358, %s360
      %p364 = scmp.eq.s32.totalorder %s23, 0
      %p365 = por %p363, %p364
      %p366 = scmp.ne.s32.totalorder %s358, %s360
      %p367 = scmp.eq.s32.totalorder %s28, 1
      %p368 = por %p366, %p367
      %p369 = scmp.ne.s32.totalorder %s360, %s361
      %p370 = scmp.eq.s32.totalorder %s28, 0
      %p371 = por %p369, %p370
      %p372 = scmp.ne.s32.totalorder %s360, %s361
      %p373 = scmp.eq.s32.totalorder %s29, 1
      %p374 = por %p372, %p373
      %p376 = scmp.ne.s32.totalorder %s361, %s375
      %p377 = scmp.eq.s32.totalorder %s29, 0
      %p378 = por %p376, %p377
      %s380 = sadd.s32 %s379, 1
      %p383 = scmp.eq.s32.totalorder %s23, 1
      %p384 = scmp.ne.s32.totalorder %s379, %s381
      %p385 = scmp.eq.s32.totalorder %s23, 0
      %p386 = por %p384, %p385
      %p387 = scmp.ne.s32.totalorder %s379, %s381
      %p388 = scmp.eq.s32.totalorder %s28, 1
      %p389 = por %p387, %p388
      %p390 = scmp.ne.s32.totalorder %s381, %s382
      %p391 = scmp.eq.s32.totalorder %s28, 0
      %p392 = por %p390, %p391
      %p393 = scmp.ne.s32.totalorder %s381, %s382
      %p394 = scmp.eq.s32.totalorder %s29, 1
      %p395 = por %p393, %p394
      %p397 = scmp.ne.s32.totalorder %s382, %s396
      %p398 = scmp.eq.s32.totalorder %s29, 0
      %p399 = por %p397, %p398
      %p400 = scmp.le.s32.totalorder 1, %s23
      %p401 = scmp.lt.s32.totalorder %s23, 3
      %p402 = pnand %p400, %p401
      %p403 = pneg %p402
      // Predicated region
      $region9: #{tpu_custom_call.1} parent=5 // pred_check
        _
      $region10: #{tpu_custom_call.1} parent=5 // pred_check_branch
        %405 = sbr.rel (%p402) target = $region12
      $region11: #{tpu_custom_call.1} parent=5 // pred_region
        %s406 = ssub.s32 %s23, 1
        // Predicated region
        $region13: #{tpu_custom_call.1} parent=11 // pred_check
          %p407 = pneg %p56
        $region14: #{tpu_custom_call.1} parent=11 // pred_check_branch
          %409 = sbr.rel (%p407) target = $region16
        $region15: #{tpu_custom_call.1} parent=11 // pred_region
          %s411 = ssub.s32 16, 16
          %412 = vsyncadd [#allocation8], %s411
          %s414 = sshll.u32 %s0, 4
          %s415 = int_to_ptr.vmem [resolvable:$true] %s414
          %417 = dma.vmem_to_smem %s415, 16, [#allocation6], [#allocation8]
        $region16: #{tpu_custom_call.1} parent=11 // pred_fallthru
          _
        // Predicated region
        $region17: #{tpu_custom_call.1} parent=11 // pred_check
          %p418 = pneg %p77
        $region18: #{tpu_custom_call.1} parent=11 // pred_check_branch
          %420 = sbr.rel (%p418) target = $region20
        $region19: #{tpu_custom_call.1} parent=11 // pred_region
          _
        $region20: #{tpu_custom_call.1} parent=11 // pred_fallthru
          _
        // Predicated region
        $region21: #{tpu_custom_call.1} parent=11 // pred_check
          %p421 = pneg %p98
        $region22: #{tpu_custom_call.1} parent=11 // pred_check_branch
          %423 = sbr.rel (%p421) target = $region24
        $region23: #{tpu_custom_call.1} parent=11 // pred_region
          _
        $region24: #{tpu_custom_call.1} parent=11 // pred_fallthru
          _
        // Predicated region
        $region25: #{tpu_custom_call.1} parent=11 // pred_check
          %p424 = pneg %p119
        $region26: #{tpu_custom_call.1} parent=11 // pred_check_branch
          %426 = sbr.rel (%p424) target = $region28
        $region27: #{tpu_custom_call.1} parent=11 // pred_region
          _
        $region28: #{tpu_custom_call.1} parent=11 // pred_fallthru
          _
        // Predicated region
        $region29: #{tpu_custom_call.1} parent=11 // pred_check
          %p427 = pneg %p145
        $region30: #{tpu_custom_call.1} parent=11 // pred_check_branch
          %429 = sbr.rel (%p427) target = $region32
        $region31: #{tpu_custom_call.1} parent=11 // pred_region
          %s430 = smul.u32 64, %s33
          %p431 = scmp.lt.s32.totalorder %s430, 63
          %s432 = scalar_select %p431, %s430, 63
          %s433 = smul.addr %s432, 4
          %s434 = scalar_lea.vmem %s4, %s433
          %s435 = smul.u32 64, %s33
        $region32: #{tpu_custom_call.1} parent=11 // pred_fallthru
          _
        // Predicated region
        $region33: #{tpu_custom_call.1} parent=11 // pred_check
          %p436 = pneg %p171
        $region34: #{tpu_custom_call.1} parent=11 // pred_check_branch
          %438 = sbr.rel (%p436) target = $region36
        $region35: #{tpu_custom_call.1} parent=11 // pred_region
          %s439 = smul.u32 4, %s33
          %p440 = scmp.lt.s32.totalorder %s439, 3
          %s441 = scalar_select %p440, %s439, 3
          %s442 = smul.addr %s441, 4
          %s443 = scalar_lea.vmem %s5, %s442
          %s444 = smul.u32 4, %s33
        $region36: #{tpu_custom_call.1} parent=11 // pred_fallthru
          _
        // Predicated region
        $region37: #{tpu_custom_call.1} parent=11 // pred_check
          %p445 = pneg %p197
        $region38: #{tpu_custom_call.1} parent=11 // pred_check_branch
          %447 = sbr.rel (%p445) target = $region40
        $region39: #{tpu_custom_call.1} parent=11 // pred_region
          %s448 = smul.u32 64, %s33
          %p449 = scmp.lt.s32.totalorder %s448, 63
          %s450 = scalar_select %p449, %s448, 63
          %s451 = smul.addr %s450, 8
          %s452 = scalar_lea.vmem %s6, %s451
          %s453 = smul.u32 64, %s33
        $region40: #{tpu_custom_call.1} parent=11 // pred_fallthru
          _
        // Predicated region
        $region41: #{tpu_custom_call.1} parent=11 // pred_check
          %p454 = pneg %p350
        $region42: #{tpu_custom_call.1} parent=11 // pred_check_branch
          %456 = sbr.rel (%p454) target = $region44
        $region43: #{tpu_custom_call.1} parent=11 // pred_region
          _
        $region44: #{tpu_custom_call.1} parent=11 // pred_fallthru
          _
        // Predicated region
        $region45: #{tpu_custom_call.1} parent=11 // pred_check
          %p457 = pneg %p371
        $region46: #{tpu_custom_call.1} parent=11 // pred_check_branch
          %459 = sbr.rel (%p457) target = $region48
        $region47: #{tpu_custom_call.1} parent=11 // pred_region
          _
        $region48: #{tpu_custom_call.1} parent=11 // pred_fallthru
          _
      $region12: #{tpu_custom_call.1} parent=5 // pred_fallthru
        _
      %p460 = scmp.lt.s32.totalorder %s23, 2
      // Predicated region
      $region49: #{tpu_custom_call.1} parent=5 // pred_check
        %p461 = pneg %p460
      $region50: #{tpu_custom_call.1} parent=5 // pred_check_branch
        %463 = sbr.rel (%p461) target = $region52
      $region51: #{tpu_custom_call.1} parent=5 // pred_region
        // Predicated region
        $region53: #{tpu_custom_call.1} parent=51 // pred_check
          %p464 = pneg %p219
        $region54: #{tpu_custom_call.1} parent=51 // pred_check_branch
          %466 = sbr.rel (%p464) target = $region56
        $region55: #{tpu_custom_call.1} parent=51 // pred_region
          %s467 = smul.u32 64, %s31
          %p468 = scmp.lt.s32.totalorder %s30, 1
          %s469 = scalar_select %p468, %s30, 1
          %p470 = scmp.lt.s32.totalorder %s467, 63
          %s471 = scalar_select %p470, %s467, 63
          %s472 = smul.addr %s469, 64
          %s473 = sadd.s32 %s471, %s472
          %s474 = smul.addr %s473, 8
          %s475 = scalar_lea.vmem %s7, %s474
          %s476 = smul.u32 64, %s31
        $region56: #{tpu_custom_call.1} parent=51 // pred_fallthru
          _
        // Predicated region
        $region57: #{tpu_custom_call.1} parent=51 // pred_check
          %p477 = pneg %p245
        $region58: #{tpu_custom_call.1} parent=51 // pred_check_branch
          %479 = sbr.rel (%p477) target = $region60
        $region59: #{tpu_custom_call.1} parent=51 // pred_region
          %p480 = scmp.lt.s32.totalorder %s30, 1
          %s481 = scalar_select %p480, %s30, 1
          %s482 = smul.addr %s481, 32
          %s483 = smul.addr %s482, 4
          %s484 = scalar_lea.vmem %s8, %s483
        $region60: #{tpu_custom_call.1} parent=51 // pred_fallthru
          _
        // Predicated region
        $region61: #{tpu_custom_call.1} parent=51 // pred_check
          %p485 = pneg %p271
        $region62: #{tpu_custom_call.1} parent=51 // pred_check_branch
          %487 = sbr.rel (%p485) target = $region64
        $region63: #{tpu_custom_call.1} parent=51 // pred_region
          %p488 = scmp.lt.s32.totalorder %s30, 1
          %s489 = scalar_select %p488, %s30, 1
          %s490 = smul.addr %s489, 32
          %s491 = smul.addr %s490, 4
          %s492 = scalar_lea.vmem %s9, %s491
        $region64: #{tpu_custom_call.1} parent=51 // pred_fallthru
          _
        // Predicated region
        $region65: #{tpu_custom_call.1} parent=51 // pred_check
          %p493 = pneg %p297
        $region66: #{tpu_custom_call.1} parent=51 // pred_check_branch
          %495 = sbr.rel (%p493) target = $region68
        $region67: #{tpu_custom_call.1} parent=51 // pred_region
          %p496 = scmp.lt.s32.totalorder %s30, 1
          %s497 = scalar_select %p496, %s30, 1
          %s498 = smul.addr %s497, 2
          %s499 = scalar_lea.vmem %s10, %s498
        $region68: #{tpu_custom_call.1} parent=51 // pred_fallthru
          _
        // Predicated region
        $region69: #{tpu_custom_call.1} parent=51 // pred_check
          %p500 = pneg %p323
        $region70: #{tpu_custom_call.1} parent=51 // pred_check_branch
          %502 = sbr.rel (%p500) target = $region72
        $region71: #{tpu_custom_call.1} parent=51 // pred_region
          %p503 = scmp.lt.s32.totalorder %s30, 1
          %s504 = scalar_select %p503, %s30, 1
          %s505 = smul.addr %s504, 2
          %s506 = scalar_lea.vmem %s11, %s505
        $region72: #{tpu_custom_call.1} parent=51 // pred_fallthru
          _
      $region52: #{tpu_custom_call.1} parent=5 // pred_fallthru
        _
      %p507 = scmp.le.s32.totalorder 1, %s23
      %p508 = scmp.lt.s32.totalorder %s23, 3
      %p509 = pnand %p507, %p508
      %p510 = pneg %p509
      // Predicated region
      $region73: #{tpu_custom_call.1} parent=5 // pred_check
        _
      $region74: #{tpu_custom_call.1} parent=5 // pred_check_branch
        %512 = sbr.rel (%p509) target = $region76
      $region75: #{tpu_custom_call.1} parent=5 // pred_region
        %s513 = ssub.s32 %s23, 1
        // Predicated region
        $region77: #{tpu_custom_call.1} parent=75 // pred_check
          %p514 = pneg %p56
        $region78: #{tpu_custom_call.1} parent=75 // pred_check_branch
          %516 = sbr.rel (%p514) target = $region80
        $region79: #{tpu_custom_call.1} parent=75 // pred_region
          %517 = dma.done [#allocation8], 16
        $region80: #{tpu_custom_call.1} parent=75 // pred_fallthru
          _
        %518 = sfence
        %p519 = pneg %p56
        %p520 = pneg %p53
        %p521 = pneg %p77
        %p522 = pneg %p74
        %p523 = pneg %p98
        %p524 = pneg %p95
        %p525 = pneg %p119
        %p526 = pneg %p116
        %s527 = smul.u32 64, %s33
        %p528 = scmp.lt.s32.totalorder %s527, 63
        %s529 = scalar_select %p528, %s527, 63
        %s530 = smul.addr %s529, 4
        %s531 = scalar_lea.vmem %s4, %s530
        %p532 = pneg %p145
        %p533 = pneg %p142
        %s534 = smul.u32 4, %s33
        %p535 = scmp.lt.s32.totalorder %s534, 3
        %s536 = scalar_select %p535, %s534, 3
        %s537 = smul.addr %s536, 4
        %s538 = scalar_lea.vmem %s5, %s537
        %p539 = pneg %p171
        %p540 = pneg %p168
        %s541 = smul.u32 64, %s33
        %p542 = scmp.lt.s32.totalorder %s541, 63
        %s543 = scalar_select %p542, %s541, 63
        %s544 = smul.addr %s543, 8
        %s545 = scalar_lea.vmem %s6, %s544
        %p546 = pneg %p197
        %p547 = pneg %p194
        %s548 = smul.u32 64, %s33
        %p549 = scmp.lt.s32.totalorder %s32, 1
        %s550 = scalar_select %p549, %s32, 1
        %p551 = scmp.lt.s32.totalorder %s548, 63
        %s552 = scalar_select %p551, %s548, 63
        %s553 = smul.addr %s550, 64
        %s554 = sadd.s32 %s552, %s553
        %s555 = smul.addr %s554, 8
        %s556 = scalar_lea.vmem %s7, %s555
        %p557 = pneg %p225
        %p558 = pneg %p222
        %p559 = scmp.lt.s32.totalorder %s32, 1
        %s560 = scalar_select %p559, %s32, 1
        %s561 = smul.addr %s560, 32
        %s562 = smul.addr %s561, 4
        %s563 = scalar_lea.vmem %s8, %s562
        %p564 = pneg %p251
        %p565 = pneg %p248
        %p566 = scmp.lt.s32.totalorder %s32, 1
        %s567 = scalar_select %p566, %s32, 1
        %s568 = smul.addr %s567, 32
        %s569 = smul.addr %s568, 4
        %s570 = scalar_lea.vmem %s9, %s569
        %p571 = pneg %p277
        %p572 = pneg %p274
        %p573 = scmp.lt.s32.totalorder %s32, 1
        %s574 = scalar_select %p573, %s32, 1
        %s575 = smul.addr %s574, 2
        %s576 = scalar_lea.vmem %s10, %s575
        %p577 = pneg %p303
        %p578 = pneg %p300
        %p579 = scmp.lt.s32.totalorder %s32, 1
        %s580 = scalar_select %p579, %s32, 1
        %s581 = smul.addr %s580, 2
        %s582 = scalar_lea.vmem %s11, %s581
        %p583 = pneg %p329
        %p584 = pneg %p326
        %p585 = pneg %p350
        %p586 = pneg %p347
        %p587 = pneg %p371
        %p588 = pneg %p368
        %p589 = pneg %p392
        %p590 = pneg %p389
        %s591 = smul.u32 64, %s33
        %p592 = scmp.lt.s32.totalorder %s591, 63
        %s593 = scalar_select %p592, %s591, 63
        %s594 = smul.addr %s593, 4
        %s595 = scalar_lea.vmem %s4, %s594
        %s596 = smul.u32 64, %s33
        %s597 = smul.u32 4, %s33
        %p598 = scmp.lt.s32.totalorder %s597, 3
        %s599 = scalar_select %p598, %s597, 3
        %s600 = smul.addr %s599, 4
        %s601 = scalar_lea.vmem %s5, %s600
        %s602 = smul.u32 4, %s33
        %s603 = smul.u32 64, %s33
        %p604 = scmp.lt.s32.totalorder %s603, 63
        %s605 = scalar_select %p604, %s603, 63
        %s606 = smul.addr %s605, 8
        %s607 = scalar_lea.vmem %s6, %s606
        %s608 = smul.u32 64, %s33
        %s609 = smul.u32 64, %s33
        %p610 = scmp.lt.s32.totalorder %s32, 1
        %s611 = scalar_select %p610, %s32, 1
        %p612 = scmp.lt.s32.totalorder %s609, 63
        %s613 = scalar_select %p612, %s609, 63
        %s614 = smul.addr %s611, 64
        %s615 = sadd.s32 %s613, %s614
        %s616 = smul.addr %s615, 8
        %s617 = scalar_lea.vmem %s7, %s616
        %s618 = smul.u32 64, %s33
        %p619 = scmp.lt.s32.totalorder %s32, 1
        %s620 = scalar_select %p619, %s32, 1
        %s621 = smul.addr %s620, 32
        %s622 = smul.addr %s621, 4
        %s623 = scalar_lea.vmem %s8, %s622
        %p624 = scmp.lt.s32.totalorder %s32, 1
        %s625 = scalar_select %p624, %s32, 1
        %s626 = smul.addr %s625, 32
        %s627 = smul.addr %s626, 4
        %s628 = scalar_lea.vmem %s9, %s627
        %p629 = scmp.lt.s32.totalorder %s32, 1
        %s630 = scalar_select %p629, %s32, 1
        %s631 = smul.addr %s630, 2
        %s632 = scalar_lea.vmem %s10, %s631
        %p633 = scmp.lt.s32.totalorder %s32, 1
        %s634 = scalar_select %p633, %s32, 1
        %s635 = smul.addr %s634, 2
        %s636 = scalar_lea.vmem %s11, %s635
        %p638 = scmp.eq.s32.totalorder %s32, 0
        %p639 = scmp.eq.s32.totalorder %s33, 0
        %p640 = pnand %p638, %p639
        %p641 = pneg %p640
        // Predicated region
        $region81: #{tpu_custom_call.1} parent=75 // pred_check
          _
        $region82: #{tpu_custom_call.1} parent=75 // pred_check_branch
          %643 = sbr.rel (%p640) target = $region84
        $region83: #{tpu_custom_call.1} parent=75 // pred_region
          %v644 = vld [vmem:[%s2] sm:$0xff]
          %v645 = vld [vmem:[%s2 + $0x8] sm:$0xff]
          %646 = vst [vmem:[#allocation2] sm:$0xff] %v644
          %647 = vst [vmem:[#allocation2 + $0x8] sm:$0xff] %v645
        $region84: #{tpu_custom_call.1} parent=75 // pred_fallthru
          _
        // Predicated region
        $region85: #{tpu_custom_call.1} parent=75 // pred_check
          %p648 = pneg %p639
        $region86: #{tpu_custom_call.1} parent=75 // pred_check_branch
          %650 = sbr.rel (%p648) target = $region88
        $region87: #{tpu_custom_call.1} parent=75 // pred_region
          %651 = vst [vmem:[#allocation3] sm:$0xff] 0.0
          %652 = vst [vmem:[#allocation3 + $0x8] sm:$0xff] 0.0
          %v653 = vld [vmem:[#allocation2] sm:$0xff]
          %v654 = vld [vmem:[#allocation2 + $0x8] sm:$0xff]
          %v655 = vpack.c.bf16 %v654, %v653
          %v656 = vld [vmem:[%s623] sm:$0xff]
          %v657 = vld [vmem:[%s623 + $0x8] sm:$0xff]
          %v658 = vld [vmem:[%s623 + $0x10] sm:$0xff]
          %v659 = vld [vmem:[%s623 + $0x18] sm:$0xff]
          %v660 = vld [vmem:[%s623 + $0x20] sm:$0xff]
          %v661 = vld [vmem:[%s623 + $0x28] sm:$0xff]
          %v662 = vld [vmem:[%s623 + $0x30] sm:$0xff]
          %v663 = vld [vmem:[%s623 + $0x38] sm:$0xff]
          %v664 = vld [vmem:[%s623 + $0x40] sm:$0xff]
          %v665 = vld [vmem:[%s623 + $0x48] sm:$0xff]
          %v666 = vld [vmem:[%s623 + $0x50] sm:$0xff]
          %v667 = vld [vmem:[%s623 + $0x58] sm:$0xff]
          %v668 = vld [vmem:[%s623 + $0x60] sm:$0xff]
          %v669 = vld [vmem:[%s623 + $0x68] sm:$0xff]
          %v670 = vld [vmem:[%s623 + $0x70] sm:$0xff]
          %v671 = vld [vmem:[%s623 + $0x78] sm:$0xff]
          %v688 = vunpack.c.l.b16 %v656
          %v689 = vunpack.c.h.b16 %v656
          %v690 = vunpack.c.l.b16 %v657
          %v691 = vunpack.c.h.b16 %v657
          %v692 = vunpack.c.l.b16 %v658
          %v693 = vunpack.c.h.b16 %v658
          %v694 = vunpack.c.l.b16 %v659
          %v695 = vunpack.c.h.b16 %v659
          %v696 = vunpack.c.l.b16 %v660
          %v697 = vunpack.c.h.b16 %v660
          %v698 = vunpack.c.l.b16 %v661
          %v699 = vunpack.c.h.b16 %v661
          %v700 = vunpack.c.l.b16 %v662
          %v701 = vunpack.c.h.b16 %v662
          %v702 = vunpack.c.l.b16 %v663
          %v703 = vunpack.c.h.b16 %v663
          %v704 = vunpack.c.l.b16 %v664
          %v705 = vunpack.c.h.b16 %v664
          %v706 = vunpack.c.l.b16 %v665
          %v707 = vunpack.c.h.b16 %v665
          %v708 = vunpack.c.l.b16 %v666
          %v709 = vunpack.c.h.b16 %v666
          %v710 = vunpack.c.l.b16 %v667
          %v711 = vunpack.c.h.b16 %v667
          %v712 = vunpack.c.l.b16 %v668
          %v713 = vunpack.c.h.b16 %v668
          %v714 = vunpack.c.l.b16 %v669
          %v715 = vunpack.c.h.b16 %v669
          %v716 = vunpack.c.l.b16 %v670
          %v717 = vunpack.c.h.b16 %v670
          %v718 = vunpack.c.l.b16 %v671
          %v719 = vunpack.c.h.b16 %v671
          %v720 = vpack.c.b16 %v690, %v688
          %v721 = vpack.c.b16 %v691, %v689
          %v722 = vpack.c.b16 %v694, %v692
          %v723 = vpack.c.b16 %v695, %v693
          %v724 = vpack.c.b16 %v698, %v696
          %v725 = vpack.c.b16 %v699, %v697
          %v726 = vpack.c.b16 %v702, %v700
          %v727 = vpack.c.b16 %v703, %v701
          %v728 = vpack.c.b16 %v706, %v704
          %v729 = vpack.c.b16 %v707, %v705
          %v730 = vpack.c.b16 %v710, %v708
          %v731 = vpack.c.b16 %v711, %v709
          %v732 = vpack.c.b16 %v714, %v712
          %v733 = vpack.c.b16 %v715, %v713
          %v734 = vpack.c.b16 %v718, %v716
          %v735 = vpack.c.b16 %v719, %v717
          %752 = vmatprep.subr.bf16.mxu0 %v721
          %753 = vmatpush1.bf16.msra.mxu0 %v720
          %754 = vmatprep.subr.bf16.mxu0 %v723
          %755 = vmatpush1.bf16.msra.mxu0 %v722
          %756 = vmatprep.subr.bf16.mxu0 %v725
          %757 = vmatpush1.bf16.msra.mxu0 %v724
          %758 = vmatprep.subr.bf16.mxu0 %v727
          %759 = vmatpush1.bf16.msra.mxu0 %v726
          %760 = vmatprep.subr.bf16.mxu0 %v729
          %761 = vmatpush1.bf16.msra.mxu0 %v728
          %762 = vmatprep.subr.bf16.mxu0 %v731
          %763 = vmatpush1.bf16.msra.mxu0 %v730
          %764 = vmatprep.subr.bf16.mxu0 %v733
          %765 = vmatpush1.bf16.msra.mxu0 %v732
          %766 = vmatprep.subr.bf16.mxu0 %v735
          %767 = vmatpush1.bf16.msra.mxu0 %v734
          %768 = vmatprep.subr.bf16.mxu0 0
          %769 = vmatpush1.bf16.msra.mxu0 0
          %770 = vmatprep.subr.bf16.mxu0 0
          %771 = vmatpush1.bf16.msra.mxu0 0
          %772 = vmatprep.subr.bf16.mxu0 0
          %773 = vmatpush1.bf16.msra.mxu0 0
          %774 = vmatprep.subr.bf16.mxu0 0
          %775 = vmatpush1.bf16.msra.mxu0 0
          %776 = vmatprep.subr.bf16.mxu0 0
          %777 = vmatpush1.bf16.msra.mxu0 0
          %778 = vmatprep.subr.bf16.mxu0 0
          %779 = vmatpush1.bf16.msra.mxu0 0
          %780 = vmatprep.subr.bf16.mxu0 0
          %781 = vmatpush1.bf16.msra.mxu0 0
          %782 = vmatprep.subr.bf16.mxu0 0
          %783 = vmatpush1.bf16.msra.mxu0 0
          %784 = vmatprep.mubr.bf16.mxu0 0
          %785 = vmatmul.mubr.bf16.gmra.mrb[0].mxu0 %v655
          %v786 = vpop.f32.mrb[0].mxu0
          %v787 = vadd.f32 0.0, %v786
          %v788 = vpop.f32.mrb[0].mxu0
          %v789 = vadd.f32 0.0, %v788
          %v790 = vpop.f32.mrb[0].mxu0
          %v791 = vadd.f32 0.0, %v790
          %v792 = vpop.f32.mrb[0].mxu0
          %v793 = vadd.f32 0.0, %v792
          %794 = vdwg.mxu0
          %v795 = vld [vmem:[%s628] sm:$0xff]
          %v796 = vld [vmem:[%s628 + $0x8] sm:$0xff]
          %v797 = vld [vmem:[%s628 + $0x10] sm:$0xff]
          %v798 = vld [vmem:[%s628 + $0x18] sm:$0xff]
          %v799 = vld [vmem:[%s628 + $0x20] sm:$0xff]
          %v800 = vld [vmem:[%s628 + $0x28] sm:$0xff]
          %v801 = vld [vmem:[%s628 + $0x30] sm:$0xff]
          %v802 = vld [vmem:[%s628 + $0x38] sm:$0xff]
          %v803 = vld [vmem:[%s628 + $0x40] sm:$0xff]
          %v804 = vld [vmem:[%s628 + $0x48] sm:$0xff]
          %v805 = vld [vmem:[%s628 + $0x50] sm:$0xff]
          %v806 = vld [vmem:[%s628 + $0x58] sm:$0xff]
          %v807 = vld [vmem:[%s628 + $0x60] sm:$0xff]
          %v808 = vld [vmem:[%s628 + $0x68] sm:$0xff]
          %v809 = vld [vmem:[%s628 + $0x70] sm:$0xff]
          %v810 = vld [vmem:[%s628 + $0x78] sm:$0xff]
          %v827 = vunpack.c.l.b16 %v795
          %v828 = vunpack.c.h.b16 %v795
          %v829 = vunpack.c.l.b16 %v796
          %v830 = vunpack.c.h.b16 %v796
          %v831 = vunpack.c.l.b16 %v797
          %v832 = vunpack.c.h.b16 %v797
          %v833 = vunpack.c.l.b16 %v798
          %v834 = vunpack.c.h.b16 %v798
          %v835 = vunpack.c.l.b16 %v799
          %v836 = vunpack.c.h.b16 %v799
          %v837 = vunpack.c.l.b16 %v800
          %v838 = vunpack.c.h.b16 %v800
          %v839 = vunpack.c.l.b16 %v801
          %v840 = vunpack.c.h.b16 %v801
          %v841 = vunpack.c.l.b16 %v802
          %v842 = vunpack.c.h.b16 %v802
          %v843 = vunpack.c.l.b16 %v803
          %v844 = vunpack.c.h.b16 %v803
          %v845 = vunpack.c.l.b16 %v804
          %v846 = vunpack.c.h.b16 %v804
          %v847 = vunpack.c.l.b16 %v805
          %v848 = vunpack.c.h.b16 %v805
          %v849 = vunpack.c.l.b16 %v806
          %v850 = vunpack.c.h.b16 %v806
          %v851 = vunpack.c.l.b16 %v807
          %v852 = vunpack.c.h.b16 %v807
          %v853 = vunpack.c.l.b16 %v808
          %v854 = vunpack.c.h.b16 %v808
          %v855 = vunpack.c.l.b16 %v809
          %v856 = vunpack.c.h.b16 %v809
          %v857 = vunpack.c.l.b16 %v810
          %v858 = vunpack.c.h.b16 %v810
          %v859 = vpack.c.b16 %v829, %v827
          %v860 = vpack.c.b16 %v830, %v828
          %v861 = vpack.c.b16 %v833, %v831
          %v862 = vpack.c.b16 %v834, %v832
          %v863 = vpack.c.b16 %v837, %v835
          %v864 = vpack.c.b16 %v838, %v836
          %v865 = vpack.c.b16 %v841, %v839
          %v866 = vpack.c.b16 %v842, %v840
          %v867 = vpack.c.b16 %v845, %v843
          %v868 = vpack.c.b16 %v846, %v844
          %v869 = vpack.c.b16 %v849, %v847
          %v870 = vpack.c.b16 %v850, %v848
          %v871 = vpack.c.b16 %v853, %v851
          %v872 = vpack.c.b16 %v854, %v852
          %v873 = vpack.c.b16 %v857, %v855
          %v874 = vpack.c.b16 %v858, %v856
          %891 = vmatprep.subr.bf16.mxu0 %v860
          %892 = vmatpush1.bf16.msra.mxu0 %v859
          %893 = vmatprep.subr.bf16.mxu0 %v862
          %894 = vmatpush1.bf16.msra.mxu0 %v861
          %895 = vmatprep.subr.bf16.mxu0 %v864
          %896 = vmatpush1.bf16.msra.mxu0 %v863
          %897 = vmatprep.subr.bf16.mxu0 %v866
          %898 = vmatpush1.bf16.msra.mxu0 %v865
          %899 = vmatprep.subr.bf16.mxu0 %v868
          %900 = vmatpush1.bf16.msra.mxu0 %v867
          %901 = vmatprep.subr.bf16.mxu0 %v870
          %902 = vmatpush1.bf16.msra.mxu0 %v869
          %903 = vmatprep.subr.bf16.mxu0 %v872
          %904 = vmatpush1.bf16.msra.mxu0 %v871
          %905 = vmatprep.subr.bf16.mxu0 %v874
          %906 = vmatpush1.bf16.msra.mxu0 %v873
          %907 = vmatprep.subr.bf16.mxu0 0
          %908 = vmatpush1.bf16.msra.mxu0 0
          %909 = vmatprep.subr.bf16.mxu0 0
          %910 = vmatpush1.bf16.msra.mxu0 0
          %911 = vmatprep.subr.bf16.mxu0 0
          %912 = vmatpush1.bf16.msra.mxu0 0
          %913 = vmatprep.subr.bf16.mxu0 0
          %914 = vmatpush1.bf16.msra.mxu0 0
          %915 = vmatprep.subr.bf16.mxu0 0
          %916 = vmatpush1.bf16.msra.mxu0 0
          %917 = vmatprep.subr.bf16.mxu0 0
          %918 = vmatpush1.bf16.msra.mxu0 0
          %919 = vmatprep.subr.bf16.mxu0 0
          %920 = vmatpush1.bf16.msra.mxu0 0
          %921 = vmatprep.subr.bf16.mxu0 0
          %922 = vmatpush1.bf16.msra.mxu0 0
          %923 = vmatprep.mubr.bf16.mxu0 0
          %924 = vmatmul.mubr.bf16.gmra.mrb[0].mxu0 %v655
          %v925 = vpop.f32.mrb[0].mxu0
          %v926 = vadd.f32 0.0, %v925
          %v927 = vpop.f32.mrb[0].mxu0
          %v928 = vadd.f32 0.0, %v927
          %v929 = vpop.f32.mrb[0].mxu0
          %v930 = vadd.f32 0.0, %v929
          %v931 = vpop.f32.mrb[0].mxu0
          %v932 = vadd.f32 0.0, %v931
          %933 = vdwg.mxu0
          %v934 = vpack.c.bf16 %v791, %v787
          %v935 = vpack.c.bf16 %v793, %v789
          %v936 = vpack.c.bf16 %v930, %v926
          %v937 = vpack.c.bf16 %v932, %v928
          %938 = vst [vmem:[#allocation4] sm:$0xff] %v934
          %939 = vst [vmem:[#allocation4 + $0x8] sm:$0xff] %v935
          %940 = vst [vmem:[#allocation4 + $0x10] sm:$0xff] %v936
          %941 = vst [vmem:[#allocation4 + $0x18] sm:$0xff] %v937
        $region88: #{tpu_custom_call.1} parent=75 // pred_fallthru
          _
        %v942 = vld [vmem:[%s595] sm:$0xf]
        %v943 = vld [vmem:[%s595 + $0x4] sm:$0xf]
        %v944 = vld [vmem:[%s595 + $0x8] sm:$0xf]
        %v945 = vld [vmem:[%s595 + $0xc] sm:$0xf]
        %v946 = vld [vmem:[%s595 + $0x10] sm:$0xf]
        %v947 = vld [vmem:[%s595 + $0x14] sm:$0xf]
        %v948 = vld [vmem:[%s595 + $0x18] sm:$0xf]
        %v949 = vld [vmem:[%s595 + $0x1c] sm:$0xf]
        %v950 = vld [vmem:[%s595 + $0x20] sm:$0xf]
        %v951 = vld [vmem:[%s595 + $0x24] sm:$0xf]
        %v952 = vld [vmem:[%s595 + $0x28] sm:$0xf]
        %v953 = vld [vmem:[%s595 + $0x2c] sm:$0xf]
        %v954 = vld [vmem:[%s595 + $0x30] sm:$0xf]
        %v955 = vld [vmem:[%s595 + $0x34] sm:$0xf]
        %v956 = vld [vmem:[%s595 + $0x38] sm:$0xf]
        %v957 = vld [vmem:[%s595 + $0x3c] sm:$0xf]
        %v958 = vld [vmem:[%s595 + $0x40] sm:$0xf]
        %v959 = vld [vmem:[%s595 + $0x44] sm:$0xf]
        %v960 = vld [vmem:[%s595 + $0x48] sm:$0xf]
        %v961 = vld [vmem:[%s595 + $0x4c] sm:$0xf]
        %v962 = vld [vmem:[%s595 + $0x50] sm:$0xf]
        %v963 = vld [vmem:[%s595 + $0x54] sm:$0xf]
        %v964 = vld [vmem:[%s595 + $0x58] sm:$0xf]
        %v965 = vld [vmem:[%s595 + $0x5c] sm:$0xf]
        %v966 = vld [vmem:[%s595 + $0x60] sm:$0xf]
        %v967 = vld [vmem:[%s595 + $0x64] sm:$0xf]
        %v968 = vld [vmem:[%s595 + $0x68] sm:$0xf]
        %v969 = vld [vmem:[%s595 + $0x6c] sm:$0xf]
        %v970 = vld [vmem:[%s595 + $0x70] sm:$0xf]
        %v971 = vld [vmem:[%s595 + $0x74] sm:$0xf]
        %v972 = vld [vmem:[%s595 + $0x78] sm:$0xf]
        %v973 = vld [vmem:[%s595 + $0x7c] sm:$0xf]
        %v974 = vld [vmem:[%s595 + $0x80] sm:$0xf]
        %v975 = vld [vmem:[%s595 + $0x84] sm:$0xf]
        %v976 = vld [vmem:[%s595 + $0x88] sm:$0xf]
        %v977 = vld [vmem:[%s595 + $0x8c] sm:$0xf]
        %v978 = vld [vmem:[%s595 + $0x90] sm:$0xf]
        %v979 = vld [vmem:[%s595 + $0x94] sm:$0xf]
        %v980 = vld [vmem:[%s595 + $0x98] sm:$0xf]
        %v981 = vld [vmem:[%s595 + $0x9c] sm:$0xf]
        %v982 = vld [vmem:[%s595 + $0xa0] sm:$0xf]
        %v983 = vld [vmem:[%s595 + $0xa4] sm:$0xf]
        %v984 = vld [vmem:[%s595 + $0xa8] sm:$0xf]
        %v985 = vld [vmem:[%s595 + $0xac] sm:$0xf]
        %v986 = vld [vmem:[%s595 + $0xb0] sm:$0xf]
        %v987 = vld [vmem:[%s595 + $0xb4] sm:$0xf]
        %v988 = vld [vmem:[%s595 + $0xb8] sm:$0xf]
        %v989 = vld [vmem:[%s595 + $0xbc] sm:$0xf]
        %v990 = vld [vmem:[%s595 + $0xc0] sm:$0xf]
        %v991 = vld [vmem:[%s595 + $0xc4] sm:$0xf]
        %v992 = vld [vmem:[%s595 + $0xc8] sm:$0xf]
        %v993 = vld [vmem:[%s595 + $0xcc] sm:$0xf]
        %v994 = vld [vmem:[%s595 + $0xd0] sm:$0xf]
        %v995 = vld [vmem:[%s595 + $0xd4] sm:$0xf]
        %v996 = vld [vmem:[%s595 + $0xd8] sm:$0xf]
        %v997 = vld [vmem:[%s595 + $0xdc] sm:$0xf]
        %v998 = vld [vmem:[%s595 + $0xe0] sm:$0xf]
        %v999 = vld [vmem:[%s595 + $0xe4] sm:$0xf]
        %v1000 = vld [vmem:[%s595 + $0xe8] sm:$0xf]
        %v1001 = vld [vmem:[%s595 + $0xec] sm:$0xf]
        %v1002 = vld [vmem:[%s595 + $0xf0] sm:$0xf]
        %v1003 = vld [vmem:[%s595 + $0xf4] sm:$0xf]
        %v1004 = vld [vmem:[%s595 + $0xf8] sm:$0xf]
        %v1005 = vld [vmem:[%s595 + $0xfc] sm:$0xf]
        %v1006 = vld [vmem:[#allocation4] sm:$0xff]
        %v1007 = vld [vmem:[#allocation4 + $0x8] sm:$0xff]
        %v1008 = vld [vmem:[#allocation4 + $0x10] sm:$0xff]
        %v1009 = vld [vmem:[#allocation4 + $0x18] sm:$0xff]
        %v1010 = vld [vmem:[%s607] sm:$0xff]
        %v1011 = vld [vmem:[%s607 + $0x8] sm:$0xff]
        %v1012 = vld [vmem:[%s607 + $0x10] sm:$0xff]
        %v1013 = vld [vmem:[%s607 + $0x18] sm:$0xff]
        %v1014 = vld [vmem:[%s607 + $0x20] sm:$0xff]
        %v1015 = vld [vmem:[%s607 + $0x28] sm:$0xff]
        %v1016 = vld [vmem:[%s607 + $0x30] sm:$0xff]
        %v1017 = vld [vmem:[%s607 + $0x38] sm:$0xff]
        %v1018 = vld [vmem:[%s607 + $0x40] sm:$0xff]
        %v1019 = vld [vmem:[%s607 + $0x48] sm:$0xff]
        %v1020 = vld [vmem:[%s607 + $0x50] sm:$0xff]
        %v1021 = vld [vmem:[%s607 + $0x58] sm:$0xff]
        %v1022 = vld [vmem:[%s607 + $0x60] sm:$0xff]
        %v1023 = vld [vmem:[%s607 + $0x68] sm:$0xff]
        %v1024 = vld [vmem:[%s607 + $0x70] sm:$0xff]
        %v1025 = vld [vmem:[%s607 + $0x78] sm:$0xff]
        %v1026 = vld [vmem:[%s607 + $0x80] sm:$0xff]
        %v1027 = vld [vmem:[%s607 + $0x88] sm:$0xff]
        %v1028 = vld [vmem:[%s607 + $0x90] sm:$0xff]
        %v1029 = vld [vmem:[%s607 + $0x98] sm:$0xff]
        %v1030 = vld [vmem:[%s607 + $0xa0] sm:$0xff]
        %v1031 = vld [vmem:[%s607 + $0xa8] sm:$0xff]
        %v1032 = vld [vmem:[%s607 + $0xb0] sm:$0xff]
        %v1033 = vld [vmem:[%s607 + $0xb8] sm:$0xff]
        %v1034 = vld [vmem:[%s607 + $0xc0] sm:$0xff]
        %v1035 = vld [vmem:[%s607 + $0xc8] sm:$0xff]
        %v1036 = vld [vmem:[%s607 + $0xd0] sm:$0xff]
        %v1037 = vld [vmem:[%s607 + $0xd8] sm:$0xff]
        %v1038 = vld [vmem:[%s607 + $0xe0] sm:$0xff]
        %v1039 = vld [vmem:[%s607 + $0xe8] sm:$0xff]
        %v1040 = vld [vmem:[%s607 + $0xf0] sm:$0xff]
        %v1041 = vld [vmem:[%s607 + $0xf8] sm:$0xff]
        %v1042 = vld [vmem:[%s607 + $0x100] sm:$0xff]
        %v1043 = vld [vmem:[%s607 + $0x108] sm:$0xff]
        %v1044 = vld [vmem:[%s607 + $0x110] sm:$0xff]
        %v1045 = vld [vmem:[%s607 + $0x118] sm:$0xff]
        %v1046 = vld [vmem:[%s607 + $0x120] sm:$0xff]
        %v1047 = vld [vmem:[%s607 + $0x128] sm:$0xff]
        %v1048 = vld [vmem:[%s607 + $0x130] sm:$0xff]
        %v1049 = vld [vmem:[%s607 + $0x138] sm:$0xff]
        %v1050 = vld [vmem:[%s607 + $0x140] sm:$0xff]
        %v1051 = vld [vmem:[%s607 + $0x148] sm:$0xff]
        %v1052 = vld [vmem:[%s607 + $0x150] sm:$0xff]
        %v1053 = vld [vmem:[%s607 + $0x158] sm:$0xff]
        %v1054 = vld [vmem:[%s607 + $0x160] sm:$0xff]
        %v1055 = vld [vmem:[%s607 + $0x168] sm:$0xff]
        %v1056 = vld [vmem:[%s607 + $0x170] sm:$0xff]
        %v1057 = vld [vmem:[%s607 + $0x178] sm:$0xff]
        %v1058 = vld [vmem:[%s607 + $0x180] sm:$0xff]
        %v1059 = vld [vmem:[%s607 + $0x188] sm:$0xff]
        %v1060 = vld [vmem:[%s607 + $0x190] sm:$0xff]
        %v1061 = vld [vmem:[%s607 + $0x198] sm:$0xff]
        %v1062 = vld [vmem:[%s607 + $0x1a0] sm:$0xff]
        %v1063 = vld [vmem:[%s607 + $0x1a8] sm:$0xff]
        %v1064 = vld [vmem:[%s607 + $0x1b0] sm:$0xff]
        %v1065 = vld [vmem:[%s607 + $0x1b8] sm:$0xff]
        %v1066 = vld [vmem:[%s607 + $0x1c0] sm:$0xff]
        %v1067 = vld [vmem:[%s607 + $0x1c8] sm:$0xff]
        %v1068 = vld [vmem:[%s607 + $0x1d0] sm:$0xff]
        %v1069 = vld [vmem:[%s607 + $0x1d8] sm:$0xff]
        %v1070 = vld [vmem:[%s607 + $0x1e0] sm:$0xff]
        %v1071 = vld [vmem:[%s607 + $0x1e8] sm:$0xff]
        %v1072 = vld [vmem:[%s607 + $0x1f0] sm:$0xff]
        %v1073 = vld [vmem:[%s607 + $0x1f8] sm:$0xff]
        %v1074 = vld [vmem:[%s632] sm:$0x3]
        %1076 = vset.pattern.permute.xlu0 0
        %1077 = vperm.xlu0 %1076, %v1010
        %v1078 = vpop.permute.xlu0 %1077
        %1081 = vset.pattern.permute.xlu0 0
        %1082 = vperm.xlu0 %1081, %v1011
        %v1083 = vpop.permute.xlu0 %1082
        %1086 = vset.pattern.permute.xlu0 0
        %1087 = vperm.xlu0 %1086, %v1012
        %v1088 = vpop.permute.xlu0 %1087
        %1091 = vset.pattern.permute.xlu0 0
        %1092 = vperm.xlu0 %1091, %v1013
        %v1093 = vpop.permute.xlu0 %1092
        %1096 = vset.pattern.permute.xlu0 0
        %1097 = vperm.xlu0 %1096, %v1014
        %v1098 = vpop.permute.xlu0 %1097
        %1101 = vset.pattern.permute.xlu0 0
        %1102 = vperm.xlu0 %1101, %v1015
        %v1103 = vpop.permute.xlu0 %1102
        %1106 = vset.pattern.permute.xlu0 0
        %1107 = vperm.xlu0 %1106, %v1016
        %v1108 = vpop.permute.xlu0 %1107
        %1111 = vset.pattern.permute.xlu0 0
        %1112 = vperm.xlu0 %1111, %v1017
        %v1113 = vpop.permute.xlu0 %1112
        %1116 = vset.pattern.permute.xlu0 0
        %1117 = vperm.xlu0 %1116, %v1018
        %v1118 = vpop.permute.xlu0 %1117
        %1121 = vset.pattern.permute.xlu0 0
        %1122 = vperm.xlu0 %1121, %v1019
        %v1123 = vpop.permute.xlu0 %1122
        %1126 = vset.pattern.permute.xlu0 0
        %1127 = vperm.xlu0 %1126, %v1020
        %v1128 = vpop.permute.xlu0 %1127
        %1131 = vset.pattern.permute.xlu0 0
        %1132 = vperm.xlu0 %1131, %v1021
        %v1133 = vpop.permute.xlu0 %1132
        %1136 = vset.pattern.permute.xlu0 0
        %1137 = vperm.xlu0 %1136, %v1022
        %v1138 = vpop.permute.xlu0 %1137
        %1141 = vset.pattern.permute.xlu0 0
        %1142 = vperm.xlu0 %1141, %v1023
        %v1143 = vpop.permute.xlu0 %1142
        %1146 = vset.pattern.permute.xlu0 0
        %1147 = vperm.xlu0 %1146, %v1024
        %v1148 = vpop.permute.xlu0 %1147
        %1151 = vset.pattern.permute.xlu0 0
        %1152 = vperm.xlu0 %1151, %v1025
        %v1153 = vpop.permute.xlu0 %1152
        %1156 = vset.pattern.permute.xlu0 0
        %1157 = vperm.xlu0 %1156, %v1026
        %v1158 = vpop.permute.xlu0 %1157
        %1161 = vset.pattern.permute.xlu0 0
        %1162 = vperm.xlu0 %1161, %v1027
        %v1163 = vpop.permute.xlu0 %1162
        %1166 = vset.pattern.permute.xlu0 0
        %1167 = vperm.xlu0 %1166, %v1028
        %v1168 = vpop.permute.xlu0 %1167
        %1171 = vset.pattern.permute.xlu0 0
        %1172 = vperm.xlu0 %1171, %v1029
        %v1173 = vpop.permute.xlu0 %1172
        %1176 = vset.pattern.permute.xlu0 0
        %1177 = vperm.xlu0 %1176, %v1030
        %v1178 = vpop.permute.xlu0 %1177
        %1181 = vset.pattern.permute.xlu0 0
        %1182 = vperm.xlu0 %1181, %v1031
        %v1183 = vpop.permute.xlu0 %1182
        %1186 = vset.pattern.permute.xlu0 0
        %1187 = vperm.xlu0 %1186, %v1032
        %v1188 = vpop.permute.xlu0 %1187
        %1191 = vset.pattern.permute.xlu0 0
        %1192 = vperm.xlu0 %1191, %v1033
        %v1193 = vpop.permute.xlu0 %1192
        %1196 = vset.pattern.permute.xlu0 0
        %1197 = vperm.xlu0 %1196, %v1034
        %v1198 = vpop.permute.xlu0 %1197
        %1201 = vset.pattern.permute.xlu0 0
        %1202 = vperm.xlu0 %1201, %v1035
        %v1203 = vpop.permute.xlu0 %1202
        %1206 = vset.pattern.permute.xlu0 0
        %1207 = vperm.xlu0 %1206, %v1036
        %v1208 = vpop.permute.xlu0 %1207
        %1211 = vset.pattern.permute.xlu0 0
        %1212 = vperm.xlu0 %1211, %v1037
        %v1213 = vpop.permute.xlu0 %1212
        %1216 = vset.pattern.permute.xlu0 0
        %1217 = vperm.xlu0 %1216, %v1038
        %v1218 = vpop.permute.xlu0 %1217
        %1221 = vset.pattern.permute.xlu0 0
        %1222 = vperm.xlu0 %1221, %v1039
        %v1223 = vpop.permute.xlu0 %1222
        %1226 = vset.pattern.permute.xlu0 0
        %1227 = vperm.xlu0 %1226, %v1040
        %v1228 = vpop.permute.xlu0 %1227
        %1231 = vset.pattern.permute.xlu0 0
        %1232 = vperm.xlu0 %1231, %v1041
        %v1233 = vpop.permute.xlu0 %1232
        %1236 = vset.pattern.permute.xlu0 0
        %1237 = vperm.xlu0 %1236, %v1042
        %v1238 = vpop.permute.xlu0 %1237
        %1241 = vset.pattern.permute.xlu0 0
        %1242 = vperm.xlu0 %1241, %v1043
        %v1243 = vpop.permute.xlu0 %1242
        %1246 = vset.pattern.permute.xlu0 0
        %1247 = vperm.xlu0 %1246, %v1044
        %v1248 = vpop.permute.xlu0 %1247
        %1251 = vset.pattern.permute.xlu0 0
        %1252 = vperm.xlu0 %1251, %v1045
        %v1253 = vpop.permute.xlu0 %1252
        %1256 = vset.pattern.permute.xlu0 0
        %1257 = vperm.xlu0 %1256, %v1046
        %v1258 = vpop.permute.xlu0 %1257
        %1261 = vset.pattern.permute.xlu0 0
        %1262 = vperm.xlu0 %1261, %v1047
        %v1263 = vpop.permute.xlu0 %1262
        %1266 = vset.pattern.permute.xlu0 0
        %1267 = vperm.xlu0 %1266, %v1048
        %v1268 = vpop.permute.xlu0 %1267
        %1271 = vset.pattern.permute.xlu0 0
        %1272 = vperm.xlu0 %1271, %v1049
        %v1273 = vpop.permute.xlu0 %1272
        %1276 = vset.pattern.permute.xlu0 0
        %1277 = vperm.xlu0 %1276, %v1050
        %v1278 = vpop.permute.xlu0 %1277
        %1281 = vset.pattern.permute.xlu0 0
        %1282 = vperm.xlu0 %1281, %v1051
        %v1283 = vpop.permute.xlu0 %1282
        %1286 = vset.pattern.permute.xlu0 0
        %1287 = vperm.xlu0 %1286, %v1052
        %v1288 = vpop.permute.xlu0 %1287
        %1291 = vset.pattern.permute.xlu0 0
        %1292 = vperm.xlu0 %1291, %v1053
        %v1293 = vpop.permute.xlu0 %1292
        %1296 = vset.pattern.permute.xlu0 0
        %1297 = vperm.xlu0 %1296, %v1054
        %v1298 = vpop.permute.xlu0 %1297
        %1301 = vset.pattern.permute.xlu0 0
        %1302 = vperm.xlu0 %1301, %v1055
        %v1303 = vpop.permute.xlu0 %1302
        %1306 = vset.pattern.permute.xlu0 0
        %1307 = vperm.xlu0 %1306, %v1056
        %v1308 = vpop.permute.xlu0 %1307
        %1311 = vset.pattern.permute.xlu0 0
        %1312 = vperm.xlu0 %1311, %v1057
        %v1313 = vpop.permute.xlu0 %1312
        %1316 = vset.pattern.permute.xlu0 0
        %1317 = vperm.xlu0 %1316, %v1058
        %v1318 = vpop.permute.xlu0 %1317
        %1321 = vset.pattern.permute.xlu0 0
        %1322 = vperm.xlu0 %1321, %v1059
        %v1323 = vpop.permute.xlu0 %1322
        %1326 = vset.pattern.permute.xlu0 0
        %1327 = vperm.xlu0 %1326, %v1060
        %v1328 = vpop.permute.xlu0 %1327
        %1331 = vset.pattern.permute.xlu0 0
        %1332 = vperm.xlu0 %1331, %v1061
        %v1333 = vpop.permute.xlu0 %1332
        %1336 = vset.pattern.permute.xlu0 0
        %1337 = vperm.xlu0 %1336, %v1062
        %v1338 = vpop.permute.xlu0 %1337
        %1341 = vset.pattern.permute.xlu0 0
        %1342 = vperm.xlu0 %1341, %v1063
        %v1343 = vpop.permute.xlu0 %1342
        %1346 = vset.pattern.permute.xlu0 0
        %1347 = vperm.xlu0 %1346, %v1064
        %v1348 = vpop.permute.xlu0 %1347
        %1351 = vset.pattern.permute.xlu0 0
        %1352 = vperm.xlu0 %1351, %v1065
        %v1353 = vpop.permute.xlu0 %1352
        %1356 = vset.pattern.permute.xlu0 0
        %1357 = vperm.xlu0 %1356, %v1066
        %v1358 = vpop.permute.xlu0 %1357
        %1361 = vset.pattern.permute.xlu0 0
        %1362 = vperm.xlu0 %1361, %v1067
        %v1363 = vpop.permute.xlu0 %1362
        %1366 = vset.pattern.permute.xlu0 0
        %1367 = vperm.xlu0 %1366, %v1068
        %v1368 = vpop.permute.xlu0 %1367
        %1371 = vset.pattern.permute.xlu0 0
        %1372 = vperm.xlu0 %1371, %v1069
        %v1373 = vpop.permute.xlu0 %1372
        %1376 = vset.pattern.permute.xlu0 0
        %1377 = vperm.xlu0 %1376, %v1070
        %v1378 = vpop.permute.xlu0 %1377
        %1381 = vset.pattern.permute.xlu0 0
        %1382 = vperm.xlu0 %1381, %v1071
        %v1383 = vpop.permute.xlu0 %1382
        %1386 = vset.pattern.permute.xlu0 0
        %1387 = vperm.xlu0 %1386, %v1072
        %v1388 = vpop.permute.xlu0 %1387
        %1391 = vset.pattern.permute.xlu0 0
        %1392 = vperm.xlu0 %1391, %v1073
        %v1393 = vpop.permute.xlu0 %1392
        %v1396 = vlaneseq
        %v1397 = vshrl.u32 %v1396, 7
        %v1398 = vsub.s32 0, %v1397
        %v1399 = vrot.slane %v1074, %v1398
        %v1400 = vlaneseq
        %v1401 = vshrl.u32 %v1400, 7
        %v1402 = vsub.s32 1, %v1401
        %v1403 = vrot.slane %v1074, %v1402
        %v1406 = vmul.f32 %v1078, %v1399
        %v1407 = vmul.f32 %v1078, %v1403
        %v1408 = vmul.f32 %v1083, %v1399
        %v1409 = vmul.f32 %v1083, %v1403
        %v1410 = vmul.f32 %v1088, %v1399
        %v1411 = vmul.f32 %v1088, %v1403
        %v1412 = vmul.f32 %v1093, %v1399
        %v1413 = vmul.f32 %v1093, %v1403
        %v1414 = vmul.f32 %v1098, %v1399
        %v1415 = vmul.f32 %v1098, %v1403
        %v1416 = vmul.f32 %v1103, %v1399
        %v1417 = vmul.f32 %v1103, %v1403
        %v1418 = vmul.f32 %v1108, %v1399
        %v1419 = vmul.f32 %v1108, %v1403
        %v1420 = vmul.f32 %v1113, %v1399
        %v1421 = vmul.f32 %v1113, %v1403
        %v1422 = vmul.f32 %v1118, %v1399
        %v1423 = vmul.f32 %v1118, %v1403
        %v1424 = vmul.f32 %v1123, %v1399
        %v1425 = vmul.f32 %v1123, %v1403
        %v1426 = vmul.f32 %v1128, %v1399
        %v1427 = vmul.f32 %v1128, %v1403
        %v1428 = vmul.f32 %v1133, %v1399
        %v1429 = vmul.f32 %v1133, %v1403
        %v1430 = vmul.f32 %v1138, %v1399
        %v1431 = vmul.f32 %v1138, %v1403
        %v1432 = vmul.f32 %v1143, %v1399
        %v1433 = vmul.f32 %v1143, %v1403
        %v1434 = vmul.f32 %v1148, %v1399
        %v1435 = vmul.f32 %v1148, %v1403
        %v1436 = vmul.f32 %v1153, %v1399
        %v1437 = vmul.f32 %v1153, %v1403
        %v1438 = vmul.f32 %v1158, %v1399
        %v1439 = vmul.f32 %v1158, %v1403
        %v1440 = vmul.f32 %v1163, %v1399
        %v1441 = vmul.f32 %v1163, %v1403
        %v1442 = vmul.f32 %v1168, %v1399
        %v1443 = vmul.f32 %v1168, %v1403
        %v1444 = vmul.f32 %v1173, %v1399
        %v1445 = vmul.f32 %v1173, %v1403
        %v1446 = vmul.f32 %v1178, %v1399
        %v1447 = vmul.f32 %v1178, %v1403
        %v1448 = vmul.f32 %v1183, %v1399
        %v1449 = vmul.f32 %v1183, %v1403
        %v1450 = vmul.f32 %v1188, %v1399
        %v1451 = vmul.f32 %v1188, %v1403
        %v1452 = vmul.f32 %v1193, %v1399
        %v1453 = vmul.f32 %v1193, %v1403
        %v1454 = vmul.f32 %v1198, %v1399
        %v1455 = vmul.f32 %v1198, %v1403
        %v1456 = vmul.f32 %v1203, %v1399
        %v1457 = vmul.f32 %v1203, %v1403
        %v1458 = vmul.f32 %v1208, %v1399
        %v1459 = vmul.f32 %v1208, %v1403
        %v1460 = vmul.f32 %v1213, %v1399
        %v1461 = vmul.f32 %v1213, %v1403
        %v1462 = vmul.f32 %v1218, %v1399
        %v1463 = vmul.f32 %v1218, %v1403
        %v1464 = vmul.f32 %v1223, %v1399
        %v1465 = vmul.f32 %v1223, %v1403
        %v1466 = vmul.f32 %v1228, %v1399
        %v1467 = vmul.f32 %v1228, %v1403
        %v1468 = vmul.f32 %v1233, %v1399
        %v1469 = vmul.f32 %v1233, %v1403
        %v1470 = vmul.f32 %v1238, %v1399
        %v1471 = vmul.f32 %v1238, %v1403
        %v1472 = vmul.f32 %v1243, %v1399
        %v1473 = vmul.f32 %v1243, %v1403
        %v1474 = vmul.f32 %v1248, %v1399
        %v1475 = vmul.f32 %v1248, %v1403
        %v1476 = vmul.f32 %v1253, %v1399
        %v1477 = vmul.f32 %v1253, %v1403
        %v1478 = vmul.f32 %v1258, %v1399
        %v1479 = vmul.f32 %v1258, %v1403
        %v1480 = vmul.f32 %v1263, %v1399
        %v1481 = vmul.f32 %v1263, %v1403
        %v1482 = vmul.f32 %v1268, %v1399
        %v1483 = vmul.f32 %v1268, %v1403
        %v1484 = vmul.f32 %v1273, %v1399
        %v1485 = vmul.f32 %v1273, %v1403
        %v1486 = vmul.f32 %v1278, %v1399
        %v1487 = vmul.f32 %v1278, %v1403
        %v1488 = vmul.f32 %v1283, %v1399
        %v1489 = vmul.f32 %v1283, %v1403
        %v1490 = vmul.f32 %v1288, %v1399
        %v1491 = vmul.f32 %v1288, %v1403
        %v1492 = vmul.f32 %v1293, %v1399
        %v1493 = vmul.f32 %v1293, %v1403
        %v1494 = vmul.f32 %v1298, %v1399
        %v1495 = vmul.f32 %v1298, %v1403
        %v1496 = vmul.f32 %v1303, %v1399
        %v1497 = vmul.f32 %v1303, %v1403
        %v1498 = vmul.f32 %v1308, %v1399
        %v1499 = vmul.f32 %v1308, %v1403
        %v1500 = vmul.f32 %v1313, %v1399
        %v1501 = vmul.f32 %v1313, %v1403
        %v1502 = vmul.f32 %v1318, %v1399
        %v1503 = vmul.f32 %v1318, %v1403
        %v1504 = vmul.f32 %v1323, %v1399
        %v1505 = vmul.f32 %v1323, %v1403
        %v1506 = vmul.f32 %v1328, %v1399
        %v1507 = vmul.f32 %v1328, %v1403
        %v1508 = vmul.f32 %v1333, %v1399
        %v1509 = vmul.f32 %v1333, %v1403
        %v1510 = vmul.f32 %v1338, %v1399
        %v1511 = vmul.f32 %v1338, %v1403
        %v1512 = vmul.f32 %v1343, %v1399
        %v1513 = vmul.f32 %v1343, %v1403
        %v1514 = vmul.f32 %v1348, %v1399
        %v1515 = vmul.f32 %v1348, %v1403
        %v1516 = vmul.f32 %v1353, %v1399
        %v1517 = vmul.f32 %v1353, %v1403
        %v1518 = vmul.f32 %v1358, %v1399
        %v1519 = vmul.f32 %v1358, %v1403
        %v1520 = vmul.f32 %v1363, %v1399
        %v1521 = vmul.f32 %v1363, %v1403
        %v1522 = vmul.f32 %v1368, %v1399
        %v1523 = vmul.f32 %v1368, %v1403
        %v1524 = vmul.f32 %v1373, %v1399
        %v1525 = vmul.f32 %v1373, %v1403
        %v1526 = vmul.f32 %v1378, %v1399
        %v1527 = vmul.f32 %v1378, %v1403
        %v1528 = vmul.f32 %v1383, %v1399
        %v1529 = vmul.f32 %v1383, %v1403
        %v1530 = vmul.f32 %v1388, %v1399
        %v1531 = vmul.f32 %v1388, %v1403
        %v1532 = vmul.f32 %v1393, %v1399
        %v1533 = vmul.f32 %v1393, %v1403
        %v1598 = vunpack.c.l.b16 %v942
        %v1599 = vunpack.c.l.b16 %v943
        %v1600 = vunpack.c.l.b16 %v944
        %v1601 = vunpack.c.l.b16 %v945
        %v1602 = vunpack.c.l.b16 %v946
        %v1603 = vunpack.c.l.b16 %v947
        %v1604 = vunpack.c.l.b16 %v948
        %v1605 = vunpack.c.l.b16 %v949
        %v1606 = vunpack.c.l.b16 %v950
        %v1607 = vunpack.c.l.b16 %v951
        %v1608 = vunpack.c.l.b16 %v952
        %v1609 = vunpack.c.l.b16 %v953
        %v1610 = vunpack.c.l.b16 %v954
        %v1611 = vunpack.c.l.b16 %v955
        %v1612 = vunpack.c.l.b16 %v956
        %v1613 = vunpack.c.l.b16 %v957
        %v1614 = vunpack.c.l.b16 %v958
        %v1615 = vunpack.c.l.b16 %v959
        %v1616 = vunpack.c.l.b16 %v960
        %v1617 = vunpack.c.l.b16 %v961
        %v1618 = vunpack.c.l.b16 %v962
        %v1619 = vunpack.c.l.b16 %v963
        %v1620 = vunpack.c.l.b16 %v964
        %v1621 = vunpack.c.l.b16 %v965
        %v1622 = vunpack.c.l.b16 %v966
        %v1623 = vunpack.c.l.b16 %v967
        %v1624 = vunpack.c.l.b16 %v968
        %v1625 = vunpack.c.l.b16 %v969
        %v1626 = vunpack.c.l.b16 %v970
        %v1627 = vunpack.c.l.b16 %v971
        %v1628 = vunpack.c.l.b16 %v972
        %v1629 = vunpack.c.l.b16 %v973
        %v1630 = vunpack.c.l.b16 %v974
        %v1631 = vunpack.c.l.b16 %v975
        %v1632 = vunpack.c.l.b16 %v976
        %v1633 = vunpack.c.l.b16 %v977
        %v1634 = vunpack.c.l.b16 %v978
        %v1635 = vunpack.c.l.b16 %v979
        %v1636 = vunpack.c.l.b16 %v980
        %v1637 = vunpack.c.l.b16 %v981
        %v1638 = vunpack.c.l.b16 %v982
        %v1639 = vunpack.c.l.b16 %v983
        %v1640 = vunpack.c.l.b16 %v984
        %v1641 = vunpack.c.l.b16 %v985
        %v1642 = vunpack.c.l.b16 %v986
        %v1643 = vunpack.c.l.b16 %v987
        %v1644 = vunpack.c.l.b16 %v988
        %v1645 = vunpack.c.l.b16 %v989
        %v1646 = vunpack.c.l.b16 %v990
        %v1647 = vunpack.c.l.b16 %v991
        %v1648 = vunpack.c.l.b16 %v992
        %v1649 = vunpack.c.l.b16 %v993
        %v1650 = vunpack.c.l.b16 %v994
        %v1651 = vunpack.c.l.b16 %v995
        %v1652 = vunpack.c.l.b16 %v996
        %v1653 = vunpack.c.l.b16 %v997
        %v1654 = vunpack.c.l.b16 %v998
        %v1655 = vunpack.c.l.b16 %v999
        %v1656 = vunpack.c.l.b16 %v1000
        %v1657 = vunpack.c.l.b16 %v1001
        %v1658 = vunpack.c.l.b16 %v1002
        %v1659 = vunpack.c.l.b16 %v1003
        %v1660 = vunpack.c.l.b16 %v1004
        %v1661 = vunpack.c.l.b16 %v1005
        %v1662 = vpack.c.b16 %v1599, %v1598
        %v1663 = vpack.c.b16 %v1601, %v1600
        %v1664 = vpack.c.b16 %v1603, %v1602
        %v1665 = vpack.c.b16 %v1605, %v1604
        %v1666 = vpack.c.b16 %v1607, %v1606
        %v1667 = vpack.c.b16 %v1609, %v1608
        %v1668 = vpack.c.b16 %v1611, %v1610
        %v1669 = vpack.c.b16 %v1613, %v1612
        %v1670 = vpack.c.b16 %v1615, %v1614
        %v1671 = vpack.c.b16 %v1617, %v1616
        %v1672 = vpack.c.b16 %v1619, %v1618
        %v1673 = vpack.c.b16 %v1621, %v1620
        %v1674 = vpack.c.b16 %v1623, %v1622
        %v1675 = vpack.c.b16 %v1625, %v1624
        %v1676 = vpack.c.b16 %v1627, %v1626
        %v1677 = vpack.c.b16 %v1629, %v1628
        %v1678 = vpack.c.b16 %v1631, %v1630
        %v1679 = vpack.c.b16 %v1633, %v1632
        %v1680 = vpack.c.b16 %v1635, %v1634
        %v1681 = vpack.c.b16 %v1637, %v1636
        %v1682 = vpack.c.b16 %v1639, %v1638
        %v1683 = vpack.c.b16 %v1641, %v1640
        %v1684 = vpack.c.b16 %v1643, %v1642
        %v1685 = vpack.c.b16 %v1645, %v1644
        %v1686 = vpack.c.b16 %v1647, %v1646
        %v1687 = vpack.c.b16 %v1649, %v1648
        %v1688 = vpack.c.b16 %v1651, %v1650
        %v1689 = vpack.c.b16 %v1653, %v1652
        %v1690 = vpack.c.b16 %v1655, %v1654
        %v1691 = vpack.c.b16 %v1657, %v1656
        %v1692 = vpack.c.b16 %v1659, %v1658
        %v1693 = vpack.c.b16 %v1661, %v1660
        %vm1694 = vcmask 261120
        %v1696 = vsel %vm1694, %v1662, 0
        %v1699 = vsel %vm1694, %v1663, 0
        %v1702 = vsel %vm1694, %v1664, 0
        %v1705 = vsel %vm1694, %v1665, 0
        %v1708 = vsel %vm1694, %v1666, 0
        %v1711 = vsel %vm1694, %v1667, 0
        %v1714 = vsel %vm1694, %v1668, 0
        %v1717 = vsel %vm1694, %v1669, 0
        %v1720 = vsel %vm1694, %v1670, 0
        %v1723 = vsel %vm1694, %v1671, 0
        %v1726 = vsel %vm1694, %v1672, 0
        %v1729 = vsel %vm1694, %v1673, 0
        %v1732 = vsel %vm1694, %v1674, 0
        %v1735 = vsel %vm1694, %v1675, 0
        %v1738 = vsel %vm1694, %v1676, 0
        %v1741 = vsel %vm1694, %v1677, 0
        %v1744 = vsel %vm1694, %v1678, 0
        %v1747 = vsel %vm1694, %v1679, 0
        %v1750 = vsel %vm1694, %v1680, 0
        %v1753 = vsel %vm1694, %v1681, 0
        %v1756 = vsel %vm1694, %v1682, 0
        %v1759 = vsel %vm1694, %v1683, 0
        %v1762 = vsel %vm1694, %v1684, 0
        %v1765 = vsel %vm1694, %v1685, 0
        %v1768 = vsel %vm1694, %v1686, 0
        %v1771 = vsel %vm1694, %v1687, 0
        %v1774 = vsel %vm1694, %v1688, 0
        %v1777 = vsel %vm1694, %v1689, 0
        %v1780 = vsel %vm1694, %v1690, 0
        %v1783 = vsel %vm1694, %v1691, 0
        %v1786 = vsel %vm1694, %v1692, 0
        %v1789 = vsel %vm1694, %v1693, 0
        %1791 = vmatprep.subr.bf16.mxu0 %v1007
        %1792 = vmatpush1.bf16.msra.mxu0 %v1006
        %1793 = vmatprep.subr.bf16.mxu0 %v1009
        %1794 = vmatpush1.bf16.msra.mxu0 %v1008
        %1795 = vmatprep.subr.bf16.mxu0 0
        %1796 = vmatpush1.bf16.msra.mxu0 0
        %1797 = vmatprep.subr.bf16.mxu0 0
        %1798 = vmatpush1.bf16.msra.mxu0 0
        %1799 = vmatprep.subr.bf16.mxu0 0
        %1800 = vmatpush1.bf16.msra.mxu0 0
        %1801 = vmatprep.subr.bf16.mxu0 0
        %1802 = vmatpush1.bf16.msra.mxu0 0
        %1803 = vmatprep.subr.bf16.mxu0 0
        %1804 = vmatpush1.bf16.msra.mxu0 0
        %1805 = vmatprep.subr.bf16.mxu0 0
        %1806 = vmatpush1.bf16.msra.mxu0 0
        %1807 = vmatprep.subr.bf16.mxu0 0
        %1808 = vmatpush1.bf16.msra.mxu0 0
        %1809 = vmatprep.subr.bf16.mxu0 0
        %1810 = vmatpush1.bf16.msra.mxu0 0
        %1811 = vmatprep.subr.bf16.mxu0 0
        %1812 = vmatpush1.bf16.msra.mxu0 0
        %1813 = vmatprep.subr.bf16.mxu0 0
        %1814 = vmatpush1.bf16.msra.mxu0 0
        %1815 = vmatprep.subr.bf16.mxu0 0
        %1816 = vmatpush1.bf16.msra.mxu0 0
        %1817 = vmatprep.subr.bf16.mxu0 0
        %1818 = vmatpush1.bf16.msra.mxu0 0
        %1819 = vmatprep.subr.bf16.mxu0 0
        %1820 = vmatpush1.bf16.msra.mxu0 0
        %1821 = vmatprep.subr.bf16.mxu0 0
        %1822 = vmatpush1.bf16.msra.mxu0 0
        %1823 = vmatprep.mubr.bf16.mxu0 0
        %1824 = vmatmul.mubr.bf16.gmra.mrb[0].mxu0 %v1696
        %v1825 = vpop.f32.mrb[0].mxu0
        %v1826 = vadd.f32 %v1406, %v1825
        %v1827 = vpop.f32.mrb[0].mxu0
        %v1828 = vadd.f32 %v1407, %v1827
        %v1829 = vpop.f32.mrb[0].mxu0
        %v1830 = vadd.f32 %v1408, %v1829
        %v1831 = vpop.f32.mrb[0].mxu0
        %v1832 = vadd.f32 %v1409, %v1831
        %1833 = vmatprep.mubr.bf16.mxu0 0
        %1834 = vmatmul.mubr.bf16.gmra.mrb[0].mxu0 %v1699
        %v1835 = vpop.f32.mrb[0].mxu0
        %v1836 = vadd.f32 %v1410, %v1835
        %v1837 = vpop.f32.mrb[0].mxu0
        %v1838 = vadd.f32 %v1411, %v1837
        %v1839 = vpop.f32.mrb[0].mxu0
        %v1840 = vadd.f32 %v1412, %v1839
        %v1841 = vpop.f32.mrb[0].mxu0
        %v1842 = vadd.f32 %v1413, %v1841
        %1843 = vmatprep.mubr.bf16.mxu0 0
        %1844 = vmatmul.mubr.bf16.gmra.mrb[0].mxu0 %v1702
        %v1845 = vpop.f32.mrb[0].mxu0
        %v1846 = vadd.f32 %v1414, %v1845
        %v1847 = vpop.f32.mrb[0].mxu0
        %v1848 = vadd.f32 %v1415, %v1847
        %v1849 = vpop.f32.mrb[0].mxu0
        %v1850 = vadd.f32 %v1416, %v1849
        %v1851 = vpop.f32.mrb[0].mxu0
        %v1852 = vadd.f32 %v1417, %v1851
        %1853 = vmatprep.mubr.bf16.mxu0 0
        %1854 = vmatmul.mubr.bf16.gmra.mrb[0].mxu0 %v1705
        %v1855 = vpop.f32.mrb[0].mxu0
        %v1856 = vadd.f32 %v1418, %v1855
        %v1857 = vpop.f32.mrb[0].mxu0
        %v1858 = vadd.f32 %v1419, %v1857
        %v1859 = vpop.f32.mrb[0].mxu0
        %v1860 = vadd.f32 %v1420, %v1859
        %v1861 = vpop.f32.mrb[0].mxu0
        %v1862 = vadd.f32 %v1421, %v1861
        %1863 = vmatprep.mubr.bf16.mxu0 0
        %1864 = vmatmul.mubr.bf16.gmra.mrb[0].mxu0 %v1708
        %v1865 = vpop.f32.mrb[0].mxu0
        %v1866 = vadd.f32 %v1422, %v1865
        %v1867 = vpop.f32.mrb[0].mxu0
        %v1868 = vadd.f32 %v1423, %v1867
        %v1869 = vpop.f32.mrb[0].mxu0
        %v1870 = vadd.f32 %v1424, %v1869
        %v1871 = vpop.f32.mrb[0].mxu0
        %v1872 = vadd.f32 %v1425, %v1871
        %1873 = vmatprep.mubr.bf16.mxu0 0
        %1874 = vmatmul.mubr.bf16.gmra.mrb[0].mxu0 %v1711
        %v1875 = vpop.f32.mrb[0].mxu0
        %v1876 = vadd.f32 %v1426, %v1875
        %v1877 = vpop.f32.mrb[0].mxu0
        %v1878 = vadd.f32 %v1427, %v1877
        %v1879 = vpop.f32.mrb[0].mxu0
        %v1880 = vadd.f32 %v1428, %v1879
        %v1881 = vpop.f32.mrb[0].mxu0
        %v1882 = vadd.f32 %v1429, %v1881
        %1883 = vmatprep.mubr.bf16.mxu0 0
        %1884 = vmatmul.mubr.bf16.gmra.mrb[0].mxu0 %v1714
        %v1885 = vpop.f32.mrb[0].mxu0
        %v1886 = vadd.f32 %v1430, %v1885
        %v1887 = vpop.f32.mrb[0].mxu0
        %v1888 = vadd.f32 %v1431, %v1887
        %v1889 = vpop.f32.mrb[0].mxu0
        %v1890 = vadd.f32 %v1432, %v1889
        %v1891 = vpop.f32.mrb[0].mxu0
        %v1892 = vadd.f32 %v1433, %v1891
        %1893 = vmatprep.mubr.bf16.mxu0 0
        %1894 = vmatmul.mubr.bf16.gmra.mrb[0].mxu0 %v1717
        %v1895 = vpop.f32.mrb[0].mxu0
        %v1896 = vadd.f32 %v1434, %v1895
        %v1897 = vpop.f32.mrb[0].mxu0
        %v1898 = vadd.f32 %v1435, %v1897
        %v1899 = vpop.f32.mrb[0].mxu0
        %v1900 = vadd.f32 %v1436, %v1899
        %v1901 = vpop.f32.mrb[0].mxu0
        %v1902 = vadd.f32 %v1437, %v1901
        %1903 = vmatprep.mubr.bf16.mxu0 0
        %1904 = vmatmul.mubr.bf16.gmra.mrb[0].mxu0 %v1720
        %v1905 = vpop.f32.mrb[0].mxu0
        %v1906 = vadd.f32 %v1438, %v1905
        %v1907 = vpop.f32.mrb[0].mxu0
        %v1908 = vadd.f32 %v1439, %v1907
        %v1909 = vpop.f32.mrb[0].mxu0
        %v1910 = vadd.f32 %v1440, %v1909
        %v1911 = vpop.f32.mrb[0].mxu0
        %v1912 = vadd.f32 %v1441, %v1911
        %1913 = vmatprep.mubr.bf16.mxu0 0
        %1914 = vmatmul.mubr.bf16.gmra.mrb[0].mxu0 %v1723
        %v1915 = vpop.f32.mrb[0].mxu0
        %v1916 = vadd.f32 %v1442, %v1915
        %v1917 = vpop.f32.mrb[0].mxu0
        %v1918 = vadd.f32 %v1443, %v1917
        %v1919 = vpop.f32.mrb[0].mxu0
        %v1920 = vadd.f32 %v1444, %v1919
        %v1921 = vpop.f32.mrb[0].mxu0
        %v1922 = vadd.f32 %v1445, %v1921
        %1923 = vmatprep.mubr.bf16.mxu0 0
        %1924 = vmatmul.mubr.bf16.gmra.mrb[0].mxu0 %v1726
        %v1925 = vpop.f32.mrb[0].mxu0
        %v1926 = vadd.f32 %v1446, %v1925
        %v1927 = vpop.f32.mrb[0].mxu0
        %v1928 = vadd.f32 %v1447, %v1927
        %v1929 = vpop.f32.mrb[0].mxu0
        %v1930 = vadd.f32 %v1448, %v1929
        %v1931 = vpop.f32.mrb[0].mxu0
        %v1932 = vadd.f32 %v1449, %v1931
        %1933 = vmatprep.mubr.bf16.mxu0 0
        %1934 = vmatmul.mubr.bf16.gmra.mrb[0].mxu0 %v1729
        %v1935 = vpop.f32.mrb[0].mxu0
        %v1936 = vadd.f32 %v1450, %v1935
        %v1937 = vpop.f32.mrb[0].mxu0
        %v1938 = vadd.f32 %v1451, %v1937
        %v1939 = vpop.f32.mrb[0].mxu0
        %v1940 = vadd.f32 %v1452, %v1939
        %v1941 = vpop.f32.mrb[0].mxu0
        %v1942 = vadd.f32 %v1453, %v1941
        %1943 = vmatprep.mubr.bf16.mxu0 0
        %1944 = vmatmul.mubr.bf16.gmra.mrb[0].mxu0 %v1732
        %v1945 = vpop.f32.mrb[0].mxu0
        %v1946 = vadd.f32 %v1454, %v1945
        %v1947 = vpop.f32.mrb[0].mxu0
        %v1948 = vadd.f32 %v1455, %v1947
        %v1949 = vpop.f32.mrb[0].mxu0
        %v1950 = vadd.f32 %v1456, %v1949
        %v1951 = vpop.f32.mrb[0].mxu0
        %v1952 = vadd.f32 %v1457, %v1951
        %1953 = vmatprep.mubr.bf16.mxu0 0
        %1954 = vmatmul.mubr.bf16.gmra.mrb[0].mxu0 %v1735
        %v1955 = vpop.f32.mrb[0].mxu0
        %v1956 = vadd.f32 %v1458, %v1955
        %v1957 = vpop.f32.mrb[0].mxu0
        %v1958 = vadd.f32 %v1459, %v1957
        %v1959 = vpop.f32.mrb[0].mxu0
        %v1960 = vadd.f32 %v1460, %v1959
        %v1961 = vpop.f32.mrb[0].mxu0
        %v1962 = vadd.f32 %v1461, %v1961
        %1963 = vmatprep.mubr.bf16.mxu0 0
        %1964 = vmatmul.mubr.bf16.gmra.mrb[0].mxu0 %v1738
        %v1965 = vpop.f32.mrb[0].mxu0
        %v1966 = vadd.f32 %v1462, %v1965
        %v1967 = vpop.f32.mrb[0].mxu0
        %v1968 = vadd.f32 %v1463, %v1967
        %v1969 = vpop.f32.mrb[0].mxu0
        %v1970 = vadd.f32 %v1464, %v1969
        %v1971 = vpop.f32.mrb[0].mxu0
        %v1972 = vadd.f32 %v1465, %v1971
        %1973 = vmatprep.mubr.bf16.mxu0 0
        %1974 = vmatmul.mubr.bf16.gmra.mrb[0].mxu0 %v1741
        %v1975 = vpop.f32.mrb[0].mxu0
        %v1976 = vadd.f32 %v1466, %v1975
        %v1977 = vpop.f32.mrb[0].mxu0
        %v1978 = vadd.f32 %v1467, %v1977
        %v1979 = vpop.f32.mrb[0].mxu0
        %v1980 = vadd.f32 %v1468, %v1979
        %v1981 = vpop.f32.mrb[0].mxu0
        %v1982 = vadd.f32 %v1469, %v1981
        %1983 = vmatprep.mubr.bf16.mxu0 0
        %1984 = vmatmul.mubr.bf16.gmra.mrb[0].mxu0 %v1744
        %v1985 = vpop.f32.mrb[0].mxu0
        %v1986 = vadd.f32 %v1470, %v1985
        %v1987 = vpop.f32.mrb[0].mxu0
        %v1988 = vadd.f32 %v1471, %v1987
        %v1989 = vpop.f32.mrb[0].mxu0
        %v1990 = vadd.f32 %v1472, %v1989
        %v1991 = vpop.f32.mrb[0].mxu0
        %v1992 = vadd.f32 %v1473, %v1991
        %1993 = vmatprep.mubr.bf16.mxu0 0
        %1994 = vmatmul.mubr.bf16.gmra.mrb[0].mxu0 %v1747
        %v1995 = vpop.f32.mrb[0].mxu0
        %v1996 = vadd.f32 %v1474, %v1995
        %v1997 = vpop.f32.mrb[0].mxu0
        %v1998 = vadd.f32 %v1475, %v1997
        %v1999 = vpop.f32.mrb[0].mxu0
        %v2000 = vadd.f32 %v1476, %v1999
        %v2001 = vpop.f32.mrb[0].mxu0
        %v2002 = vadd.f32 %v1477, %v2001
        %2003 = vmatprep.mubr.bf16.mxu0 0
        %2004 = vmatmul.mubr.bf16.gmra.mrb[0].mxu0 %v1750
        %v2005 = vpop.f32.mrb[0].mxu0
        %v2006 = vadd.f32 %v1478, %v2005
        %v2007 = vpop.f32.mrb[0].mxu0
        %v2008 = vadd.f32 %v1479, %v2007
        %v2009 = vpop.f32.mrb[0].mxu0
        %v2010 = vadd.f32 %v1480, %v2009
        %v2011 = vpop.f32.mrb[0].mxu0
        %v2012 = vadd.f32 %v1481, %v2011
        %2013 = vmatprep.mubr.bf16.mxu0 0
        %2014 = vmatmul.mubr.bf16.gmra.mrb[0].mxu0 %v1753
        %v2015 = vpop.f32.mrb[0].mxu0
        %v2016 = vadd.f32 %v1482, %v2015
        %v2017 = vpop.f32.mrb[0].mxu0
        %v2018 = vadd.f32 %v1483, %v2017
        %v2019 = vpop.f32.mrb[0].mxu0
        %v2020 = vadd.f32 %v1484, %v2019
        %v2021 = vpop.f32.mrb[0].mxu0
        %v2022 = vadd.f32 %v1485, %v2021
        %2023 = vmatprep.mubr.bf16.mxu0 0
        %2024 = vmatmul.mubr.bf16.gmra.mrb[0].mxu0 %v1756
        %v2025 = vpop.f32.mrb[0].mxu0
        %v2026 = vadd.f32 %v1486, %v2025
        %v2027 = vpop.f32.mrb[0].mxu0
        %v2028 = vadd.f32 %v1487, %v2027
        %v2029 = vpop.f32.mrb[0].mxu0
        %v2030 = vadd.f32 %v1488, %v2029
        %v2031 = vpop.f32.mrb[0].mxu0
        %v2032 = vadd.f32 %v1489, %v2031
        %2033 = vmatprep.mubr.bf16.mxu0 0
        %2034 = vmatmul.mubr.bf16.gmra.mrb[0].mxu0 %v1759
        %v2035 = vpop.f32.mrb[0].mxu0
        %v2036 = vadd.f32 %v1490, %v2035
        %v2037 = vpop.f32.mrb[0].mxu0
        %v2038 = vadd.f32 %v1491, %v2037
        %v2039 = vpop.f32.mrb[0].mxu0
        %v2040 = vadd.f32 %v1492, %v2039
        %v2041 = vpop.f32.mrb[0].mxu0
        %v2042 = vadd.f32 %v1493, %v2041
        %2043 = vmatprep.mubr.bf16.mxu0 0
        %2044 = vmatmul.mubr.bf16.gmra.mrb[0].mxu0 %v1762
        %v2045 = vpop.f32.mrb[0].mxu0
        %v2046 = vadd.f32 %v1494, %v2045
        %v2047 = vpop.f32.mrb[0].mxu0
        %v2048 = vadd.f32 %v1495, %v2047
        %v2049 = vpop.f32.mrb[0].mxu0
        %v2050 = vadd.f32 %v1496, %v2049
        %v2051 = vpop.f32.mrb[0].mxu0
        %v2052 = vadd.f32 %v1497, %v2051
        %2053 = vmatprep.mubr.bf16.mxu0 0
        %2054 = vmatmul.mubr.bf16.gmra.mrb[0].mxu0 %v1765
        %v2055 = vpop.f32.mrb[0].mxu0
        %v2056 = vadd.f32 %v1498, %v2055
        %v2057 = vpop.f32.mrb[0].mxu0
        %v2058 = vadd.f32 %v1499, %v2057
        %v2059 = vpop.f32.mrb[0].mxu0
        %v2060 = vadd.f32 %v1500, %v2059
        %v2061 = vpop.f32.mrb[0].mxu0
        %v2062 = vadd.f32 %v1501, %v2061
        %2063 = vmatprep.mubr.bf16.mxu0 0
        %2064 = vmatmul.mubr.bf16.gmra.mrb[0].mxu0 %v1768
        %v2065 = vpop.f32.mrb[0].mxu0
        %v2066 = vadd.f32 %v1502, %v2065
        %v2067 = vpop.f32.mrb[0].mxu0
        %v2068 = vadd.f32 %v1503, %v2067
        %v2069 = vpop.f32.mrb[0].mxu0
        %v2070 = vadd.f32 %v1504, %v2069
        %v2071 = vpop.f32.mrb[0].mxu0
        %v2072 = vadd.f32 %v1505, %v2071
        %2073 = vmatprep.mubr.bf16.mxu0 0
        %2074 = vmatmul.mubr.bf16.gmra.mrb[0].mxu0 %v1771
        %v2075 = vpop.f32.mrb[0].mxu0
        %v2076 = vadd.f32 %v1506, %v2075
        %v2077 = vpop.f32.mrb[0].mxu0
        %v2078 = vadd.f32 %v1507, %v2077
        %v2079 = vpop.f32.mrb[0].mxu0
        %v2080 = vadd.f32 %v1508, %v2079
        %v2081 = vpop.f32.mrb[0].mxu0
        %v2082 = vadd.f32 %v1509, %v2081
        %2083 = vmatprep.mubr.bf16.mxu0 0
        %2084 = vmatmul.mubr.bf16.gmra.mrb[0].mxu0 %v1774
        %v2085 = vpop.f32.mrb[0].mxu0
        %v2086 = vadd.f32 %v1510, %v2085
        %v2087 = vpop.f32.mrb[0].mxu0
        %v2088 = vadd.f32 %v1511, %v2087
        %v2089 = vpop.f32.mrb[0].mxu0
        %v2090 = vadd.f32 %v1512, %v2089
        %v2091 = vpop.f32.mrb[0].mxu0
        %v2092 = vadd.f32 %v1513, %v2091
        %2093 = vmatprep.mubr.bf16.mxu0 0
        %2094 = vmatmul.mubr.bf16.gmra.mrb[0].mxu0 %v1777
        %v2095 = vpop.f32.mrb[0].mxu0
        %v2096 = vadd.f32 %v1514, %v2095
        %v2097 = vpop.f32.mrb[0].mxu0
        %v2098 = vadd.f32 %v1515, %v2097
        %v2099 = vpop.f32.mrb[0].mxu0
        %v2100 = vadd.f32 %v1516, %v2099
        %v2101 = vpop.f32.mrb[0].mxu0
        %v2102 = vadd.f32 %v1517, %v2101
        %2103 = vmatprep.mubr.bf16.mxu0 0
        %2104 = vmatmul.mubr.bf16.gmra.mrb[0].mxu0 %v1780
        %v2105 = vpop.f32.mrb[0].mxu0
        %v2106 = vadd.f32 %v1518, %v2105
        %v2107 = vpop.f32.mrb[0].mxu0
        %v2108 = vadd.f32 %v1519, %v2107
        %v2109 = vpop.f32.mrb[0].mxu0
        %v2110 = vadd.f32 %v1520, %v2109
        %v2111 = vpop.f32.mrb[0].mxu0
        %v2112 = vadd.f32 %v1521, %v2111
        %2113 = vmatprep.mubr.bf16.mxu0 0
        %2114 = vmatmul.mubr.bf16.gmra.mrb[0].mxu0 %v1783
        %v2115 = vpop.f32.mrb[0].mxu0
        %v2116 = vadd.f32 %v1522, %v2115
        %v2117 = vpop.f32.mrb[0].mxu0
        %v2118 = vadd.f32 %v1523, %v2117
        %v2119 = vpop.f32.mrb[0].mxu0
        %v2120 = vadd.f32 %v1524, %v2119
        %v2121 = vpop.f32.mrb[0].mxu0
        %v2122 = vadd.f32 %v1525, %v2121
        %2123 = vmatprep.mubr.bf16.mxu0 0
        %2124 = vmatmul.mubr.bf16.gmra.mrb[0].mxu0 %v1786
        %v2125 = vpop.f32.mrb[0].mxu0
        %v2126 = vadd.f32 %v1526, %v2125
        %v2127 = vpop.f32.mrb[0].mxu0
        %v2128 = vadd.f32 %v1527, %v2127
        %v2129 = vpop.f32.mrb[0].mxu0
        %v2130 = vadd.f32 %v1528, %v2129
        %v2131 = vpop.f32.mrb[0].mxu0
        %v2132 = vadd.f32 %v1529, %v2131
        %2133 = vmatprep.mubr.bf16.mxu0 0
        %2134 = vmatmul.mubr.bf16.gmra.mrb[0].mxu0 %v1789
        %v2135 = vpop.f32.mrb[0].mxu0
        %v2136 = vadd.f32 %v1530, %v2135
        %v2137 = vpop.f32.mrb[0].mxu0
        %v2138 = vadd.f32 %v1531, %v2137
        %v2139 = vpop.f32.mrb[0].mxu0
        %v2140 = vadd.f32 %v1532, %v2139
        %v2141 = vpop.f32.mrb[0].mxu0
        %v2142 = vadd.f32 %v1533, %v2141
        %2143 = vdwg.mxu0
        %v2144 = vld [vmem:[%s636] sm:$0x3]
        %v2146 = vlaneseq
        %v2147 = vshrl.u32 %v2146, 7
        %v2148 = vsub.s32 0, %v2147
        %v2149 = vrot.slane %v2144, %v2148
        %v2150 = vlaneseq
        %v2151 = vshrl.u32 %v2150, 7
        %v2152 = vsub.s32 1, %v2151
        %v2153 = vrot.slane %v2144, %v2152
        %v2156 = vadd.f32 %v1826, %v2149
        %v2157 = vadd.f32 %v1828, %v2153
        %v2158 = vadd.f32 %v1830, %v2149
        %v2159 = vadd.f32 %v1832, %v2153
        %v2160 = vadd.f32 %v1836, %v2149
        %v2161 = vadd.f32 %v1838, %v2153
        %v2162 = vadd.f32 %v1840, %v2149
        %v2163 = vadd.f32 %v1842, %v2153
        %v2164 = vadd.f32 %v1846, %v2149
        %v2165 = vadd.f32 %v1848, %v2153
        %v2166 = vadd.f32 %v1850, %v2149
        %v2167 = vadd.f32 %v1852, %v2153
        %v2168 = vadd.f32 %v1856, %v2149
        %v2169 = vadd.f32 %v1858, %v2153
        %v2170 = vadd.f32 %v1860, %v2149
        %v2171 = vadd.f32 %v1862, %v2153
        %v2172 = vadd.f32 %v1866, %v2149
        %v2173 = vadd.f32 %v1868, %v2153
        %v2174 = vadd.f32 %v1870, %v2149
        %v2175 = vadd.f32 %v1872, %v2153
        %v2176 = vadd.f32 %v1876, %v2149
        %v2177 = vadd.f32 %v1878, %v2153
        %v2178 = vadd.f32 %v1880, %v2149
        %v2179 = vadd.f32 %v1882, %v2153
        %v2180 = vadd.f32 %v1886, %v2149
        %v2181 = vadd.f32 %v1888, %v2153
        %v2182 = vadd.f32 %v1890, %v2149
        %v2183 = vadd.f32 %v1892, %v2153
        %v2184 = vadd.f32 %v1896, %v2149
        %v2185 = vadd.f32 %v1898, %v2153
        %v2186 = vadd.f32 %v1900, %v2149
        %v2187 = vadd.f32 %v1902, %v2153
        %v2188 = vadd.f32 %v1906, %v2149
        %v2189 = vadd.f32 %v1908, %v2153
        %v2190 = vadd.f32 %v1910, %v2149
        %v2191 = vadd.f32 %v1912, %v2153
        %v2192 = vadd.f32 %v1916, %v2149
        %v2193 = vadd.f32 %v1918, %v2153
        %v2194 = vadd.f32 %v1920, %v2149
        %v2195 = vadd.f32 %v1922, %v2153
        %v2196 = vadd.f32 %v1926, %v2149
        %v2197 = vadd.f32 %v1928, %v2153
        %v2198 = vadd.f32 %v1930, %v2149
        %v2199 = vadd.f32 %v1932, %v2153
        %v2200 = vadd.f32 %v1936, %v2149
        %v2201 = vadd.f32 %v1938, %v2153
        %v2202 = vadd.f32 %v1940, %v2149
        %v2203 = vadd.f32 %v1942, %v2153
        %v2204 = vadd.f32 %v1946, %v2149
        %v2205 = vadd.f32 %v1948, %v2153
        %v2206 = vadd.f32 %v1950, %v2149
        %v2207 = vadd.f32 %v1952, %v2153
        %v2208 = vadd.f32 %v1956, %v2149
        %v2209 = vadd.f32 %v1958, %v2153
        %v2210 = vadd.f32 %v1960, %v2149
        %v2211 = vadd.f32 %v1962, %v2153
        %v2212 = vadd.f32 %v1966, %v2149
        %v2213 = vadd.f32 %v1968, %v2153
        %v2214 = vadd.f32 %v1970, %v2149
        %v2215 = vadd.f32 %v1972, %v2153
        %v2216 = vadd.f32 %v1976, %v2149
        %v2217 = vadd.f32 %v1978, %v2153
        %v2218 = vadd.f32 %v1980, %v2149
        %v2219 = vadd.f32 %v1982, %v2153
        %v2220 = vadd.f32 %v1986, %v2149
        %v2221 = vadd.f32 %v1988, %v2153
        %v2222 = vadd.f32 %v1990, %v2149
        %v2223 = vadd.f32 %v1992, %v2153
        %v2224 = vadd.f32 %v1996, %v2149
        %v2225 = vadd.f32 %v1998, %v2153
        %v2226 = vadd.f32 %v2000, %v2149
        %v2227 = vadd.f32 %v2002, %v2153
        %v2228 = vadd.f32 %v2006, %v2149
        %v2229 = vadd.f32 %v2008, %v2153
        %v2230 = vadd.f32 %v2010, %v2149
        %v2231 = vadd.f32 %v2012, %v2153
        %v2232 = vadd.f32 %v2016, %v2149
        %v2233 = vadd.f32 %v2018, %v2153
        %v2234 = vadd.f32 %v2020, %v2149
        %v2235 = vadd.f32 %v2022, %v2153
        %v2236 = vadd.f32 %v2026, %v2149
        %v2237 = vadd.f32 %v2028, %v2153
        %v2238 = vadd.f32 %v2030, %v2149
        %v2239 = vadd.f32 %v2032, %v2153
        %v2240 = vadd.f32 %v2036, %v2149
        %v2241 = vadd.f32 %v2038, %v2153
        %v2242 = vadd.f32 %v2040, %v2149
        %v2243 = vadd.f32 %v2042, %v2153
        %v2244 = vadd.f32 %v2046, %v2149
        %v2245 = vadd.f32 %v2048, %v2153
        %v2246 = vadd.f32 %v2050, %v2149
        %v2247 = vadd.f32 %v2052, %v2153
        %v2248 = vadd.f32 %v2056, %v2149
        %v2249 = vadd.f32 %v2058, %v2153
        %v2250 = vadd.f32 %v2060, %v2149
        %v2251 = vadd.f32 %v2062, %v2153
        %v2252 = vadd.f32 %v2066, %v2149
        %v2253 = vadd.f32 %v2068, %v2153
        %v2254 = vadd.f32 %v2070, %v2149
        %v2255 = vadd.f32 %v2072, %v2153
        %v2256 = vadd.f32 %v2076, %v2149
        %v2257 = vadd.f32 %v2078, %v2153
        %v2258 = vadd.f32 %v2080, %v2149
        %v2259 = vadd.f32 %v2082, %v2153
        %v2260 = vadd.f32 %v2086, %v2149
        %v2261 = vadd.f32 %v2088, %v2153
        %v2262 = vadd.f32 %v2090, %v2149
        %v2263 = vadd.f32 %v2092, %v2153
        %v2264 = vadd.f32 %v2096, %v2149
        %v2265 = vadd.f32 %v2098, %v2153
        %v2266 = vadd.f32 %v2100, %v2149
        %v2267 = vadd.f32 %v2102, %v2153
        %v2268 = vadd.f32 %v2106, %v2149
        %v2269 = vadd.f32 %v2108, %v2153
        %v2270 = vadd.f32 %v2110, %v2149
        %v2271 = vadd.f32 %v2112, %v2153
        %v2272 = vadd.f32 %v2116, %v2149
        %v2273 = vadd.f32 %v2118, %v2153
        %v2274 = vadd.f32 %v2120, %v2149
        %v2275 = vadd.f32 %v2122, %v2153
        %v2276 = vadd.f32 %v2126, %v2149
        %v2277 = vadd.f32 %v2128, %v2153
        %v2278 = vadd.f32 %v2130, %v2149
        %v2279 = vadd.f32 %v2132, %v2153
        %v2280 = vadd.f32 %v2136, %v2149
        %v2281 = vadd.f32 %v2138, %v2153
        %v2282 = vadd.f32 %v2140, %v2149
        %v2283 = vadd.f32 %v2142, %v2153
        %v2284 = vsub.f32 0.0, %v2157
        %v2285 = vsub.f32 0.0, %v2159
        %v2286 = vsub.f32 0.0, %v2161
        %v2287 = vsub.f32 0.0, %v2163
        %v2288 = vsub.f32 0.0, %v2165
        %v2289 = vsub.f32 0.0, %v2167
        %v2290 = vsub.f32 0.0, %v2169
        %v2291 = vsub.f32 0.0, %v2171
        %v2292 = vsub.f32 0.0, %v2173
        %v2293 = vsub.f32 0.0, %v2175
        %v2294 = vsub.f32 0.0, %v2177
        %v2295 = vsub.f32 0.0, %v2179
        %v2296 = vsub.f32 0.0, %v2181
        %v2297 = vsub.f32 0.0, %v2183
        %v2298 = vsub.f32 0.0, %v2185
        %v2299 = vsub.f32 0.0, %v2187
        %v2300 = vsub.f32 0.0, %v2189
        %v2301 = vsub.f32 0.0, %v2191
        %v2302 = vsub.f32 0.0, %v2193
        %v2303 = vsub.f32 0.0, %v2195
        %v2304 = vsub.f32 0.0, %v2197
        %v2305 = vsub.f32 0.0, %v2199
        %v2306 = vsub.f32 0.0, %v2201
        %v2307 = vsub.f32 0.0, %v2203
        %v2308 = vsub.f32 0.0, %v2205
        %v2309 = vsub.f32 0.0, %v2207
        %v2310 = vsub.f32 0.0, %v2209
        %v2311 = vsub.f32 0.0, %v2211
        %v2312 = vsub.f32 0.0, %v2213
        %v2313 = vsub.f32 0.0, %v2215
        %v2314 = vsub.f32 0.0, %v2217
        %v2315 = vsub.f32 0.0, %v2219
        %v2316 = vsub.f32 0.0, %v2221
        %v2317 = vsub.f32 0.0, %v2223
        %v2318 = vsub.f32 0.0, %v2225
        %v2319 = vsub.f32 0.0, %v2227
        %v2320 = vsub.f32 0.0, %v2229
        %v2321 = vsub.f32 0.0, %v2231
        %v2322 = vsub.f32 0.0, %v2233
        %v2323 = vsub.f32 0.0, %v2235
        %v2324 = vsub.f32 0.0, %v2237
        %v2325 = vsub.f32 0.0, %v2239
        %v2326 = vsub.f32 0.0, %v2241
        %v2327 = vsub.f32 0.0, %v2243
        %v2328 = vsub.f32 0.0, %v2245
        %v2329 = vsub.f32 0.0, %v2247
        %v2330 = vsub.f32 0.0, %v2249
        %v2331 = vsub.f32 0.0, %v2251
        %v2332 = vsub.f32 0.0, %v2253
        %v2333 = vsub.f32 0.0, %v2255
        %v2334 = vsub.f32 0.0, %v2257
        %v2335 = vsub.f32 0.0, %v2259
        %v2336 = vsub.f32 0.0, %v2261
        %v2337 = vsub.f32 0.0, %v2263
        %v2338 = vsub.f32 0.0, %v2265
        %v2339 = vsub.f32 0.0, %v2267
        %v2340 = vsub.f32 0.0, %v2269
        %v2341 = vsub.f32 0.0, %v2271
        %v2342 = vsub.f32 0.0, %v2273
        %v2343 = vsub.f32 0.0, %v2275
        %v2344 = vsub.f32 0.0, %v2277
        %v2345 = vsub.f32 0.0, %v2279
        %v2346 = vsub.f32 0.0, %v2281
        %v2347 = vsub.f32 0.0, %v2283
        %v2348 = vmul.f32 %v2284, 1.442695
        %v2349 = vpow.pop %v2348
        %v2350 = vmul.f32 %v2285, 1.442695
        %v2351 = vpow.pop %v2350
        %v2352 = vmul.f32 %v2286, 1.442695
        %v2353 = vpow.pop %v2352
        %v2354 = vmul.f32 %v2287, 1.442695
        %v2355 = vpow.pop %v2354
        %v2356 = vmul.f32 %v2288, 1.442695
        %v2357 = vpow.pop %v2356
        %v2358 = vmul.f32 %v2289, 1.442695
        %v2359 = vpow.pop %v2358
        %v2360 = vmul.f32 %v2290, 1.442695
        %v2361 = vpow.pop %v2360
        %v2362 = vmul.f32 %v2291, 1.442695
        %v2363 = vpow.pop %v2362
        %v2364 = vmul.f32 %v2292, 1.442695
        %v2365 = vpow.pop %v2364
        %v2366 = vmul.f32 %v2293, 1.442695
        %v2367 = vpow.pop %v2366
        %v2368 = vmul.f32 %v2294, 1.442695
        %v2369 = vpow.pop %v2368
        %v2370 = vmul.f32 %v2295, 1.442695
        %v2371 = vpow.pop %v2370
        %v2372 = vmul.f32 %v2296, 1.442695
        %v2373 = vpow.pop %v2372
        %v2374 = vmul.f32 %v2297, 1.442695
        %v2375 = vpow.pop %v2374
        %v2376 = vmul.f32 %v2298, 1.442695
        %v2377 = vpow.pop %v2376
        %v2378 = vmul.f32 %v2299, 1.442695
        %v2379 = vpow.pop %v2378
        %v2380 = vmul.f32 %v2300, 1.442695
        %v2381 = vpow.pop %v2380
        %v2382 = vmul.f32 %v2301, 1.442695
        %v2383 = vpow.pop %v2382
        %v2384 = vmul.f32 %v2302, 1.442695
        %v2385 = vpow.pop %v2384
        %v2386 = vmul.f32 %v2303, 1.442695
        %v2387 = vpow.pop %v2386
        %v2388 = vmul.f32 %v2304, 1.442695
        %v2389 = vpow.pop %v2388
        %v2390 = vmul.f32 %v2305, 1.442695
        %v2391 = vpow.pop %v2390
        %v2392 = vmul.f32 %v2306, 1.442695
        %v2393 = vpow.pop %v2392
        %v2394 = vmul.f32 %v2307, 1.442695
        %v2395 = vpow.pop %v2394
        %v2396 = vmul.f32 %v2308, 1.442695
        %v2397 = vpow.pop %v2396
        %v2398 = vmul.f32 %v2309, 1.442695
        %v2399 = vpow.pop %v2398
        %v2400 = vmul.f32 %v2310, 1.442695
        %v2401 = vpow.pop %v2400
        %v2402 = vmul.f32 %v2311, 1.442695
        %v2403 = vpow.pop %v2402
        %v2404 = vmul.f32 %v2312, 1.442695
        %v2405 = vpow.pop %v2404
        %v2406 = vmul.f32 %v2313, 1.442695
        %v2407 = vpow.pop %v2406
        %v2408 = vmul.f32 %v2314, 1.442695
        %v2409 = vpow.pop %v2408
        %v2410 = vmul.f32 %v2315, 1.442695
        %v2411 = vpow.pop %v2410
        %v2412 = vmul.f32 %v2316, 1.442695
        %v2413 = vpow.pop %v2412
        %v2414 = vmul.f32 %v2317, 1.442695
        %v2415 = vpow.pop %v2414
        %v2416 = vmul.f32 %v2318, 1.442695
        %v2417 = vpow.pop %v2416
        %v2418 = vmul.f32 %v2319, 1.442695
        %v2419 = vpow.pop %v2418
        %v2420 = vmul.f32 %v2320, 1.442695
        %v2421 = vpow.pop %v2420
        %v2422 = vmul.f32 %v2321, 1.442695
        %v2423 = vpow.pop %v2422
        %v2424 = vmul.f32 %v2322, 1.442695
        %v2425 = vpow.pop %v2424
        %v2426 = vmul.f32 %v2323, 1.442695
        %v2427 = vpow.pop %v2426
        %v2428 = vmul.f32 %v2324, 1.442695
        %v2429 = vpow.pop %v2428
        %v2430 = vmul.f32 %v2325, 1.442695
        %v2431 = vpow.pop %v2430
        %v2432 = vmul.f32 %v2326, 1.442695
        %v2433 = vpow.pop %v2432
        %v2434 = vmul.f32 %v2327, 1.442695
        %v2435 = vpow.pop %v2434
        %v2436 = vmul.f32 %v2328, 1.442695
        %v2437 = vpow.pop %v2436
        %v2438 = vmul.f32 %v2329, 1.442695
        %v2439 = vpow.pop %v2438
        %v2440 = vmul.f32 %v2330, 1.442695
        %v2441 = vpow.pop %v2440
        %v2442 = vmul.f32 %v2331, 1.442695
        %v2443 = vpow.pop %v2442
        %v2444 = vmul.f32 %v2332, 1.442695
        %v2445 = vpow.pop %v2444
        %v2446 = vmul.f32 %v2333, 1.442695
        %v2447 = vpow.pop %v2446
        %v2448 = vmul.f32 %v2334, 1.442695
        %v2449 = vpow.pop %v2448
        %v2450 = vmul.f32 %v2335, 1.442695
        %v2451 = vpow.pop %v2450
        %v2452 = vmul.f32 %v2336, 1.442695
        %v2453 = vpow.pop %v2452
        %v2454 = vmul.f32 %v2337, 1.442695
        %v2455 = vpow.pop %v2454
        %v2456 = vmul.f32 %v2338, 1.442695
        %v2457 = vpow.pop %v2456
        %v2458 = vmul.f32 %v2339, 1.442695
        %v2459 = vpow.pop %v2458
        %v2460 = vmul.f32 %v2340, 1.442695
        %v2461 = vpow.pop %v2460
        %v2462 = vmul.f32 %v2341, 1.442695
        %v2463 = vpow.pop %v2462
        %v2464 = vmul.f32 %v2342, 1.442695
        %v2465 = vpow.pop %v2464
        %v2466 = vmul.f32 %v2343, 1.442695
        %v2467 = vpow.pop %v2466
        %v2468 = vmul.f32 %v2344, 1.442695
        %v2469 = vpow.pop %v2468
        %v2470 = vmul.f32 %v2345, 1.442695
        %v2471 = vpow.pop %v2470
        %v2472 = vmul.f32 %v2346, 1.442695
        %v2473 = vpow.pop %v2472
        %v2474 = vmul.f32 %v2347, 1.442695
        %v2475 = vpow.pop %v2474
        %v2476 = vadd.f32 %v2349, 1.0
        %v2477 = vadd.f32 %v2351, 1.0
        %v2478 = vadd.f32 %v2353, 1.0
        %v2479 = vadd.f32 %v2355, 1.0
        %v2480 = vadd.f32 %v2357, 1.0
        %v2481 = vadd.f32 %v2359, 1.0
        %v2482 = vadd.f32 %v2361, 1.0
        %v2483 = vadd.f32 %v2363, 1.0
        %v2484 = vadd.f32 %v2365, 1.0
        %v2485 = vadd.f32 %v2367, 1.0
        %v2486 = vadd.f32 %v2369, 1.0
        %v2487 = vadd.f32 %v2371, 1.0
        %v2488 = vadd.f32 %v2373, 1.0
        %v2489 = vadd.f32 %v2375, 1.0
        %v2490 = vadd.f32 %v2377, 1.0
        %v2491 = vadd.f32 %v2379, 1.0
        %v2492 = vadd.f32 %v2381, 1.0
        %v2493 = vadd.f32 %v2383, 1.0
        %v2494 = vadd.f32 %v2385, 1.0
        %v2495 = vadd.f32 %v2387, 1.0
        %v2496 = vadd.f32 %v2389, 1.0
        %v2497 = vadd.f32 %v2391, 1.0
        %v2498 = vadd.f32 %v2393, 1.0
        %v2499 = vadd.f32 %v2395, 1.0
        %v2500 = vadd.f32 %v2397, 1.0
        %v2501 = vadd.f32 %v2399, 1.0
        %v2502 = vadd.f32 %v2401, 1.0
        %v2503 = vadd.f32 %v2403, 1.0
        %v2504 = vadd.f32 %v2405, 1.0
        %v2505 = vadd.f32 %v2407, 1.0
        %v2506 = vadd.f32 %v2409, 1.0
        %v2507 = vadd.f32 %v2411, 1.0
        %v2508 = vadd.f32 %v2413, 1.0
        %v2509 = vadd.f32 %v2415, 1.0
        %v2510 = vadd.f32 %v2417, 1.0
        %v2511 = vadd.f32 %v2419, 1.0
        %v2512 = vadd.f32 %v2421, 1.0
        %v2513 = vadd.f32 %v2423, 1.0
        %v2514 = vadd.f32 %v2425, 1.0
        %v2515 = vadd.f32 %v2427, 1.0
        %v2516 = vadd.f32 %v2429, 1.0
        %v2517 = vadd.f32 %v2431, 1.0
        %v2518 = vadd.f32 %v2433, 1.0
        %v2519 = vadd.f32 %v2435, 1.0
        %v2520 = vadd.f32 %v2437, 1.0
        %v2521 = vadd.f32 %v2439, 1.0
        %v2522 = vadd.f32 %v2441, 1.0
        %v2523 = vadd.f32 %v2443, 1.0
        %v2524 = vadd.f32 %v2445, 1.0
        %v2525 = vadd.f32 %v2447, 1.0
        %v2526 = vadd.f32 %v2449, 1.0
        %v2527 = vadd.f32 %v2451, 1.0
        %v2528 = vadd.f32 %v2453, 1.0
        %v2529 = vadd.f32 %v2455, 1.0
        %v2530 = vadd.f32 %v2457, 1.0
        %v2531 = vadd.f32 %v2459, 1.0
        %v2532 = vadd.f32 %v2461, 1.0
        %v2533 = vadd.f32 %v2463, 1.0
        %v2534 = vadd.f32 %v2465, 1.0
        %v2535 = vadd.f32 %v2467, 1.0
        %v2536 = vadd.f32 %v2469, 1.0
        %v2537 = vadd.f32 %v2471, 1.0
        %v2538 = vadd.f32 %v2473, 1.0
        %v2539 = vadd.f32 %v2475, 1.0
        %v2540 = vrcp.pop %v2476
        %v2541 = vrcp.pop %v2477
        %v2542 = vrcp.pop %v2478
        %v2543 = vrcp.pop %v2479
        %v2544 = vrcp.pop %v2480
        %v2545 = vrcp.pop %v2481
        %v2546 = vrcp.pop %v2482
        %v2547 = vrcp.pop %v2483
        %v2548 = vrcp.pop %v2484
        %v2549 = vrcp.pop %v2485
        %v2550 = vrcp.pop %v2486
        %v2551 = vrcp.pop %v2487
        %v2552 = vrcp.pop %v2488
        %v2553 = vrcp.pop %v2489
        %v2554 = vrcp.pop %v2490
        %v2555 = vrcp.pop %v2491
        %v2556 = vrcp.pop %v2492
        %v2557 = vrcp.pop %v2493
        %v2558 = vrcp.pop %v2494
        %v2559 = vrcp.pop %v2495
        %v2560 = vrcp.pop %v2496
        %v2561 = vrcp.pop %v2497
        %v2562 = vrcp.pop %v2498
        %v2563 = vrcp.pop %v2499
        %v2564 = vrcp.pop %v2500
        %v2565 = vrcp.pop %v2501
        %v2566 = vrcp.pop %v2502
        %v2567 = vrcp.pop %v2503
        %v2568 = vrcp.pop %v2504
        %v2569 = vrcp.pop %v2505
        %v2570 = vrcp.pop %v2506
        %v2571 = vrcp.pop %v2507
        %v2572 = vrcp.pop %v2508
        %v2573 = vrcp.pop %v2509
        %v2574 = vrcp.pop %v2510
        %v2575 = vrcp.pop %v2511
        %v2576 = vrcp.pop %v2512
        %v2577 = vrcp.pop %v2513
        %v2578 = vrcp.pop %v2514
        %v2579 = vrcp.pop %v2515
        %v2580 = vrcp.pop %v2516
        %v2581 = vrcp.pop %v2517
        %v2582 = vrcp.pop %v2518
        %v2583 = vrcp.pop %v2519
        %v2584 = vrcp.pop %v2520
        %v2585 = vrcp.pop %v2521
        %v2586 = vrcp.pop %v2522
        %v2587 = vrcp.pop %v2523
        %v2588 = vrcp.pop %v2524
        %v2589 = vrcp.pop %v2525
        %v2590 = vrcp.pop %v2526
        %v2591 = vrcp.pop %v2527
        %v2592 = vrcp.pop %v2528
        %v2593 = vrcp.pop %v2529
        %v2594 = vrcp.pop %v2530
        %v2595 = vrcp.pop %v2531
        %v2596 = vrcp.pop %v2532
        %v2597 = vrcp.pop %v2533
        %v2598 = vrcp.pop %v2534
        %v2599 = vrcp.pop %v2535
        %v2600 = vrcp.pop %v2536
        %v2601 = vrcp.pop %v2537
        %v2602 = vrcp.pop %v2538
        %v2603 = vrcp.pop %v2539
        %v2604 = vmul.f32 %v2156, %v2540
        %v2605 = vmul.f32 %v2158, %v2541
        %v2606 = vmul.f32 %v2160, %v2542
        %v2607 = vmul.f32 %v2162, %v2543
        %v2608 = vmul.f32 %v2164, %v2544
        %v2609 = vmul.f32 %v2166, %v2545
        %v2610 = vmul.f32 %v2168, %v2546
        %v2611 = vmul.f32 %v2170, %v2547
        %v2612 = vmul.f32 %v2172, %v2548
        %v2613 = vmul.f32 %v2174, %v2549
        %v2614 = vmul.f32 %v2176, %v2550
        %v2615 = vmul.f32 %v2178, %v2551
        %v2616 = vmul.f32 %v2180, %v2552
        %v2617 = vmul.f32 %v2182, %v2553
        %v2618 = vmul.f32 %v2184, %v2554
        %v2619 = vmul.f32 %v2186, %v2555
        %v2620 = vmul.f32 %v2188, %v2556
        %v2621 = vmul.f32 %v2190, %v2557
        %v2622 = vmul.f32 %v2192, %v2558
        %v2623 = vmul.f32 %v2194, %v2559
        %v2624 = vmul.f32 %v2196, %v2560
        %v2625 = vmul.f32 %v2198, %v2561
        %v2626 = vmul.f32 %v2200, %v2562
        %v2627 = vmul.f32 %v2202, %v2563
        %v2628 = vmul.f32 %v2204, %v2564
        %v2629 = vmul.f32 %v2206, %v2565
        %v2630 = vmul.f32 %v2208, %v2566
        %v2631 = vmul.f32 %v2210, %v2567
        %v2632 = vmul.f32 %v2212, %v2568
        %v2633 = vmul.f32 %v2214, %v2569
        %v2634 = vmul.f32 %v2216, %v2570
        %v2635 = vmul.f32 %v2218, %v2571
        %v2636 = vmul.f32 %v2220, %v2572
        %v2637 = vmul.f32 %v2222, %v2573
        %v2638 = vmul.f32 %v2224, %v2574
        %v2639 = vmul.f32 %v2226, %v2575
        %v2640 = vmul.f32 %v2228, %v2576
        %v2641 = vmul.f32 %v2230, %v2577
        %v2642 = vmul.f32 %v2232, %v2578
        %v2643 = vmul.f32 %v2234, %v2579
        %v2644 = vmul.f32 %v2236, %v2580
        %v2645 = vmul.f32 %v2238, %v2581
        %v2646 = vmul.f32 %v2240, %v2582
        %v2647 = vmul.f32 %v2242, %v2583
        %v2648 = vmul.f32 %v2244, %v2584
        %v2649 = vmul.f32 %v2246, %v2585
        %v2650 = vmul.f32 %v2248, %v2586
        %v2651 = vmul.f32 %v2250, %v2587
        %v2652 = vmul.f32 %v2252, %v2588
        %v2653 = vmul.f32 %v2254, %v2589
        %v2654 = vmul.f32 %v2256, %v2590
        %v2655 = vmul.f32 %v2258, %v2591
        %v2656 = vmul.f32 %v2260, %v2592
        %v2657 = vmul.f32 %v2262, %v2593
        %v2658 = vmul.f32 %v2264, %v2594
        %v2659 = vmul.f32 %v2266, %v2595
        %v2660 = vmul.f32 %v2268, %v2596
        %v2661 = vmul.f32 %v2270, %v2597
        %v2662 = vmul.f32 %v2272, %v2598
        %v2663 = vmul.f32 %v2274, %v2599
        %v2664 = vmul.f32 %v2276, %v2600
        %v2665 = vmul.f32 %v2278, %v2601
        %v2666 = vmul.f32 %v2280, %v2602
        %v2667 = vmul.f32 %v2282, %v2603
        %v2668 = vld [vmem:[%s617] sm:$0xff]
        %v2669 = vld [vmem:[%s617 + $0x8] sm:$0xff]
        %v2670 = vld [vmem:[%s617 + $0x10] sm:$0xff]
        %v2671 = vld [vmem:[%s617 + $0x18] sm:$0xff]
        %v2672 = vld [vmem:[%s617 + $0x20] sm:$0xff]
        %v2673 = vld [vmem:[%s617 + $0x28] sm:$0xff]
        %v2674 = vld [vmem:[%s617 + $0x30] sm:$0xff]
        %v2675 = vld [vmem:[%s617 + $0x38] sm:$0xff]
        %v2676 = vld [vmem:[%s617 + $0x40] sm:$0xff]
        %v2677 = vld [vmem:[%s617 + $0x48] sm:$0xff]
        %v2678 = vld [vmem:[%s617 + $0x50] sm:$0xff]
        %v2679 = vld [vmem:[%s617 + $0x58] sm:$0xff]
        %v2680 = vld [vmem:[%s617 + $0x60] sm:$0xff]
        %v2681 = vld [vmem:[%s617 + $0x68] sm:$0xff]
        %v2682 = vld [vmem:[%s617 + $0x70] sm:$0xff]
        %v2683 = vld [vmem:[%s617 + $0x78] sm:$0xff]
        %v2684 = vld [vmem:[%s617 + $0x80] sm:$0xff]
        %v2685 = vld [vmem:[%s617 + $0x88] sm:$0xff]
        %v2686 = vld [vmem:[%s617 + $0x90] sm:$0xff]
        %v2687 = vld [vmem:[%s617 + $0x98] sm:$0xff]
        %v2688 = vld [vmem:[%s617 + $0xa0] sm:$0xff]
        %v2689 = vld [vmem:[%s617 + $0xa8] sm:$0xff]
        %v2690 = vld [vmem:[%s617 + $0xb0] sm:$0xff]
        %v2691 = vld [vmem:[%s617 + $0xb8] sm:$0xff]
        %v2692 = vld [vmem:[%s617 + $0xc0] sm:$0xff]
        %v2693 = vld [vmem:[%s617 + $0xc8] sm:$0xff]
        %v2694 = vld [vmem:[%s617 + $0xd0] sm:$0xff]
        %v2695 = vld [vmem:[%s617 + $0xd8] sm:$0xff]
        %v2696 = vld [vmem:[%s617 + $0xe0] sm:$0xff]
        %v2697 = vld [vmem:[%s617 + $0xe8] sm:$0xff]
        %v2698 = vld [vmem:[%s617 + $0xf0] sm:$0xff]
        %v2699 = vld [vmem:[%s617 + $0xf8] sm:$0xff]
        %v2700 = vld [vmem:[%s617 + $0x100] sm:$0xff]
        %v2701 = vld [vmem:[%s617 + $0x108] sm:$0xff]
        %v2702 = vld [vmem:[%s617 + $0x110] sm:$0xff]
        %v2703 = vld [vmem:[%s617 + $0x118] sm:$0xff]
        %v2704 = vld [vmem:[%s617 + $0x120] sm:$0xff]
        %v2705 = vld [vmem:[%s617 + $0x128] sm:$0xff]
        %v2706 = vld [vmem:[%s617 + $0x130] sm:$0xff]
        %v2707 = vld [vmem:[%s617 + $0x138] sm:$0xff]
        %v2708 = vld [vmem:[%s617 + $0x140] sm:$0xff]
        %v2709 = vld [vmem:[%s617 + $0x148] sm:$0xff]
        %v2710 = vld [vmem:[%s617 + $0x150] sm:$0xff]
        %v2711 = vld [vmem:[%s617 + $0x158] sm:$0xff]
        %v2712 = vld [vmem:[%s617 + $0x160] sm:$0xff]
        %v2713 = vld [vmem:[%s617 + $0x168] sm:$0xff]
        %v2714 = vld [vmem:[%s617 + $0x170] sm:$0xff]
        %v2715 = vld [vmem:[%s617 + $0x178] sm:$0xff]
        %v2716 = vld [vmem:[%s617 + $0x180] sm:$0xff]
        %v2717 = vld [vmem:[%s617 + $0x188] sm:$0xff]
        %v2718 = vld [vmem:[%s617 + $0x190] sm:$0xff]
        %v2719 = vld [vmem:[%s617 + $0x198] sm:$0xff]
        %v2720 = vld [vmem:[%s617 + $0x1a0] sm:$0xff]
        %v2721 = vld [vmem:[%s617 + $0x1a8] sm:$0xff]
        %v2722 = vld [vmem:[%s617 + $0x1b0] sm:$0xff]
        %v2723 = vld [vmem:[%s617 + $0x1b8] sm:$0xff]
        %v2724 = vld [vmem:[%s617 + $0x1c0] sm:$0xff]
        %v2725 = vld [vmem:[%s617 + $0x1c8] sm:$0xff]
        %v2726 = vld [vmem:[%s617 + $0x1d0] sm:$0xff]
        %v2727 = vld [vmem:[%s617 + $0x1d8] sm:$0xff]
        %v2728 = vld [vmem:[%s617 + $0x1e0] sm:$0xff]
        %v2729 = vld [vmem:[%s617 + $0x1e8] sm:$0xff]
        %v2730 = vld [vmem:[%s617 + $0x1f0] sm:$0xff]
        %v2731 = vld [vmem:[%s617 + $0x1f8] sm:$0xff]
        %2733 = vset.pattern.permute.xlu0 0
        %2734 = vperm.xlu0 %2733, %v2668
        %v2735 = vpop.permute.xlu0 %2734
        %2738 = vset.pattern.permute.xlu0 0
        %2739 = vperm.xlu0 %2738, %v2669
        %v2740 = vpop.permute.xlu0 %2739
        %2743 = vset.pattern.permute.xlu0 0
        %2744 = vperm.xlu0 %2743, %v2670
        %v2745 = vpop.permute.xlu0 %2744
        %2748 = vset.pattern.permute.xlu0 0
        %2749 = vperm.xlu0 %2748, %v2671
        %v2750 = vpop.permute.xlu0 %2749
        %2753 = vset.pattern.permute.xlu0 0
        %2754 = vperm.xlu0 %2753, %v2672
        %v2755 = vpop.permute.xlu0 %2754
        %2758 = vset.pattern.permute.xlu0 0
        %2759 = vperm.xlu0 %2758, %v2673
        %v2760 = vpop.permute.xlu0 %2759
        %2763 = vset.pattern.permute.xlu0 0
        %2764 = vperm.xlu0 %2763, %v2674
        %v2765 = vpop.permute.xlu0 %2764
        %2768 = vset.pattern.permute.xlu0 0
        %2769 = vperm.xlu0 %2768, %v2675
        %v2770 = vpop.permute.xlu0 %2769
        %2773 = vset.pattern.permute.xlu0 0
        %2774 = vperm.xlu0 %2773, %v2676
        %v2775 = vpop.permute.xlu0 %2774
        %2778 = vset.pattern.permute.xlu0 0
        %2779 = vperm.xlu0 %2778, %v2677
        %v2780 = vpop.permute.xlu0 %2779
        %2783 = vset.pattern.permute.xlu0 0
        %2784 = vperm.xlu0 %2783, %v2678
        %v2785 = vpop.permute.xlu0 %2784
        %2788 = vset.pattern.permute.xlu0 0
        %2789 = vperm.xlu0 %2788, %v2679
        %v2790 = vpop.permute.xlu0 %2789
        %2793 = vset.pattern.permute.xlu0 0
        %2794 = vperm.xlu0 %2793, %v2680
        %v2795 = vpop.permute.xlu0 %2794
        %2798 = vset.pattern.permute.xlu0 0
        %2799 = vperm.xlu0 %2798, %v2681
        %v2800 = vpop.permute.xlu0 %2799
        %2803 = vset.pattern.permute.xlu0 0
        %2804 = vperm.xlu0 %2803, %v2682
        %v2805 = vpop.permute.xlu0 %2804
        %2808 = vset.pattern.permute.xlu0 0
        %2809 = vperm.xlu0 %2808, %v2683
        %v2810 = vpop.permute.xlu0 %2809
        %2813 = vset.pattern.permute.xlu0 0
        %2814 = vperm.xlu0 %2813, %v2684
        %v2815 = vpop.permute.xlu0 %2814
        %2818 = vset.pattern.permute.xlu0 0
        %2819 = vperm.xlu0 %2818, %v2685
        %v2820 = vpop.permute.xlu0 %2819
        %2823 = vset.pattern.permute.xlu0 0
        %2824 = vperm.xlu0 %2823, %v2686
        %v2825 = vpop.permute.xlu0 %2824
        %2828 = vset.pattern.permute.xlu0 0
        %2829 = vperm.xlu0 %2828, %v2687
        %v2830 = vpop.permute.xlu0 %2829
        %2833 = vset.pattern.permute.xlu0 0
        %2834 = vperm.xlu0 %2833, %v2688
        %v2835 = vpop.permute.xlu0 %2834
        %2838 = vset.pattern.permute.xlu0 0
        %2839 = vperm.xlu0 %2838, %v2689
        %v2840 = vpop.permute.xlu0 %2839
        %2843 = vset.pattern.permute.xlu0 0
        %2844 = vperm.xlu0 %2843, %v2690
        %v2845 = vpop.permute.xlu0 %2844
        %2848 = vset.pattern.permute.xlu0 0
        %2849 = vperm.xlu0 %2848, %v2691
        %v2850 = vpop.permute.xlu0 %2849
        %2853 = vset.pattern.permute.xlu0 0
        %2854 = vperm.xlu0 %2853, %v2692
        %v2855 = vpop.permute.xlu0 %2854
        %2858 = vset.pattern.permute.xlu0 0
        %2859 = vperm.xlu0 %2858, %v2693
        %v2860 = vpop.permute.xlu0 %2859
        %2863 = vset.pattern.permute.xlu0 0
        %2864 = vperm.xlu0 %2863, %v2694
        %v2865 = vpop.permute.xlu0 %2864
        %2868 = vset.pattern.permute.xlu0 0
        %2869 = vperm.xlu0 %2868, %v2695
        %v2870 = vpop.permute.xlu0 %2869
        %2873 = vset.pattern.permute.xlu0 0
        %2874 = vperm.xlu0 %2873, %v2696
        %v2875 = vpop.permute.xlu0 %2874
        %2878 = vset.pattern.permute.xlu0 0
        %2879 = vperm.xlu0 %2878, %v2697
        %v2880 = vpop.permute.xlu0 %2879
        %2883 = vset.pattern.permute.xlu0 0
        %2884 = vperm.xlu0 %2883, %v2698
        %v2885 = vpop.permute.xlu0 %2884
        %2888 = vset.pattern.permute.xlu0 0
        %2889 = vperm.xlu0 %2888, %v2699
        %v2890 = vpop.permute.xlu0 %2889
        %2893 = vset.pattern.permute.xlu0 0
        %2894 = vperm.xlu0 %2893, %v2700
        %v2895 = vpop.permute.xlu0 %2894
        %2898 = vset.pattern.permute.xlu0 0
        %2899 = vperm.xlu0 %2898, %v2701
        %v2900 = vpop.permute.xlu0 %2899
        %2903 = vset.pattern.permute.xlu0 0
        %2904 = vperm.xlu0 %2903, %v2702
        %v2905 = vpop.permute.xlu0 %2904
        %2908 = vset.pattern.permute.xlu0 0
        %2909 = vperm.xlu0 %2908, %v2703
        %v2910 = vpop.permute.xlu0 %2909
        %2913 = vset.pattern.permute.xlu0 0
        %2914 = vperm.xlu0 %2913, %v2704
        %v2915 = vpop.permute.xlu0 %2914
        %2918 = vset.pattern.permute.xlu0 0
        %2919 = vperm.xlu0 %2918, %v2705
        %v2920 = vpop.permute.xlu0 %2919
        %2923 = vset.pattern.permute.xlu0 0
        %2924 = vperm.xlu0 %2923, %v2706
        %v2925 = vpop.permute.xlu0 %2924
        %2928 = vset.pattern.permute.xlu0 0
        %2929 = vperm.xlu0 %2928, %v2707
        %v2930 = vpop.permute.xlu0 %2929
        %2933 = vset.pattern.permute.xlu0 0
        %2934 = vperm.xlu0 %2933, %v2708
        %v2935 = vpop.permute.xlu0 %2934
        %2938 = vset.pattern.permute.xlu0 0
        %2939 = vperm.xlu0 %2938, %v2709
        %v2940 = vpop.permute.xlu0 %2939
        %2943 = vset.pattern.permute.xlu0 0
        %2944 = vperm.xlu0 %2943, %v2710
        %v2945 = vpop.permute.xlu0 %2944
        %2948 = vset.pattern.permute.xlu0 0
        %2949 = vperm.xlu0 %2948, %v2711
        %v2950 = vpop.permute.xlu0 %2949
        %2953 = vset.pattern.permute.xlu0 0
        %2954 = vperm.xlu0 %2953, %v2712
        %v2955 = vpop.permute.xlu0 %2954
        %2958 = vset.pattern.permute.xlu0 0
        %2959 = vperm.xlu0 %2958, %v2713
        %v2960 = vpop.permute.xlu0 %2959
        %2963 = vset.pattern.permute.xlu0 0
        %2964 = vperm.xlu0 %2963, %v2714
        %v2965 = vpop.permute.xlu0 %2964
        %2968 = vset.pattern.permute.xlu0 0
        %2969 = vperm.xlu0 %2968, %v2715
        %v2970 = vpop.permute.xlu0 %2969
        %2973 = vset.pattern.permute.xlu0 0
        %2974 = vperm.xlu0 %2973, %v2716
        %v2975 = vpop.permute.xlu0 %2974
        %2978 = vset.pattern.permute.xlu0 0
        %2979 = vperm.xlu0 %2978, %v2717
        %v2980 = vpop.permute.xlu0 %2979
        %2983 = vset.pattern.permute.xlu0 0
        %2984 = vperm.xlu0 %2983, %v2718
        %v2985 = vpop.permute.xlu0 %2984
        %2988 = vset.pattern.permute.xlu0 0
        %2989 = vperm.xlu0 %2988, %v2719
        %v2990 = vpop.permute.xlu0 %2989
        %2993 = vset.pattern.permute.xlu0 0
        %2994 = vperm.xlu0 %2993, %v2720
        %v2995 = vpop.permute.xlu0 %2994
        %2998 = vset.pattern.permute.xlu0 0
        %2999 = vperm.xlu0 %2998, %v2721
        %v3000 = vpop.permute.xlu0 %2999
        %3003 = vset.pattern.permute.xlu0 0
        %3004 = vperm.xlu0 %3003, %v2722
        %v3005 = vpop.permute.xlu0 %3004
        %3008 = vset.pattern.permute.xlu0 0
        %3009 = vperm.xlu0 %3008, %v2723
        %v3010 = vpop.permute.xlu0 %3009
        %3013 = vset.pattern.permute.xlu0 0
        %3014 = vperm.xlu0 %3013, %v2724
        %v3015 = vpop.permute.xlu0 %3014
        %3018 = vset.pattern.permute.xlu0 0
        %3019 = vperm.xlu0 %3018, %v2725
        %v3020 = vpop.permute.xlu0 %3019
        %3023 = vset.pattern.permute.xlu0 0
        %3024 = vperm.xlu0 %3023, %v2726
        %v3025 = vpop.permute.xlu0 %3024
        %3028 = vset.pattern.permute.xlu0 0
        %3029 = vperm.xlu0 %3028, %v2727
        %v3030 = vpop.permute.xlu0 %3029
        %3033 = vset.pattern.permute.xlu0 0
        %3034 = vperm.xlu0 %3033, %v2728
        %v3035 = vpop.permute.xlu0 %3034
        %3038 = vset.pattern.permute.xlu0 0
        %3039 = vperm.xlu0 %3038, %v2729
        %v3040 = vpop.permute.xlu0 %3039
        %3043 = vset.pattern.permute.xlu0 0
        %3044 = vperm.xlu0 %3043, %v2730
        %v3045 = vpop.permute.xlu0 %3044
        %3048 = vset.pattern.permute.xlu0 0
        %3049 = vperm.xlu0 %3048, %v2731
        %v3050 = vpop.permute.xlu0 %3049
        %v3052 = vmul.f32 %v2735, %v2604
        %v3053 = vmul.f32 %v2740, %v2605
        %v3054 = vmul.f32 %v2745, %v2606
        %v3055 = vmul.f32 %v2750, %v2607
        %v3056 = vmul.f32 %v2755, %v2608
        %v3057 = vmul.f32 %v2760, %v2609
        %v3058 = vmul.f32 %v2765, %v2610
        %v3059 = vmul.f32 %v2770, %v2611
        %v3060 = vmul.f32 %v2775, %v2612
        %v3061 = vmul.f32 %v2780, %v2613
        %v3062 = vmul.f32 %v2785, %v2614
        %v3063 = vmul.f32 %v2790, %v2615
        %v3064 = vmul.f32 %v2795, %v2616
        %v3065 = vmul.f32 %v2800, %v2617
        %v3066 = vmul.f32 %v2805, %v2618
        %v3067 = vmul.f32 %v2810, %v2619
        %v3068 = vmul.f32 %v2815, %v2620
        %v3069 = vmul.f32 %v2820, %v2621
        %v3070 = vmul.f32 %v2825, %v2622
        %v3071 = vmul.f32 %v2830, %v2623
        %v3072 = vmul.f32 %v2835, %v2624
        %v3073 = vmul.f32 %v2840, %v2625
        %v3074 = vmul.f32 %v2845, %v2626
        %v3075 = vmul.f32 %v2850, %v2627
        %v3076 = vmul.f32 %v2855, %v2628
        %v3077 = vmul.f32 %v2860, %v2629
        %v3078 = vmul.f32 %v2865, %v2630
        %v3079 = vmul.f32 %v2870, %v2631
        %v3080 = vmul.f32 %v2875, %v2632
        %v3081 = vmul.f32 %v2880, %v2633
        %v3082 = vmul.f32 %v2885, %v2634
        %v3083 = vmul.f32 %v2890, %v2635
        %v3084 = vmul.f32 %v2895, %v2636
        %v3085 = vmul.f32 %v2900, %v2637
        %v3086 = vmul.f32 %v2905, %v2638
        %v3087 = vmul.f32 %v2910, %v2639
        %v3088 = vmul.f32 %v2915, %v2640
        %v3089 = vmul.f32 %v2920, %v2641
        %v3090 = vmul.f32 %v2925, %v2642
        %v3091 = vmul.f32 %v2930, %v2643
        %v3092 = vmul.f32 %v2935, %v2644
        %v3093 = vmul.f32 %v2940, %v2645
        %v3094 = vmul.f32 %v2945, %v2646
        %v3095 = vmul.f32 %v2950, %v2647
        %v3096 = vmul.f32 %v2955, %v2648
        %v3097 = vmul.f32 %v2960, %v2649
        %v3098 = vmul.f32 %v2965, %v2650
        %v3099 = vmul.f32 %v2970, %v2651
        %v3100 = vmul.f32 %v2975, %v2652
        %v3101 = vmul.f32 %v2980, %v2653
        %v3102 = vmul.f32 %v2985, %v2654
        %v3103 = vmul.f32 %v2990, %v2655
        %v3104 = vmul.f32 %v2995, %v2656
        %v3105 = vmul.f32 %v3000, %v2657
        %v3106 = vmul.f32 %v3005, %v2658
        %v3107 = vmul.f32 %v3010, %v2659
        %v3108 = vmul.f32 %v3015, %v2660
        %v3109 = vmul.f32 %v3020, %v2661
        %v3110 = vmul.f32 %v3025, %v2662
        %v3111 = vmul.f32 %v3030, %v2663
        %v3112 = vmul.f32 %v3035, %v2664
        %v3113 = vmul.f32 %v3040, %v2665
        %v3114 = vmul.f32 %v3045, %v2666
        %v3115 = vmul.f32 %v3050, %v2667
        %v3116 = vpack.c.bf16 %v3053, %v3052
        %v3117 = vpack.c.bf16 %v3055, %v3054
        %v3118 = vpack.c.bf16 %v3057, %v3056
        %v3119 = vpack.c.bf16 %v3059, %v3058
        %v3120 = vpack.c.bf16 %v3061, %v3060
        %v3121 = vpack.c.bf16 %v3063, %v3062
        %v3122 = vpack.c.bf16 %v3065, %v3064
        %v3123 = vpack.c.bf16 %v3067, %v3066
        %v3124 = vpack.c.bf16 %v3069, %v3068
        %v3125 = vpack.c.bf16 %v3071, %v3070
        %v3126 = vpack.c.bf16 %v3073, %v3072
        %v3127 = vpack.c.bf16 %v3075, %v3074
        %v3128 = vpack.c.bf16 %v3077, %v3076
        %v3129 = vpack.c.bf16 %v3079, %v3078
        %v3130 = vpack.c.bf16 %v3081, %v3080
        %v3131 = vpack.c.bf16 %v3083, %v3082
        %v3132 = vpack.c.bf16 %v3085, %v3084
        %v3133 = vpack.c.bf16 %v3087, %v3086
        %v3134 = vpack.c.bf16 %v3089, %v3088
        %v3135 = vpack.c.bf16 %v3091, %v3090
        %v3136 = vpack.c.bf16 %v3093, %v3092
        %v3137 = vpack.c.bf16 %v3095, %v3094
        %v3138 = vpack.c.bf16 %v3097, %v3096
        %v3139 = vpack.c.bf16 %v3099, %v3098
        %v3140 = vpack.c.bf16 %v3101, %v3100
        %v3141 = vpack.c.bf16 %v3103, %v3102
        %v3142 = vpack.c.bf16 %v3105, %v3104
        %v3143 = vpack.c.bf16 %v3107, %v3106
        %v3144 = vpack.c.bf16 %v3109, %v3108
        %v3145 = vpack.c.bf16 %v3111, %v3110
        %v3146 = vpack.c.bf16 %v3113, %v3112
        %v3147 = vpack.c.bf16 %v3115, %v3114
        %v3148 = vld [vmem:[#allocation3] sm:$0xff]
        %v3149 = vld [vmem:[#allocation3 + $0x8] sm:$0xff]
        %v3150 = vld [vmem:[%s601] sm:$0xff]
        %v3151 = vld [vmem:[%s601 + $0x8] sm:$0xff]
        %v3152 = vld [vmem:[%s601 + $0x10] sm:$0xff]
        %v3153 = vld [vmem:[%s601 + $0x18] sm:$0xff]
        %v3158 = vunpack.c.l.b16 %v3150
        %v3159 = vunpack.c.h.b16 %v3150
        %v3160 = vunpack.c.l.b16 %v3151
        %v3161 = vunpack.c.h.b16 %v3151
        %v3162 = vunpack.c.l.b16 %v3152
        %v3163 = vunpack.c.h.b16 %v3152
        %v3164 = vunpack.c.l.b16 %v3153
        %v3165 = vunpack.c.h.b16 %v3153
        %v3166 = vpack.c.b16 %v3162, %v3158
        %v3167 = vpack.c.b16 %v3163, %v3159
        %v3168 = vpack.c.b16 %v3164, %v3160
        %v3169 = vpack.c.b16 %v3165, %v3161
        %3174 = vmatprep.subr.bf16.mxu0 0
        %3175 = vmatpush1.bf16.msra.mxu0 %v3116
        %3176 = vmatprep.subr.bf16.mxu0 0
        %3177 = vmatpush1.bf16.msra.mxu0 %v3117
        %3178 = vmatprep.subr.bf16.mxu0 0
        %3179 = vmatpush1.bf16.msra.mxu0 %v3118
        %3180 = vmatprep.subr.bf16.mxu0 0
        %3181 = vmatpush1.bf16.msra.mxu0 %v3119
        %3182 = vmatprep.subr.bf16.mxu0 0
        %3183 = vmatpush1.bf16.msra.mxu0 %v3120
        %3184 = vmatprep.subr.bf16.mxu0 0
        %3185 = vmatpush1.bf16.msra.mxu0 %v3121
        %3186 = vmatprep.subr.bf16.mxu0 0
        %3187 = vmatpush1.bf16.msra.mxu0 %v3122
        %3188 = vmatprep.subr.bf16.mxu0 0
        %3189 = vmatpush1.bf16.msra.mxu0 %v3123
        %3190 = vmatprep.subr.bf16.mxu0 0
        %3191 = vmatpush1.bf16.msra.mxu0 %v3124
        %3192 = vmatprep.subr.bf16.mxu0 0
        %3193 = vmatpush1.bf16.msra.mxu0 %v3125
        %3194 = vmatprep.subr.bf16.mxu0 0
        %3195 = vmatpush1.bf16.msra.mxu0 %v3126
        %3196 = vmatprep.subr.bf16.mxu0 0
        %3197 = vmatpush1.bf16.msra.mxu0 %v3127
        %3198 = vmatprep.subr.bf16.mxu0 0
        %3199 = vmatpush1.bf16.msra.mxu0 %v3128
        %3200 = vmatprep.subr.bf16.mxu0 0
        %3201 = vmatpush1.bf16.msra.mxu0 %v3129
        %3202 = vmatprep.subr.bf16.mxu0 0
        %3203 = vmatpush1.bf16.msra.mxu0 %v3130
        %3204 = vmatprep.subr.bf16.mxu0 0
        %3205 = vmatpush1.bf16.msra.mxu0 %v3131
        %3206 = vmatprep.mubr.bf16.mxu0 %v3167
        %3207 = vmatmul.mubr.bf16.gmra.mrb[0].mxu0 %v3166
        %v3208 = vpop.f32.mrb[0].mxu0
        %v3209 = vadd.f32 0.0, %v3208
        %v3210 = vpop.f32.mrb[0].mxu0
        %v3211 = vpop.f32.mrb[0].mxu0
        %v3212 = vadd.f32 0.0, %v3211
        %v3213 = vpop.f32.mrb[0].mxu0
        %3214 = vdwg.mxu0
        %3215 = vmatprep.subr.bf16.mxu0 0
        %3216 = vmatpush1.bf16.msra.mxu0 %v3132
        %3217 = vmatprep.subr.bf16.mxu0 0
        %3218 = vmatpush1.bf16.msra.mxu0 %v3133
        %3219 = vmatprep.subr.bf16.mxu0 0
        %3220 = vmatpush1.bf16.msra.mxu0 %v3134
        %3221 = vmatprep.subr.bf16.mxu0 0
        %3222 = vmatpush1.bf16.msra.mxu0 %v3135
        %3223 = vmatprep.subr.bf16.mxu0 0
        %3224 = vmatpush1.bf16.msra.mxu0 %v3136
        %3225 = vmatprep.subr.bf16.mxu0 0
        %3226 = vmatpush1.bf16.msra.mxu0 %v3137
        %3227 = vmatprep.subr.bf16.mxu0 0
        %3228 = vmatpush1.bf16.msra.mxu0 %v3138
        %3229 = vmatprep.subr.bf16.mxu0 0
        %3230 = vmatpush1.bf16.msra.mxu0 %v3139
        %3231 = vmatprep.subr.bf16.mxu0 0
        %3232 = vmatpush1.bf16.msra.mxu0 %v3140
        %3233 = vmatprep.subr.bf16.mxu0 0
        %3234 = vmatpush1.bf16.msra.mxu0 %v3141
        %3235 = vmatprep.subr.bf16.mxu0 0
        %3236 = vmatpush1.bf16.msra.mxu0 %v3142
        %3237 = vmatprep.subr.bf16.mxu0 0
        %3238 = vmatpush1.bf16.msra.mxu0 %v3143
        %3239 = vmatprep.subr.bf16.mxu0 0
        %3240 = vmatpush1.bf16.msra.mxu0 %v3144
        %3241 = vmatprep.subr.bf16.mxu0 0
        %3242 = vmatpush1.bf16.msra.mxu0 %v3145
        %3243 = vmatprep.subr.bf16.mxu0 0
        %3244 = vmatpush1.bf16.msra.mxu0 %v3146
        %3245 = vmatprep.subr.bf16.mxu0 0
        %3246 = vmatpush1.bf16.msra.mxu0 %v3147
        %3247 = vmatprep.mubr.bf16.mxu0 %v3169
        %3248 = vmatmul.mubr.bf16.gmra.mrb[0].mxu0 %v3168
        %v3249 = vpop.f32.mrb[0].mxu0
        %v3250 = vadd.f32 %v3209, %v3249
        %v3251 = vpop.f32.mrb[0].mxu0
        %v3252 = vpop.f32.mrb[0].mxu0
        %v3253 = vadd.f32 %v3212, %v3252
        %v3254 = vpop.f32.mrb[0].mxu0
        %3255 = vdwg.mxu0
        %v3256 = vadd.f32 %v3148, %v3250
        %v3257 = vadd.f32 %v3149, %v3253
        %3258 = vst [vmem:[#allocation3] sm:$0xff] %v3256
        %3259 = vst [vmem:[#allocation3 + $0x8] sm:$0xff] %v3257
        // Predicated region
        $region89: #{tpu_custom_call.1} parent=75 // pred_check
          %p3260 = pneg %p639
        $region90: #{tpu_custom_call.1} parent=75 // pred_check_branch
          %3262 = sbr.rel (%p3260) target = $region92
        $region91: #{tpu_custom_call.1} parent=75 // pred_region
          %s3263 = sld [smem:[#allocation6 + %s32]]
          %s3264 = sadd.f32 %s3263, 1.0
          %v3265 = vld [vmem:[#allocation2] sm:$0xff]
          %v3266 = vld [vmem:[#allocation2 + $0x8] sm:$0xff]
          %v3267 = vstv %s3264
          %v3268 = vmul.f32 %v3267, %v3265
          %v3269 = vmul.f32 %v3267, %v3266
          %v3270 = vld [vmem:[#allocation3] sm:$0xff]
          %v3271 = vld [vmem:[#allocation3 + $0x8] sm:$0xff]
          %v3272 = vadd.f32 %v3268, %v3270
          %v3273 = vadd.f32 %v3269, %v3271
          %3274 = vst [vmem:[#allocation2] sm:$0xff] %v3272
          %3275 = vst [vmem:[#allocation2 + $0x8] sm:$0xff] %v3273
        $region92: #{tpu_custom_call.1} parent=75 // pred_fallthru
          _
        %p3276 = scmp.eq.s32.totalorder %s32, 1
        %p3277 = pnand %p3276, %p639
        %p3278 = pneg %p3277
        // Predicated region
        $region93: #{tpu_custom_call.1} parent=75 // pred_check
          _
        $region94: #{tpu_custom_call.1} parent=75 // pred_check_branch
          %3280 = sbr.rel (%p3277) target = $region96
        $region95: #{tpu_custom_call.1} parent=75 // pred_region
          %v3281 = vld [vmem:[%s3] sm:$0x1]
          %v3282 = vld [vmem:[#allocation2] sm:$0xff]
          %v3283 = vld [vmem:[#allocation2 + $0x8] sm:$0xff]
          %vm3284 = vcmask 130048
          %v3286 = vsel %vm3284, %v3281, 0
          %3288 = vmatprep.subr.mxu0 0.0
          %3289 = vmatpush1.msra.mxu0 %v3282
          %3290 = vmatprep.subr.mxu0 0.0
          %3291 = vmatpush1.msra.mxu0 %v3283
          %3292 = vmatprep.subr.mxu0 0.0
          %3293 = vmatpush1.msra.mxu0 0.0
          %3294 = vmatprep.subr.mxu0 0.0
          %3295 = vmatpush1.msra.mxu0 0.0
          %3296 = vmatprep.subr.mxu0 0.0
          %3297 = vmatpush1.msra.mxu0 0.0
          %3298 = vmatprep.subr.mxu0 0.0
          %3299 = vmatpush1.msra.mxu0 0.0
          %3300 = vmatprep.subr.mxu0 0.0
          %3301 = vmatpush1.msra.mxu0 0.0
          %3302 = vmatprep.subr.mxu0 0.0
          %3303 = vmatpush1.msra.mxu0 0.0
          %3304 = vmatprep.subr.mxu0 0.0
          %3305 = vmatpush1.msra.mxu0 0.0
          %3306 = vmatprep.subr.mxu0 0.0
          %3307 = vmatpush1.msra.mxu0 0.0
          %3308 = vmatprep.subr.mxu0 0.0
          %3309 = vmatpush1.msra.mxu0 0.0
          %3310 = vmatprep.subr.mxu0 0.0
          %3311 = vmatpush1.msra.mxu0 0.0
          %3312 = vmatprep.subr.mxu0 0.0
          %3313 = vmatpush1.msra.mxu0 0.0
          %3314 = vmatprep.subr.mxu0 0.0
          %3315 = vmatpush1.msra.mxu0 0.0
          %3316 = vmatprep.subr.mxu0 0.0
          %3317 = vmatpush1.msra.mxu0 0.0
          %3318 = vmatprep.subr.mxu0 0.0
          %3319 = vmatpush1.msra.mxu0 0.0
          %3320 = vmatprep.subr.mxu0 0.0
          %3321 = vmatpush1.msra.mxu0 0.0
          %3322 = vmatprep.subr.mxu0 0.0
          %3323 = vmatpush1.msra.mxu0 0.0
          %3324 = vmatprep.subr.mxu0 0.0
          %3325 = vmatpush1.msra.mxu0 0.0
          %3326 = vmatprep.subr.mxu0 0.0
          %3327 = vmatpush1.msra.mxu0 0.0
          %3328 = vmatprep.subr.mxu0 0.0
          %3329 = vmatpush1.msra.mxu0 0.0
          %3330 = vmatprep.subr.mxu0 0.0
          %3331 = vmatpush1.msra.mxu0 0.0
          %3332 = vmatprep.subr.mxu0 0.0
          %3333 = vmatpush1.msra.mxu0 0.0
          %3334 = vmatprep.subr.mxu0 0.0
          %3335 = vmatpush1.msra.mxu0 0.0
          %3336 = vmatprep.subr.mxu0 0.0
          %3337 = vmatpush1.msra.mxu0 0.0
          %3338 = vmatprep.subr.mxu0 0.0
          %3339 = vmatpush1.msra.mxu0 0.0
          %3340 = vmatprep.subr.mxu0 0.0
          %3341 = vmatpush1.msra.mxu0 0.0
          %3342 = vmatprep.subr.mxu0 0.0
          %3343 = vmatpush1.msra.mxu0 0.0
          %3344 = vmatprep.subr.mxu0 0.0
          %3345 = vmatpush1.msra.mxu0 0.0
          %3346 = vmatprep.subr.mxu0 0.0
          %3347 = vmatpush1.msra.mxu0 0.0
          %3348 = vmatprep.subr.mxu0 0.0
          %3349 = vmatpush1.msra.mxu0 0.0
          %3350 = vmatprep.subr.mxu0 0.0
          %3351 = vmatpush1.msra.mxu0 0.0
          %3352 = vmatprep.mubr.f32.mxu0 0.0
          %3353 = vmatmul.mubr.f32.gmra.mrb[0].mxu0 %v3286
          %v3354 = vpop.f32.mrb[0].mxu0
          %v3355 = vadd.f32 0.0, %v3354
          %v3356 = vpop.f32.mrb[0].mxu0
          %3357 = vdwg.mxu0
          %s3358 = sld [smem:[#allocation5]]
          %v3359 = vstv %s3358
          %v3360 = vmul.f32 %v3355, %v3359
          %v3361 = vld [vmem:[%s12] sm:$0xff]
          %v3362 = vld [vmem:[%s12 + $0x8] sm:$0xff]
          %v3363 = vld [vmem:[%s12 + $0x10] sm:$0xff]
          %v3364 = vld [vmem:[%s12 + $0x18] sm:$0xff]
          %v3365 = vld [vmem:[%s12 + $0x20] sm:$0xff]
          %v3366 = vld [vmem:[%s12 + $0x28] sm:$0xff]
          %v3367 = vld [vmem:[%s12 + $0x30] sm:$0xff]
          %v3368 = vld [vmem:[%s12 + $0x38] sm:$0xff]
          %v3369 = vld [vmem:[%s12 + $0x40] sm:$0xff]
          %v3370 = vld [vmem:[%s12 + $0x48] sm:$0xff]
          %v3371 = vld [vmem:[%s12 + $0x50] sm:$0xff]
          %v3372 = vld [vmem:[%s12 + $0x58] sm:$0xff]
          %v3373 = vld [vmem:[%s12 + $0x60] sm:$0xff]
          %v3374 = vld [vmem:[%s12 + $0x68] sm:$0xff]
          %v3375 = vld [vmem:[%s12 + $0x70] sm:$0xff]
          %v3376 = vld [vmem:[%s12 + $0x78] sm:$0xff]
          %v3377 = vld [vmem:[%s13] sm:$0x1]
          %3378 = vmatprep.subr.mxu0 0.0
          %3379 = vmatpush1.msra.mxu0 %v3361
          %3380 = vmatprep.subr.mxu0 0.0
          %3381 = vmatpush1.msra.mxu0 %v3362
          %3382 = vmatprep.subr.mxu0 0.0
          %3383 = vmatpush1.msra.mxu0 %v3363
          %3384 = vmatprep.subr.mxu0 0.0
          %3385 = vmatpush1.msra.mxu0 %v3364
          %3386 = vmatprep.subr.mxu0 0.0
          %3387 = vmatpush1.msra.mxu0 %v3365
          %3388 = vmatprep.subr.mxu0 0.0
          %3389 = vmatpush1.msra.mxu0 %v3366
          %3390 = vmatprep.subr.mxu0 0.0
          %3391 = vmatpush1.msra.mxu0 %v3367
          %3392 = vmatprep.subr.mxu0 0.0
          %3393 = vmatpush1.msra.mxu0 %v3368
          %3394 = vmatprep.subr.mxu0 0.0
          %3395 = vmatpush1.msra.mxu0 %v3369
          %3396 = vmatprep.subr.mxu0 0.0
          %3397 = vmatpush1.msra.mxu0 %v3370
          %3398 = vmatprep.subr.mxu0 0.0
          %3399 = vmatpush1.msra.mxu0 %v3371
          %3400 = vmatprep.subr.mxu0 0.0
          %3401 = vmatpush1.msra.mxu0 %v3372
          %3402 = vmatprep.subr.mxu0 0.0
          %3403 = vmatpush1.msra.mxu0 %v3373
          %3404 = vmatprep.subr.mxu0 0.0
          %3405 = vmatpush1.msra.mxu0 %v3374
          %3406 = vmatprep.subr.mxu0 0.0
          %3407 = vmatpush1.msra.mxu0 %v3375
          %3408 = vmatprep.subr.mxu0 0.0
          %3409 = vmatpush1.msra.mxu0 %v3376
          %3410 = vmatprep.subr.mxu0 0.0
          %3411 = vmatpush1.msra.mxu0 0.0
          %3412 = vmatprep.subr.mxu0 0.0
          %3413 = vmatpush1.msra.mxu0 0.0
          %3414 = vmatprep.subr.mxu0 0.0
          %3415 = vmatpush1.msra.mxu0 0.0
          %3416 = vmatprep.subr.mxu0 0.0
          %3417 = vmatpush1.msra.mxu0 0.0
          %3418 = vmatprep.subr.mxu0 0.0
          %3419 = vmatpush1.msra.mxu0 0.0
          %3420 = vmatprep.subr.mxu0 0.0
          %3421 = vmatpush1.msra.mxu0 0.0
          %3422 = vmatprep.subr.mxu0 0.0
          %3423 = vmatpush1.msra.mxu0 0.0
          %3424 = vmatprep.subr.mxu0 0.0
          %3425 = vmatpush1.msra.mxu0 0.0
          %3426 = vmatprep.subr.mxu0 0.0
          %3427 = vmatpush1.msra.mxu0 0.0
          %3428 = vmatprep.subr.mxu0 0.0
          %3429 = vmatpush1.msra.mxu0 0.0
          %3430 = vmatprep.subr.mxu0 0.0
          %3431 = vmatpush1.msra.mxu0 0.0
          %3432 = vmatprep.subr.mxu0 0.0
          %3433 = vmatpush1.msra.mxu0 0.0
          %3434 = vmatprep.subr.mxu0 0.0
          %3435 = vmatpush1.msra.mxu0 0.0
          %3436 = vmatprep.subr.mxu0 0.0
          %3437 = vmatpush1.msra.mxu0 0.0
          %3438 = vmatprep.subr.mxu0 0.0
          %3439 = vmatpush1.msra.mxu0 0.0
          %3440 = vmatprep.subr.mxu0 0.0
          %3441 = vmatpush1.msra.mxu0 0.0
          %3442 = vmatprep.mubr.f32.mxu0 0.0
          %3443 = vmatmul.mubr.f32.gmra.mrb[0].mxu0 %v3360
          %v3444 = vpop.f32.mrb[0].mxu0
          %v3445 = vadd.f32 %v3377, %v3444
          %v3446 = vpop.f32.mrb[0].mxu0
          %3447 = vdwg.mxu0
          %v3448 = vxor.u32 %v3445, 2147483648
          %v3449 = vmul.f32 %v3448, 1.442695
          %v3450 = vpow.pop %v3449
          %v3451 = vadd.f32 %v3450, 1.0
          %v3452 = vrcp.pop %v3451
          %v3453 = vmul.f32 1.0, %v3452
          %3454 = vst [vmem:[#allocation9] sm:$0x1] %v3453
        $region96: #{tpu_custom_call.1} parent=75 // pred_fallthru
          _
        // Predicated region
        $region97: #{tpu_custom_call.1} parent=75 // pred_check
          %p3455 = pneg %p389
        $region98: #{tpu_custom_call.1} parent=75 // pred_check_branch
          %3457 = sbr.rel (%p3455) target = $region100
        $region99: #{tpu_custom_call.1} parent=75 // pred_region
          %s3459 = ssub.s32 16, 16
          %3460 = vsyncadd [#allocation7], %s3459
          %s3462 = sshll.u32 [#allocation9], 4
          %s3463 = int_to_ptr.vmem [resolvable:$true] %s3462
          %3465 = dma.vmem_to_hbm [thread:$0]  %s3463, 16, %s14, [#allocation7]
        $region100: #{tpu_custom_call.1} parent=75 // pred_fallthru
          _
        // Predicated region
        $region101: #{tpu_custom_call.1} parent=75 // pred_check
          %p3466 = pneg %p389
        $region102: #{tpu_custom_call.1} parent=75 // pred_check_branch
          %3468 = sbr.rel (%p3466) target = $region104
        $region103: #{tpu_custom_call.1} parent=75 // pred_region
          %3469 = dma.done [#allocation7], 16
        $region104: #{tpu_custom_call.1} parent=75 // pred_fallthru
          _
      $region76: #{tpu_custom_call.1} parent=5 // pred_fallthru
        _
      %p3470 = scmp.le.s32.totalorder 2, %s23
      // Predicated region
      $region105: #{tpu_custom_call.1} parent=5 // pred_check
        %p3471 = pneg %p3470
      $region106: #{tpu_custom_call.1} parent=5 // pred_check_branch
        %3473 = sbr.rel (%p3471) target = $region108
      $region107: #{tpu_custom_call.1} parent=5 // pred_region
        %s3474 = ssub.s32 %s23, 2
      $region108: #{tpu_custom_call.1} parent=5 // pred_fallthru
        _
    $region6: #{tpu_custom_call.1} parent=1 // loop_footer
      %s27 = sadd.s32 1, %s23
    $region7: #{tpu_custom_call.1} parent=1 // loop_footer_branch
      %22 = sbr.rel target = $region3
    $region8: #{tpu_custom_call.1} parent=1 // loop_exit
      _
    %3475 = vsyncpa [#allocation7], 1
    %s3476 = scalar_lea.sflag [#allocation7], 1
    %3477 = vsyncpa %s3476, 1
    %3478 = vsyncpa [#allocation8], 1
    %s3479 = scalar_lea.sflag [#allocation8], 1
    %3480 = vsyncpa %s3479, 1

</llo_original>
